<compile_context>
chip_gen: v6e
topology: v6e:2x2x1
jax: 0.10.0
libtpu: 0.0.40
codegen_flags: <defaults>
</compile_context>

<pallas_src>
import math
import jax
import jax.numpy as jnp
from jax.experimental import pallas as pl
from jax.experimental.pallas import tpu as pltpu

EMB_DIM = 32        # emb_dim
CODEBOOK = 64       # motion_codebook_size ('VQ' path)

_VMEM_LIMIT = 32 * 1024 * 1024   # explicit budget (safe on v5e/v6e/v7x)


# ---------------------------------------------------------------------------
# Pallas kernel 1: fused matmul + bias + (optional) ELU, lane-dense output.
#   computes  O[Cout, tile_M] = W[Cout, K] @ X[K, tile_M] + b[Cout, 1]
#   (bf16 MXU inputs, f32 accumulate/epilogue).  Used for every Conv2d (im2col)
#   and for proj_e (1x1 Conv1d).
# ---------------------------------------------------------------------------
def _mm_kernel(act):
    def kernel(w_ref, x_ref, b_ref, o_ref):
        y = jnp.dot(w_ref[...], x_ref[...], preferred_element_type=jnp.float32)
        y = y + b_ref[...]                                  # (Cout,1) lane-broadcast
        if act == "elu":                                    # ELU(alpha=1), f32 epilogue
            y = jnp.where(y > 0, y, jnp.exp(jnp.minimum(y, 0.0)) - 1.0)
        elif act == "relu":
            y = jnp.maximum(y, 0.0)
        o_ref[...] = y
    return kernel


def matmul_bias_act(x_km, w_nk, b, act="none", tm=1024):
    """x_km: (K, M), w_nk: (N, K), b: (N,).  Returns (N, M) float32."""
    K, M = x_km.shape
    N = w_nk.shape[0]
    # Pad M to a lane-aligned tile; single grid step when M is small.
    Mp = max(128, ((M + 127) // 128) * 128)
    tile = min(tm, Mp)
    Mp = ((Mp + tile - 1) // tile) * tile
    x = jnp.pad(x_km.astype(jnp.bfloat16), ((0, 0), (0, Mp - M)))
    w = w_nk.astype(jnp.bfloat16)
    out = pl.pallas_call(
        _mm_kernel(act),
        out_shape=jax.ShapeDtypeStruct((N, Mp), jnp.float32),
        grid=(Mp // tile,),
        in_specs=[
            pl.BlockSpec((N, K), lambda i: (0, 0)),       # weights resident
            pl.BlockSpec((K, tile), lambda i: (0, i)),    # lane-dense activation tile
            pl.BlockSpec((N, 1), lambda i: (0, 0)),       # bias resident
        ],
        out_specs=pl.BlockSpec((N, tile), lambda i: (0, i)),   # lane-dense stores
        compiler_params=pltpu.CompilerParams(
            dimension_semantics=("parallel",),
            vmem_limit_bytes=_VMEM_LIMIT),
    )(w, x, b.reshape(N, 1).astype(jnp.float32))
    return out[:, :M]


# ---------------------------------------------------------------------------
# Pallas kernel 2: row-tiled softmax + argmax + cross-entropy pieces.
#   Per tile: pred (argmax on logits), correct-class probability, and a
#   partial NLL sum (padded rows masked out).  Mean CE finalized outside.
# ---------------------------------------------------------------------------
def _softmax_ce_kernel(r_valid, tile_r):
    def kernel(x_ref, lbl_ref, pred_ref, corr_ref, nll_ref):
        x = x_ref[...]                                     # (tr, C) f32 logits
        lbl = lbl_ref[...]                                 # (tr, 1) int32
        C = x.shape[1]
        col = jax.lax.broadcasted_iota(jnp.int32, x.shape, 1)
        m = jnp.max(x, axis=-1, keepdims=True)
        # argmax on logits (first max index) — matches torch.argmax semantics
        pred_ref[...] = jnp.min(jnp.where(x == m, col, C), axis=-1, keepdims=True)
        e = jnp.exp(x - m)
        s = jnp.sum(e, axis=-1, keepdims=True)
        p = e * pl.reciprocal(s, approx=True)              # EUP reciprocal
        onehot = (col == lbl).astype(jnp.float32)
        corr_ref[...] = jnp.sum(p * onehot, axis=-1, keepdims=True)   # probs[i, x_l[i]]
        logp = (x - m) - jnp.log(s)
        nll = -jnp.sum(logp * onehot, axis=-1, keepdims=True)         # (tr, 1)
        row = pl.program_id(0) * tile_r + jax.lax.broadcasted_iota(jnp.int32, nll.shape, 0)
        nll = jnp.where(row < r_valid, nll, 0.0)           # mask padded rows
        nll_ref[...] = jnp.sum(nll, axis=0, keepdims=True) # per-tile partial sum
    return kernel


def softmax_ce(logits, labels, tile_r=256):
    R, C = logits.shape
    tr = min(tile_r, ((R + 7) // 8) * 8)
    Rp = ((R + tr - 1) // tr) * tr
    xp = jnp.pad(logits.astype(jnp.float32), ((0, Rp - R), (0, 0)))
    lp = jnp.pad(labels.astype(jnp.int32), ((0, Rp - R),)).reshape(Rp, 1)
    n_tiles = Rp // tr
    pred, corr, nll = pl.pallas_call(
        _softmax_ce_kernel(R, tr),
        out_shape=(jax.ShapeDtypeStruct((Rp, 1), jnp.int32),
                   jax.ShapeDtypeStruct((Rp, 1), jnp.float32),
                   jax.ShapeDtypeStruct((n_tiles, 1), jnp.float32)),
        grid=(n_tiles,),
        in_specs=[pl.BlockSpec((tr, C), lambda i: (i, 0)),
                  pl.BlockSpec((tr, 1), lambda i: (i, 0))],
        out_specs=(pl.BlockSpec((tr, 1), lambda i: (i, 0)),
                   pl.BlockSpec((tr, 1), lambda i: (i, 0)),
                   pl.BlockSpec((1, 1), lambda i: (i, 0))),
        compiler_params=pltpu.CompilerParams(
            dimension_semantics=("parallel",),
            vmem_limit_bytes=_VMEM_LIMIT),
    )(xp, lp)
    loss = jnp.sum(nll) / R                      # mean over TRUE row count only
    return pred[:R], corr[:R], loss


# ---------------------------------------------------------------------------
# Glue: CNHW-layout Conv2d via im2col (no transposes), max-pool, params, fwd
# ---------------------------------------------------------------------------
def conv2d_cnhw(x, w, b, pad, act):
    """x: (Cin, B, H, W) CNHW, w: (Cout, Cin, kh, kw). Returns (Cout, B, oh, ow)."""
    Cout, Cin, kh, kw = w.shape
    xp = jnp.pad(x, ((0, 0), (0, 0), (pad[0], pad[0]), (pad[1], pad[1])))
    _, B, H, W = xp.shape
    oh, ow = H - kh + 1, W - kw + 1
    # (Cin, kh*kw, B, oh, ow): slices only, no transposes in CNHW layout
    patches = jnp.stack([xp[:, :, i:i + oh, j:j + ow]
                         for i in range(kh) for j in range(kw)], axis=1)
    x_km = patches.reshape(Cin * kh * kw, B * oh * ow)
    w_nk = w.reshape(Cout, Cin * kh * kw)
    y = matmul_bias_act(x_km, w_nk, b, act=act)            # Pallas MXU matmul + ELU
    return y.reshape(Cout, B, oh, ow)


def maxpool_w3(x):
    """MaxPool2d(kernel_size=(1,3)) on CNHW; floor behavior like PyTorch."""
    C_, B, H, W = x.shape
    Wt = (W // 3) * 3
    return x[..., :Wt].reshape(C_, B, H, W // 3, 3).max(axis=-1)


def init_params(key):
    ks = jax.random.split(key, 10)
    def w(k, shape):
        fan_in = math.prod(shape[1:])
        return jax.random.normal(k, shape, jnp.float32) / math.sqrt(fan_in)
    def bias(k, n):
        return 0.01 * jax.random.normal(k, (n,), jnp.float32)
    return {
        "w1": w(ks[0], (EMB_DIM, 1, 3, 3)),        "b1": bias(ks[5], EMB_DIM),
        "w2": w(ks[1], (EMB_DIM, EMB_DIM, 1, 10)), "b2": bias(ks[6], EMB_DIM),
        "w3": w(ks[2], (EMB_DIM, EMB_DIM, 3, 3)),  "b3": bias(ks[7], EMB_DIM),
        "w4": w(ks[3], (EMB_DIM, EMB_DIM, 3, 3)),  "b4": bias(ks[8], EMB_DIM),
        "w_pe": w(ks[4], (CODEBOOK, EMB_DIM, 1)),  "b_pe": bias(ks[9], CODEBOOK),
        # NOTE: self.proj is defined in __init__ but never used in forward -> omitted.
    }


@jax.jit
def _forward_core(x, x_l, params):
    N, T, S, C = x.shape
    # preprocess (aggregate=True): NCHW (N*T, 1, S, C) kept as CNHW (1, N*T, S, C)
    h = x.reshape(-1, S, C)[None, :, :, :]
    # in_emb ('VQ' / no 'R' branch); Dropout(0.15) is identity in eval
    h = conv2d_cnhw(h, params["w1"], params["b1"], pad=(0, 0), act="elu"); h = maxpool_w3(h)
    h = conv2d_cnhw(h, params["w2"], params["b2"], pad=(0, 0), act="elu"); h = maxpool_w3(h)
    h = conv2d_cnhw(h, params["w3"], params["b3"], pad=(0, 0), act="elu"); h = maxpool_w3(h)
    h = conv2d_cnhw(h, params["w4"], params["b4"], pad=(1, 1), act="elu"); h = maxpool_w3(h)
    c, NT, s, f = h.shape                                   # reference requires s == 1
    h = h.reshape(c, N, T, f)
    # TODO(synk): self.encoder = Sampler(emb_dim, emb_dim, downsample_ratios) has no
    # definition in the reference source; treated as identity here.
    # proj_e (Conv1d kernel=1) directly in (K=c, M=(n,f,t)) GEMM layout
    x_km = jnp.transpose(h, (0, 1, 3, 2)).reshape(c, N * f * T)
    w_pe = params["w_pe"].reshape(CODEBOOK, c)
    logits = matmul_bias_act(x_km, w_pe, params["b_pe"], act="none").T   # (R, CODEBOOK)
    labels = jnp.swapaxes(x_l, 1, 2).reshape(-1)                         # (n, f, t) order
    pred, corr, loss = softmax_ce(logits, labels)
    x_l_pred = pred.reshape(N * f, T)
    return loss, x_l_pred, corr.reshape(-1)


def music_lm_forward(x, x_l, params, metrics, training=False):
    loss, x_l_pred, corr = _forward_core(x, x_l, params)
    metrics.setdefault("correct_probability", []).append(corr)
    if training:
        return loss, metrics
    return loss, metrics, x_l_pred


if __name__ == "__main__":
    key = jax.random.PRNGKey(0)
    kp, kx, kl = jax.random.split(key, 3)
    params = init_params(kp)
    # S=5, C=128 so the in_emb stack collapses H->1 (required by the reference reshape)
    # and W->1, matching the (N, T, c, f) reshape with f=1.
    N, T, S, C = 2, 4, 5, 128
    x = jax.random.normal(kx, (N, T, S, C), jnp.float32)
    x_l = jax.random.randint(kl, (N, T, 1), 0, CODEBOOK, dtype=jnp.int32)
    metrics = {}
    loss, metrics, x_l_pred = music_lm_forward(x, x_l, params, metrics, training=False)
    jax.block_until_ready((loss, x_l_pred, metrics["correct_probability"][0]))
    assert bool(jnp.isfinite(loss))
    assert x_l_pred.shape == (N, T)
    assert metrics["correct_probability"][0].shape == (N * T,)
    print("KERNEL_OK")
</pallas_src>

<mosaic_0001>
module attributes {stable_mosaic.version = 11 : i64} {
  func.func @kernel(%arg0: i32, %arg1: memref<32x9xbf16, #tpu.memory_space<vmem>>, %arg2: memref<9x1024xbf16, #tpu.memory_space<vmem>>, %arg3: memref<32x1xf32, #tpu.memory_space<vmem>>, %arg4: memref<32x1024xf32, #tpu.memory_space<vmem>>) attributes {dimension_semantics = [#tpu.dimension_semantics<parallel>], iteration_bounds = array<i64: 3>, scalar_prefetch = 0 : i64, scratch_operands = 0 : i64, tpu.core_type = #tpu.core_type<tc>, window_params = [{pipeline_mode = #tpu.pipeline_mode<synchronous>, transform_indices = @transform_0, window_bounds = array<i64: 32, 9>}, {transform_indices = @transform_1, window_bounds = array<i64: 9, 1024>}, {pipeline_mode = #tpu.pipeline_mode<synchronous>, transform_indices = @transform_2, window_bounds = array<i64: 32, 1>}, {transform_indices = @transform_3, window_bounds = array<i64: 32, 1024>}]} {
    %c0 = arith.constant 0 : index
    %c0_0 = arith.constant 0 : index
    %0 = vector.load %arg1[%c0, %c0_0] : memref<32x9xbf16, #tpu.memory_space<vmem>>, vector<32x9xbf16>
    %c0_1 = arith.constant 0 : index
    %c0_2 = arith.constant 0 : index
    %1 = vector.load %arg2[%c0_1, %c0_2] : memref<9x1024xbf16, #tpu.memory_space<vmem>>, vector<9x1024xbf16>
    %cst = arith.constant dense<0.000000e+00> : vector<32x1024xf32>
    %2 = tpu.matmul %0, %1, %cst {dimension_numbers = #tpu.dot_dimension_numbers<[1], [0], [0], [1], [0, 0, 1, 1], [], []>} : vector<32x9xbf16>, vector<9x1024xbf16>, vector<32x1024xf32> -> vector<32x1024xf32>
    %c0_3 = arith.constant 0 : index
    %c0_4 = arith.constant 0 : index
    %3 = vector.load %arg3[%c0_3, %c0_4] : memref<32x1xf32, #tpu.memory_space<vmem>>, vector<32x1xf32>
    %4 = vector.broadcast %3 : vector<32x1xf32> to vector<32x1024xf32>
    %5 = arith.addf %2, %4 : vector<32x1024xf32>
    %cst_5 = arith.constant 0.000000e+00 : f32
    %6 = vector.broadcast %cst_5 : f32 to vector<32x1024xf32>
    %7 = arith.cmpf ogt, %5, %6 : vector<32x1024xf32>
    %cst_6 = arith.constant 0.000000e+00 : f32
    %8 = vector.broadcast %cst_6 : f32 to vector<32x1024xf32>
    %9 = arith.minimumf %5, %8 : vector<32x1024xf32>
    %10 = math.exp %9 : vector<32x1024xf32>
    %cst_7 = arith.constant 1.000000e+00 : f32
    %11 = vector.broadcast %cst_7 : f32 to vector<32x1024xf32>
    %12 = arith.subf %10, %11 : vector<32x1024xf32>
    %13 = arith.select %7, %5, %12 : vector<32x1024xi1>, vector<32x1024xf32>
    %c0_8 = arith.constant 0 : index
    %c0_9 = arith.constant 0 : index
    %14 = vector.load %arg4[%c0_8, %c0_9] : memref<32x1024xf32, #tpu.memory_space<vmem>>, vector<32x1024xf32>
    tpu.vector_store %arg4[%c0_8, %c0_9], %13 {strides = array<i32>} : memref<32x1024xf32, #tpu.memory_space<vmem>>, vector<32x1024xf32>,
    return
  }
  func.func @transform_0(%arg0: i32) -> (i32, i32) {
    %c0_i32 = arith.constant 0 : i32
    %c0_i32_0 = arith.constant 0 : i32
    %c0_i32_1 = arith.constant 0 : i32
    return %c0_i32, %c0_i32_0 : i32, i32
  }
  func.func @transform_1(%arg0: i32) -> (i32, i32) {
    %c0_i32 = arith.constant 0 : i32
    %c0_i32_0 = arith.constant 0 : i32
    return %c0_i32, %arg0 : i32, i32
  }
  func.func @transform_2(%arg0: i32) -> (i32, i32) {
    %c0_i32 = arith.constant 0 : i32
    %c0_i32_0 = arith.constant 0 : i32
    %c0_i32_1 = arith.constant 0 : i32
    return %c0_i32, %c0_i32_0 : i32, i32
  }
  func.func @transform_3(%arg0: i32) -> (i32, i32) {
    %c0_i32 = arith.constant 0 : i32
    %c0_i32_0 = arith.constant 0 : i32
    return %c0_i32, %arg0 : i32, i32
  }
}

module attributes {stable_mosaic.version = 11 : i64} {
  func.func @kernel(%arg0: i32, %arg1: memref<32x320xbf16, #tpu.memory_space<vmem>>, %arg2: memref<320x896xbf16, #tpu.memory_space<vmem>>, %arg3: memref<32x1xf32, #tpu.memory_space<vmem>>, %arg4: memref<32x896xf32, #tpu.memory_space<vmem>>) attributes {dimension_semantics = [#tpu.dimension_semantics<parallel>], iteration_bounds = array<i64: 1>, scalar_prefetch = 0 : i64, scratch_operands = 0 : i64, tpu.core_type = #tpu.core_type<tc>, window_params = [{pipeline_mode = #tpu.pipeline_mode<synchronous>, transform_indices = @transform_0, window_bounds = array<i64: 32, 320>}, {transform_indices = @transform_1, window_bounds = array<i64: 320, 896>}, {pipeline_mode = #tpu.pipeline_mode<synchronous>, transform_indices = @transform_2, window_bounds = array<i64: 32, 1>}, {transform_indices = @transform_3, window_bounds = array<i64: 32, 896>}]} {
    %c0 = arith.constant 0 : index
    %c0_0 = arith.constant 0 : index
    %0 = vector.load %arg1[%c0, %c0_0] : memref<32x320xbf16, #tpu.memory_space<vmem>>, vector<32x320xbf16>
    %c0_1 = arith.constant 0 : index
    %c0_2 = arith.constant 0 : index
    %1 = vector.load %arg2[%c0_1, %c0_2] : memref<320x896xbf16, #tpu.memory_space<vmem>>, vector<320x896xbf16>
    %cst = arith.constant dense<0.000000e+00> : vector<32x896xf32>
    %2 = tpu.matmul %0, %1, %cst {dimension_numbers = #tpu.dot_dimension_numbers<[1], [0], [0], [1], [0, 0, 1, 1], [], []>} : vector<32x320xbf16>, vector<320x896xbf16>, vector<32x896xf32> -> vector<32x896xf32>
    %c0_3 = arith.constant 0 : index
    %c0_4 = arith.constant 0 : index
    %3 = vector.load %arg3[%c0_3, %c0_4] : memref<32x1xf32, #tpu.memory_space<vmem>>, vector<32x1xf32>
    %4 = vector.broadcast %3 : vector<32x1xf32> to vector<32x896xf32>
    %5 = arith.addf %2, %4 : vector<32x896xf32>
    %cst_5 = arith.constant 0.000000e+00 : f32
    %6 = vector.broadcast %cst_5 : f32 to vector<32x896xf32>
    %7 = arith.cmpf ogt, %5, %6 : vector<32x896xf32>
    %cst_6 = arith.constant 0.000000e+00 : f32
    %8 = vector.broadcast %cst_6 : f32 to vector<32x896xf32>
    %9 = arith.minimumf %5, %8 : vector<32x896xf32>
    %10 = math.exp %9 : vector<32x896xf32>
    %cst_7 = arith.constant 1.000000e+00 : f32
    %11 = vector.broadcast %cst_7 : f32 to vector<32x896xf32>
    %12 = arith.subf %10, %11 : vector<32x896xf32>
    %13 = arith.select %7, %5, %12 : vector<32x896xi1>, vector<32x896xf32>
    %c0_8 = arith.constant 0 : index
    %c0_9 = arith.constant 0 : index
    %14 = vector.load %arg4[%c0_8, %c0_9] : memref<32x896xf32, #tpu.memory_space<vmem>>, vector<32x896xf32>
    tpu.vector_store %arg4[%c0_8, %c0_9], %13 {strides = array<i32>} : memref<32x896xf32, #tpu.memory_space<vmem>>, vector<32x896xf32>,
    return
  }
  func.func @transform_0(%arg0: i32) -> (i32, i32) {
    %c0_i32 = arith.constant 0 : i32
    %c0_i32_0 = arith.constant 0 : i32
    %c0_i32_1 = arith.constant 0 : i32
    return %c0_i32, %c0_i32_0 : i32, i32
  }
  func.func @transform_1(%arg0: i32) -> (i32, i32) {
    %c0_i32 = arith.constant 0 : i32
    %c0_i32_0 = arith.constant 0 : i32
    return %c0_i32, %arg0 : i32, i32
  }
  func.func @transform_2(%arg0: i32) -> (i32, i32) {
    %c0_i32 = arith.constant 0 : i32
    %c0_i32_0 = arith.constant 0 : i32
    %c0_i32_1 = arith.constant 0 : i32
    return %c0_i32, %c0_i32_0 : i32, i32
  }
  func.func @transform_3(%arg0: i32) -> (i32, i32) {
    %c0_i32 = arith.constant 0 : i32
    %c0_i32_0 = arith.constant 0 : i32
    return %c0_i32, %arg0 : i32, i32
  }
}

module attributes {stable_mosaic.version = 11 : i64} {
  func.func @kernel(%arg0: i32, %arg1: memref<32x288xbf16, #tpu.memory_space<vmem>>, %arg2: memref<288x128xbf16, #tpu.memory_space<vmem>>, %arg3: memref<32x1xf32, #tpu.memory_space<vmem>>, %arg4: memref<32x128xf32, #tpu.memory_space<vmem>>) attributes {dimension_semantics = [#tpu.dimension_semantics<parallel>], iteration_bounds = array<i64: 1>, scalar_prefetch = 0 : i64, scratch_operands = 0 : i64, tpu.core_type = #tpu.core_type<tc>, window_params = [{pipeline_mode = #tpu.pipeline_mode<synchronous>, transform_indices = @transform_0, window_bounds = array<i64: 32, 288>}, {transform_indices = @transform_1, window_bounds = array<i64: 288, 128>}, {pipeline_mode = #tpu.pipeline_mode<synchronous>, transform_indices = @transform_2, window_bounds = array<i64: 32, 1>}, {transform_indices = @transform_3, window_bounds = array<i64: 32, 128>}]} {
    %c0 = arith.constant 0 : index
    %c0_0 = arith.constant 0 : index
    %0 = vector.load %arg1[%c0, %c0_0] : memref<32x288xbf16, #tpu.memory_space<vmem>>, vector<32x288xbf16>
    %c0_1 = arith.constant 0 : index
    %c0_2 = arith.constant 0 : index
    %1 = vector.load %arg2[%c0_1, %c0_2] : memref<288x128xbf16, #tpu.memory_space<vmem>>, vector<288x128xbf16>
    %cst = arith.constant dense<0.000000e+00> : vector<32x128xf32>
    %2 = tpu.matmul %0, %1, %cst {dimension_numbers = #tpu.dot_dimension_numbers<[1], [0], [0], [1], [0, 0, 1, 1], [], []>} : vector<32x288xbf16>, vector<288x128xbf16>, vector<32x128xf32> -> vector<32x128xf32>
    %c0_3 = arith.constant 0 : index
    %c0_4 = arith.constant 0 : index
    %3 = vector.load %arg3[%c0_3, %c0_4] : memref<32x1xf32, #tpu.memory_space<vmem>>, vector<32x1xf32>
    %4 = vector.broadcast %3 : vector<32x1xf32> to vector<32x128xf32>
    %5 = arith.addf %2, %4 : vector<32x128xf32>
    %cst_5 = arith.constant 0.000000e+00 : f32
    %6 = vector.broadcast %cst_5 : f32 to vector<32x128xf32>
    %7 = arith.cmpf ogt, %5, %6 : vector<32x128xf32>
    %cst_6 = arith.constant 0.000000e+00 : f32
    %8 = vector.broadcast %cst_6 : f32 to vector<32x128xf32>
    %9 = arith.minimumf %5, %8 : vector<32x128xf32>
    %10 = math.exp %9 : vector<32x128xf32>
    %cst_7 = arith.constant 1.000000e+00 : f32
    %11 = vector.broadcast %cst_7 : f32 to vector<32x128xf32>
    %12 = arith.subf %10, %11 : vector<32x128xf32>
    %13 = arith.select %7, %5, %12 : vector<32x128xi1>, vector<32x128xf32>
    %c0_8 = arith.constant 0 : index
    %c0_9 = arith.constant 0 : index
    %14 = vector.load %arg4[%c0_8, %c0_9] : memref<32x128xf32, #tpu.memory_space<vmem>>, vector<32x128xf32>
    tpu.vector_store %arg4[%c0_8, %c0_9], %13 {strides = array<i32>} : memref<32x128xf32, #tpu.memory_space<vmem>>, vector<32x128xf32>,
    return
  }
  func.func @transform_0(%arg0: i32) -> (i32, i32) {
    %c0_i32 = arith.constant 0 : i32
    %c0_i32_0 = arith.constant 0 : i32
    %c0_i32_1 = arith.constant 0 : i32
    return %c0_i32, %c0_i32_0 : i32, i32
  }
  func.func @transform_1(%arg0: i32) -> (i32, i32) {
    %c0_i32 = arith.constant 0 : i32
    %c0_i32_0 = arith.constant 0 : i32
    return %c0_i32, %arg0 : i32, i32
  }
  func.func @transform_2(%arg0: i32) -> (i32, i32) {
    %c0_i32 = arith.constant 0 : i32
    %c0_i32_0 = arith.constant 0 : i32
    %c0_i32_1 = arith.constant 0 : i32
    return %c0_i32, %c0_i32_0 : i32, i32
  }
  func.func @transform_3(%arg0: i32) -> (i32, i32) {
    %c0_i32 = arith.constant 0 : i32
    %c0_i32_0 = arith.constant 0 : i32
    return %c0_i32, %arg0 : i32, i32
  }
}

module attributes {stable_mosaic.version = 11 : i64} {
  func.func @kernel(%arg0: i32, %arg1: memref<64x32xbf16, #tpu.memory_space<vmem>>, %arg2: memref<32x128xbf16, #tpu.memory_space<vmem>>, %arg3: memref<64x1xf32, #tpu.memory_space<vmem>>, %arg4: memref<64x128xf32, #tpu.memory_space<vmem>>) attributes {dimension_semantics = [#tpu.dimension_semantics<parallel>], iteration_bounds = array<i64: 1>, scalar_prefetch = 0 : i64, scratch_operands = 0 : i64, tpu.core_type = #tpu.core_type<tc>, window_params = [{pipeline_mode = #tpu.pipeline_mode<synchronous>, transform_indices = @transform_0, window_bounds = array<i64: 64, 32>}, {transform_indices = @transform_1, window_bounds = array<i64: 32, 128>}, {pipeline_mode = #tpu.pipeline_mode<synchronous>, transform_indices = @transform_2, window_bounds = array<i64: 64, 1>}, {transform_indices = @transform_3, window_bounds = array<i64: 64, 128>}]} {
    %c0 = arith.constant 0 : index
    %c0_0 = arith.constant 0 : index
    %0 = vector.load %arg1[%c0, %c0_0] : memref<64x32xbf16, #tpu.memory_space<vmem>>, vector<64x32xbf16>
    %c0_1 = arith.constant 0 : index
    %c0_2 = arith.constant 0 : index
    %1 = vector.load %arg2[%c0_1, %c0_2] : memref<32x128xbf16, #tpu.memory_space<vmem>>, vector<32x128xbf16>
    %cst = arith.constant dense<0.000000e+00> : vector<64x128xf32>
    %2 = tpu.matmul %0, %1, %cst {dimension_numbers = #tpu.dot_dimension_numbers<[1], [0], [0], [1], [0, 0, 1, 1], [], []>} : vector<64x32xbf16>, vector<32x128xbf16>, vector<64x128xf32> -> vector<64x128xf32>
    %c0_3 = arith.constant 0 : index
    %c0_4 = arith.constant 0 : index
    %3 = vector.load %arg3[%c0_3, %c0_4] : memref<64x1xf32, #tpu.memory_space<vmem>>, vector<64x1xf32>
    %4 = vector.broadcast %3 : vector<64x1xf32> to vector<64x128xf32>
    %5 = arith.addf %2, %4 : vector<64x128xf32>
    %c0_5 = arith.constant 0 : index
    %c0_6 = arith.constant 0 : index
    %6 = vector.load %arg4[%c0_5, %c0_6] : memref<64x128xf32, #tpu.memory_space<vmem>>, vector<64x128xf32>
    tpu.vector_store %arg4[%c0_5, %c0_6], %5 {strides = array<i32>} : memref<64x128xf32, #tpu.memory_space<vmem>>, vector<64x128xf32>,
    return
  }
  func.func @transform_0(%arg0: i32) -> (i32, i32) {
    %c0_i32 = arith.constant 0 : i32
    %c0_i32_0 = arith.constant 0 : i32
    %c0_i32_1 = arith.constant 0 : i32
    return %c0_i32, %c0_i32_0 : i32, i32
  }
  func.func @transform_1(%arg0: i32) -> (i32, i32) {
    %c0_i32 = arith.constant 0 : i32
    %c0_i32_0 = arith.constant 0 : i32
    return %c0_i32, %arg0 : i32, i32
  }
  func.func @transform_2(%arg0: i32) -> (i32, i32) {
    %c0_i32 = arith.constant 0 : i32
    %c0_i32_0 = arith.constant 0 : i32
    %c0_i32_1 = arith.constant 0 : i32
    return %c0_i32, %c0_i32_0 : i32, i32
  }
  func.func @transform_3(%arg0: i32) -> (i32, i32) {
    %c0_i32 = arith.constant 0 : i32
    %c0_i32_0 = arith.constant 0 : i32
    return %c0_i32, %arg0 : i32, i32
  }
}

module attributes {stable_mosaic.version = 11 : i64} {
  func.func @kernel(%arg0: i32, %arg1: memref<8x64xf32, #tpu.memory_space<vmem>>, %arg2: memref<8x1xi32, #tpu.memory_space<vmem>>, %arg3: memref<8x1xi32, #tpu.memory_space<vmem>>, %arg4: memref<8x1xf32, #tpu.memory_space<vmem>>, %arg5: memref<1x1xf32, #tpu.memory_space<vmem>>) attributes {dimension_semantics = [#tpu.dimension_semantics<parallel>], iteration_bounds = array<i64: 1>, scalar_prefetch = 0 : i64, scratch_operands = 0 : i64, tpu.core_type = #tpu.core_type<tc>, window_params = [{transform_indices = @transform_0, window_bounds = array<i64: 8, 64>}, {transform_indices = @transform_1, window_bounds = array<i64: 8, 1>}, {transform_indices = @transform_2, window_bounds = array<i64: 8, 1>}, {transform_indices = @transform_3, window_bounds = array<i64: 8, 1>}, {transform_indices = @transform_4, window_bounds = array<i64: 1, 1>}]} {
    %c0 = arith.constant 0 : index
    %c0_0 = arith.constant 0 : index
    %0 = vector.load %arg1[%c0, %c0_0] : memref<8x64xf32, #tpu.memory_space<vmem>>, vector<8x64xf32>
    %c0_1 = arith.constant 0 : index
    %c0_2 = arith.constant 0 : index
    %1 = vector.load %arg2[%c0_1, %c0_2] : memref<8x1xi32, #tpu.memory_space<vmem>>, vector<8x1xi32>
    %2 = tpu.iota {dimensions = array<i32: 1>} : vector<8x64xi32>
    %cst = arith.constant dense<0xFF800000> : vector<8xf32>
    %3 = vector.multi_reduction <maximumf>, %0, %cst [1] : vector<8x64xf32> to vector<8xf32>
    %4 = vector.shape_cast %3 : vector<8xf32> to vector<8x1xf32>
    %5 = vector.broadcast %4 : vector<8x1xf32> to vector<8x64xf32>
    %6 = arith.cmpf oeq, %0, %5 : vector<8x64xf32>
    %c64_i32 = arith.constant 64 : i32
    %7 = vector.broadcast %c64_i32 : i32 to vector<8x64xi32>
    %8 = arith.select %6, %2, %7 : vector<8x64xi1>, vector<8x64xi32>
    %cst_3 = arith.constant dense<2147483647> : vector<8xi32>
    %9 = vector.multi_reduction <minsi>, %8, %cst_3 [1] : vector<8x64xi32> to vector<8xi32>
    %10 = vector.shape_cast %9 : vector<8xi32> to vector<8x1xi32>
    %c0_4 = arith.constant 0 : index
    %c0_5 = arith.constant 0 : index
    %11 = vector.load %arg3[%c0_4, %c0_5] : memref<8x1xi32, #tpu.memory_space<vmem>>, vector<8x1xi32>
    tpu.vector_store %arg3[%c0_4, %c0_5], %10 {strides = array<i32>} : memref<8x1xi32, #tpu.memory_space<vmem>>, vector<8x1xi32>,
    %12 = vector.broadcast %4 : vector<8x1xf32> to vector<8x64xf32>
    %13 = arith.subf %0, %12 : vector<8x64xf32>
    %14 = math.exp %13 : vector<8x64xf32>
    %cst_6 = arith.constant dense<0.000000e+00> : vector<8xf32>
    %15 = vector.multi_reduction <add>, %14, %cst_6 [1] : vector<8x64xf32> to vector<8xf32>
    %16 = vector.shape_cast %15 : vector<8xf32> to vector<8x1xf32>
    %17 = tpu.reciprocal %16 {approx = true} : vector<8x1xf32> -> vector<8x1xf32>
    %18 = vector.broadcast %17 : vector<8x1xf32> to vector<8x64xf32>
    %19 = arith.mulf %14, %18 : vector<8x64xf32>
    %20 = vector.broadcast %1 : vector<8x1xi32> to vector<8x64xi32>
    %21 = arith.cmpi eq, %2, %20 : vector<8x64xi32>
    %22 = arith.extui %21 : vector<8x64xi1> to vector<8x64xi32>
    %23 = arith.sitofp %22 : vector<8x64xi32> to vector<8x64xf32>
    %24 = arith.mulf %19, %23 : vector<8x64xf32>
    %cst_7 = arith.constant dense<0.000000e+00> : vector<8xf32>
    %25 = vector.multi_reduction <add>, %24, %cst_7 [1] : vector<8x64xf32> to vector<8xf32>
    %26 = vector.shape_cast %25 : vector<8xf32> to vector<8x1xf32>
    %c0_8 = arith.constant 0 : index
    %c0_9 = arith.constant 0 : index
    %27 = vector.load %arg4[%c0_8, %c0_9] : memref<8x1xf32, #tpu.memory_space<vmem>>, vector<8x1xf32>
    tpu.vector_store %arg4[%c0_8, %c0_9], %26 {strides = array<i32>} : memref<8x1xf32, #tpu.memory_space<vmem>>, vector<8x1xf32>,
    %28 = vector.broadcast %4 : vector<8x1xf32> to vector<8x64xf32>
    %29 = arith.subf %0, %28 : vector<8x64xf32>
    %30 = math.log %16 : vector<8x1xf32>
    %31 = vector.broadcast %30 : vector<8x1xf32> to vector<8x64xf32>
    %32 = arith.subf %29, %31 : vector<8x64xf32>
    %33 = arith.mulf %32, %23 : vector<8x64xf32>
    %cst_10 = arith.constant dense<0.000000e+00> : vector<8xf32>
    %34 = vector.multi_reduction <add>, %33, %cst_10 [1] : vector<8x64xf32> to vector<8xf32>
    %35 = vector.shape_cast %34 : vector<8xf32> to vector<8x1xf32>
    %cst_11 = arith.constant 0.000000e+00 : f32
    %36 = vector.broadcast %cst_11 : f32 to vector<8x1xf32>
    %37 = arith.subf %36, %35 : vector<8x1xf32>
    %c8_i32 = arith.constant 8 : i32
    %38 = arith.muli %arg0, %c8_i32 : i32
    %39 = tpu.iota {dimensions = array<i32: 0>} : vector<8x1xi32>
    %40 = vector.broadcast %38 : i32 to vector<8x1xi32>
    %41 = arith.addi %40, %39 : vector<8x1xi32>
    %c8_i32_12 = arith.constant 8 : i32
    %42 = vector.broadcast %c8_i32_12 : i32 to vector<8x1xi32>
    %43 = arith.cmpi slt, %41, %42 : vector<8x1xi32>
    %cst_13 = arith.constant 0.000000e+00 : f32
    %44 = vector.broadcast %cst_13 : f32 to vector<8x1xf32>
    %45 = arith.select %43, %37, %44 : vector<8x1xi1>, vector<8x1xf32>
    %cst_14 = arith.constant dense<0.000000e+00> : vector<1xf32>
    %46 = vector.multi_reduction <add>, %45, %cst_14 [0] : vector<8x1xf32> to vector<1xf32>
    %47 = vector.shape_cast %46 : vector<1xf32> to vector<1x1xf32>
    %c0_15 = arith.constant 0 : index
    %c0_16 = arith.constant 0 : index
    %48 = vector.load %arg5[%c0_15, %c0_16] : memref<1x1xf32, #tpu.memory_space<vmem>>, vector<1x1xf32>
    tpu.vector_store %arg5[%c0_15, %c0_16], %47 {strides = array<i32>} : memref<1x1xf32, #tpu.memory_space<vmem>>, vector<1x1xf32>,
    return
  }
  func.func @transform_0(%arg0: i32) -> (i32, i32) {
    %c0_i32 = arith.constant 0 : i32
    %c0_i32_0 = arith.constant 0 : i32
    return %arg0, %c0_i32 : i32, i32
  }
  func.func @transform_1(%arg0: i32) -> (i32, i32) {
    %c0_i32 = arith.constant 0 : i32
    %c0_i32_0 = arith.constant 0 : i32
    return %arg0, %c0_i32 : i32, i32
  }
  func.func @transform_2(%arg0: i32) -> (i32, i32) {
    %c0_i32 = arith.constant 0 : i32
    %c0_i32_0 = arith.constant 0 : i32
    return %arg0, %c0_i32 : i32, i32
  }
  func.func @transform_3(%arg0: i32) -> (i32, i32) {
    %c0_i32 = arith.constant 0 : i32
    %c0_i32_0 = arith.constant 0 : i32
    return %arg0, %c0_i32 : i32, i32
  }
  func.func @transform_4(%arg0: i32) -> (i32, i32) {
    %c0_i32 = arith.constant 0 : i32
    %c0_i32_0 = arith.constant 0 : i32
    return %arg0, %c0_i32 : i32, i32
  }
}

</mosaic_0001>

<llo_original>
// kernel: _forward_core.6
$region0: #{_forward_core.6}
  #allocation0 [shape = 'u32[]', space=smem, size = 0x4, offset = 0x4, fixed_abs, tag = 'smem constant byte address 0x4 - core index']
  #allocation1 [shape = 'u32[144,128]{1,0:T(1,128)}', space=vmem, size = 0x12000, scoped, tag = 'internal scratch']
  %s0 = inlined_call_operand.vmem [shape: bf16[32,9], index: 0, kind: input, shape index: {}]
  %s1 = inlined_call_operand.vmem [shape: bf16[9,3072], index: 1, kind: input, shape index: {}]
  %s2 = inlined_call_operand.vmem [shape: f32[32,1], index: 2, kind: input, shape index: {}]
  %s3 = inlined_call_operand.vmem [shape: f32[32,3072], index: 3, kind: output, shape index: {}]
  %s4 = sld [smem:[#allocation0]]
  $region87: #{_forward_core.6} parent=0
    _
  %s6 = ssub.s32 1, %s4
  %s7 = scalar_select 0, %s6, %s4
  $region1: #{_forward_core.6} parent=0
    #allocation2 [shape = 'u8[65536]{0}', space=vmem, size = 0x10000, scoped, tag = 'input window, operand 1']
    #allocation3 [shape = 'u8[262144]{0}', space=vmem, size = 0x40000, scoped, tag = 'output window, operand 0']
    loop: start=0, step=1, limit=5
    $region2: #{_forward_core.6} parent=1 // loop_pre_header
      _
    $region3: #{_forward_core.6} parent=1 // loop_header
      %s9 = sphi 0, %s13
      %p10 = scmp.ge.s32.totalorder %s9, 5
      %s17 = sphi 0, %s17
      %s19 = sphi 0, %s17
      %s20 = sphi 0, %s19
      %s34 = sphi 0, %s20
      %s40 = sphi 0, %s42
      %s43 = sphi 0, %s40
      %s44 = sphi 0, %s43
      %s60 = sphi 0, %s44
      %s64 = sphi 0, %s64
      %s66 = sphi 0, %s64
      %s67 = sphi 0, %s66
      %s81 = sphi 0, %s67
      %s87 = sphi 0, %s89
      %s90 = sphi 0, %s87
      %s91 = sphi 0, %s90
      %s107 = sphi 0, %s91
    $region4: #{_forward_core.6} parent=1 // loop_header_branch
      %12 = sbr.rel (%p10) target = $region8
    $region5: #{_forward_core.6} parent=1 // loop_body
      %s14 = ssub.s32 %s9, 1
      %s15 = ssub.s32 %s9, 2
      %s16 = sadd.s32 %s9, 1
      %s18 = sadd.s32 %s17, 1
      %p21 = scmp.eq.s32.totalorder %s9, 2
      %p22 = scmp.ne.s32.totalorder %s17, %s19
      %p23 = scmp.eq.s32.totalorder %s9, 0
      %p24 = por %p22, %p23
      %p25 = scmp.ne.s32.totalorder %s17, %s19
      %p26 = scmp.eq.s32.totalorder %s14, 2
      %p27 = por %p25, %p26
      %p28 = scmp.ne.s32.totalorder %s19, %s20
      %p29 = scmp.eq.s32.totalorder %s14, 0
      %p30 = por %p28, %p29
      %p31 = scmp.ne.s32.totalorder %s19, %s20
      %p32 = scmp.eq.s32.totalorder %s15, 2
      %p33 = por %p31, %p32
      %p35 = scmp.ne.s32.totalorder %s20, %s34
      %p36 = scmp.eq.s32.totalorder %s15, 0
      %p37 = por %p35, %p36
      %s38 = ssub.s32 %s9, %s16
      %p39 = scmp.eq.s32.totalorder %s38, 0
      %s41 = sadd.s32 %s40, 1
      %s42 = scalar_select %p39, %s40, %s41
      %p45 = pneg %p39
      %p46 = scmp.eq.s32.totalorder %s9, 2
      %p47 = por %p45, %p46
      %p48 = scmp.ne.s32.totalorder %s40, %s43
      %p49 = scmp.eq.s32.totalorder %s9, 0
      %p50 = por %p48, %p49
      %p51 = scmp.ne.s32.totalorder %s40, %s43
      %p52 = scmp.eq.s32.totalorder %s14, 2
      %p53 = por %p51, %p52
      %p54 = scmp.ne.s32.totalorder %s43, %s44
      %p55 = scmp.eq.s32.totalorder %s14, 0
      %p56 = por %p54, %p55
      %p57 = scmp.ne.s32.totalorder %s43, %s44
      %p58 = scmp.eq.s32.totalorder %s15, 2
      %p59 = por %p57, %p58
      %p61 = scmp.ne.s32.totalorder %s44, %s60
      %p62 = scmp.eq.s32.totalorder %s15, 0
      %p63 = por %p61, %p62
      %s65 = sadd.s32 %s64, 1
      %p68 = scmp.eq.s32.totalorder %s9, 2
      %p69 = scmp.ne.s32.totalorder %s64, %s66
      %p70 = scmp.eq.s32.totalorder %s9, 0
      %p71 = por %p69, %p70
      %p72 = scmp.ne.s32.totalorder %s64, %s66
      %p73 = scmp.eq.s32.totalorder %s14, 2
      %p74 = por %p72, %p73
      %p75 = scmp.ne.s32.totalorder %s66, %s67
      %p76 = scmp.eq.s32.totalorder %s14, 0
      %p77 = por %p75, %p76
      %p78 = scmp.ne.s32.totalorder %s66, %s67
      %p79 = scmp.eq.s32.totalorder %s15, 2
      %p80 = por %p78, %p79
      %p82 = scmp.ne.s32.totalorder %s67, %s81
      %p83 = scmp.eq.s32.totalorder %s15, 0
      %p84 = por %p82, %p83
      %s85 = ssub.s32 %s9, %s16
      %p86 = scmp.eq.s32.totalorder %s85, 0
      %s88 = sadd.s32 %s87, 1
      %s89 = scalar_select %p86, %s87, %s88
      %p92 = pneg %p86
      %p93 = scmp.eq.s32.totalorder %s9, 2
      %p94 = por %p92, %p93
      %p95 = scmp.ne.s32.totalorder %s87, %s90
      %p96 = scmp.eq.s32.totalorder %s9, 0
      %p97 = por %p95, %p96
      %p98 = scmp.ne.s32.totalorder %s87, %s90
      %p99 = scmp.eq.s32.totalorder %s14, 2
      %p100 = por %p98, %p99
      %p101 = scmp.ne.s32.totalorder %s90, %s91
      %p102 = scmp.eq.s32.totalorder %s14, 0
      %p103 = por %p101, %p102
      %p104 = scmp.ne.s32.totalorder %s90, %s91
      %p105 = scmp.eq.s32.totalorder %s15, 2
      %p106 = por %p104, %p105
      %p108 = scmp.ne.s32.totalorder %s91, %s107
      %p109 = scmp.eq.s32.totalorder %s15, 0
      %p110 = por %p108, %p109
      %p111 = scmp.le.s32.totalorder 1, %s9
      %p112 = scmp.lt.s32.totalorder %s9, 4
      %p113 = pnand %p111, %p112
      %p114 = pneg %p113
      // Predicated region
      $region9: #{_forward_core.6} parent=5 // pred_check
        _
      $region10: #{_forward_core.6} parent=5 // pred_check_branch
        %116 = sbr.rel (%p113) target = $region12
      $region11: #{_forward_core.6} parent=5 // pred_region
        %s117 = ssub.s32 %s9, 1
        // Predicated region
        $region13: #{_forward_core.6} parent=11 // pred_check
          %p118 = pneg %p30
        $region14: #{_forward_core.6} parent=11 // pred_check_branch
          %120 = sbr.rel (%p118) target = $region16
        $region15: #{_forward_core.6} parent=11 // pred_region
          _
        $region16: #{_forward_core.6} parent=11 // pred_fallthru
          _
        // Predicated region
        $region17: #{_forward_core.6} parent=11 // pred_check
          %p121 = pneg %p77
        $region18: #{_forward_core.6} parent=11 // pred_check_branch
          %123 = sbr.rel (%p121) target = $region20
        $region19: #{_forward_core.6} parent=11 // pred_region
          _
        $region20: #{_forward_core.6} parent=11 // pred_fallthru
          _
      $region12: #{_forward_core.6} parent=5 // pred_fallthru
        _
      %p124 = scmp.lt.s32.totalorder %s9, 3
      // Predicated region
      $region21: #{_forward_core.6} parent=5 // pred_check
        %p125 = pneg %p124
      $region22: #{_forward_core.6} parent=5 // pred_check_branch
        %127 = sbr.rel (%p125) target = $region24
      $region23: #{_forward_core.6} parent=5 // pred_region
        // Predicated region
        $region25: #{_forward_core.6} parent=23 // pred_check
          %p128 = pneg %p50
        $region26: #{_forward_core.6} parent=23 // pred_check_branch
          %130 = sbr.rel (%p128) target = $region28
        $region27: #{_forward_core.6} parent=23 // pred_region
          %s131 = sand.u32 %s40, 1
          %s132 = sand.u32 %s40, 1
          %s133 = smul.addr %s132, 64
          %s134 = scalar_lea.vmem [#allocation2], %s133
          %s135 = smul.u32 8, %s9
          %s136 = smul.addr %s135, 4
          %s137 = scalar_lea.vmem %s1, %s136
          // Predicated region
          $region29: #{_forward_core.6} parent=27 // pred_check
            _
          $region30: #{_forward_core.6} parent=27 // pred_check_branch
            %139 = sbr.rel (0) target = $region32
          $region31: #{_forward_core.6} parent=27 // pred_region
            // Predicated region
            $region33: #{_forward_core.6} parent=31 // pred_check
              _
            $region34: #{_forward_core.6} parent=31 // pred_check_branch
              %141 = sbr.rel (0) target = $region36
            $region35: #{_forward_core.6} parent=31 // pred_region
              loop: start=0, step=1, limit=1
              $region37: #{_forward_core.6} parent=35 // loop_pre_header
                _
              $region38: #{_forward_core.6} parent=35 // loop_header
                %s143 = sphi 0, %s147
                %p144 = scmp.ge.s32.totalorder %s143, 1
                %s148 = sphi %s137, %s137
                %s149 = sphi %s134, %s134
              $region39: #{_forward_core.6} parent=35 // loop_header_branch
                %146 = sbr.rel (%p144) target = $region43
              $region40: #{_forward_core.6} parent=35 // loop_body
                %v150 = vld [vmem:[%s148] sm:$0xff]
                %151 = vst [vmem:[%s149] sm:$0xff] %v150
                %v152 = vld [vmem:[%s148 + $0x8] sm:$0xff]
                %153 = vst [vmem:[%s149 + $0x8] sm:$0xff] %v152
                %v154 = vld [vmem:[%s148 + $0x10] sm:$0xff]
                %155 = vst [vmem:[%s149 + $0x10] sm:$0xff] %v154
                %v156 = vld [vmem:[%s148 + $0x18] sm:$0xff]
                %157 = vst [vmem:[%s149 + $0x18] sm:$0xff] %v156
                %v158 = vld [vmem:[%s148 + $0x60] sm:$0xff]
                %159 = vst [vmem:[%s149 + $0x20] sm:$0xff] %v158
                %v160 = vld [vmem:[%s148 + $0x68] sm:$0xff]
                %161 = vst [vmem:[%s149 + $0x28] sm:$0xff] %v160
                %v162 = vld [vmem:[%s148 + $0x70] sm:$0xff]
                %163 = vst [vmem:[%s149 + $0x30] sm:$0xff] %v162
                %v164 = vld [vmem:[%s148 + $0x78] sm:$0xff]
                %165 = vst [vmem:[%s149 + $0x38] sm:$0xff] %v164
              $region41: #{_forward_core.6} parent=35 // loop_footer
                %s147 = sadd.s32 1, %s143
              $region42: #{_forward_core.6} parent=35 // loop_footer_branch
                %142 = sbr.rel target = $region38
              $region43: #{_forward_core.6} parent=35 // loop_exit
                _
            $region36: #{_forward_core.6} parent=31 // pred_fallthru
              _
            // Predicated region
            $region44: #{_forward_core.6} parent=31 // pred_check
              _
            $region45: #{_forward_core.6} parent=31 // pred_check_branch
              %167 = sbr.rel target = $region47
            $region46: #{_forward_core.6} parent=31 // pred_region
              _
            $region47: #{_forward_core.6} parent=31 // pred_fallthru
              _
          $region32: #{_forward_core.6} parent=27 // pred_fallthru
            _
          %168 = vnop
        $region28: #{_forward_core.6} parent=23 // pred_fallthru
          _
      $region24: #{_forward_core.6} parent=5 // pred_fallthru
        _
      %p169 = scmp.le.s32.totalorder 1, %s9
      %p170 = scmp.lt.s32.totalorder %s9, 4
      %p171 = pnand %p169, %p170
      %p172 = pneg %p171
      // Predicated region
      $region48: #{_forward_core.6} parent=5 // pred_check
        _
      $region49: #{_forward_core.6} parent=5 // pred_check_branch
        %174 = sbr.rel (%p171) target = $region51
      $region50: #{_forward_core.6} parent=5 // pred_region
        %s175 = ssub.s32 %s9, 1
        %s176 = sand.u32 %s43, 1
        %s177 = sand.u32 %s43, 1
        %s178 = smul.addr %s177, 64
        %s179 = scalar_lea.vmem [#allocation2], %s178
        // Predicated region
        $region52: #{_forward_core.6} parent=50 // pred_check
          %p180 = pneg %p56
        $region53: #{_forward_core.6} parent=50 // pred_check_branch
          %182 = sbr.rel (%p180) target = $region55
        $region54: #{_forward_core.6} parent=50 // pred_region
          _
        $region55: #{_forward_core.6} parent=50 // pred_fallthru
          _
        %p183 = pneg %p30
        %p184 = pneg %p27
        %s185 = sand.u32 %s43, 1
        %s186 = sand.u32 %s43, 1
        %s187 = smul.addr %s186, 64
        %s188 = scalar_lea.vmem [#allocation2], %s187
        %p189 = pneg %p56
        %p190 = pneg %p53
        %p191 = pneg %p77
        %p192 = pneg %p74
        %p193 = pneg %p103
        %p194 = pneg %p100
        %s195 = sand.u32 %s90, 1
        %s196 = sand.u32 %s90, 1
        %s197 = smul.addr %s196, 256
        %s198 = scalar_lea.vmem [#allocation3], %s197
        %s199 = smul.u32 8, %s14
        %s200 = smul.u32 8, %s14
        %v202 = vld [vmem:[%s0] sm:$0xf]
        %v203 = vld [vmem:[%s0 + $0x4] sm:$0xf]
        %v204 = vld [vmem:[%s0 + $0x8] sm:$0xf]
        %v205 = vld [vmem:[%s0 + $0xc] sm:$0xf]
        %v206 = vld [vmem:[%s179] sm:$0xff]
        %v207 = vld [vmem:[%s179 + $0x8] sm:$0xff]
        %v208 = vld [vmem:[%s179 + $0x10] sm:$0xff]
        %v209 = vld [vmem:[%s179 + $0x18] sm:$0xff]
        %v210 = vld [vmem:[%s179 + $0x20] sm:$0x11]
        %v211 = vld [vmem:[%s179 + $0x28] sm:$0x11]
        %v212 = vld [vmem:[%s179 + $0x30] sm:$0x11]
        %v213 = vld [vmem:[%s179 + $0x38] sm:$0x11]
        %v214 = vld [vmem:[%s2] sm:$0xff]
        %v215 = vld [vmem:[%s2 + $0x8] sm:$0xff]
        %v216 = vld [vmem:[%s2 + $0x10] sm:$0xff]
        %v217 = vld [vmem:[%s2 + $0x18] sm:$0xff]
        %219 = vset.pattern.permute.xlu0 0
        %220 = vperm.xlu0 %219, %v214
        %v221 = vpop.permute.xlu0 %220
        %224 = vset.pattern.permute.xlu0 0
        %225 = vperm.xlu0 %224, %v215
        %v226 = vpop.permute.xlu0 %225
        %229 = vset.pattern.permute.xlu0 0
        %230 = vperm.xlu0 %229, %v216
        %v231 = vpop.permute.xlu0 %230
        %234 = vset.pattern.permute.xlu0 0
        %235 = vperm.xlu0 %234, %v217
        %v236 = vpop.permute.xlu0 %235
        %v242 = vunpack.c.l.b16 %v202
        %v243 = vunpack.c.l.b16 %v203
        %v244 = vunpack.c.l.b16 %v204
        %v245 = vunpack.c.l.b16 %v205
        %v246 = vpack.c.b16 %v243, %v242
        %v247 = vpack.c.b16 %v245, %v244
        %v256 = vunpack.c.l.b16 %v206
        %v257 = vunpack.c.h.b16 %v206
        %v258 = vunpack.c.l.b16 %v207
        %v259 = vunpack.c.h.b16 %v207
        %v260 = vunpack.c.l.b16 %v208
        %v261 = vunpack.c.h.b16 %v208
        %v262 = vunpack.c.l.b16 %v209
        %v263 = vunpack.c.h.b16 %v209
        %v264 = vunpack.c.l.b16 %v210
        %v265 = vunpack.c.h.b16 %v210
        %v266 = vunpack.c.l.b16 %v211
        %v267 = vunpack.c.h.b16 %v211
        %v268 = vunpack.c.l.b16 %v212
        %v269 = vunpack.c.h.b16 %v212
        %v270 = vunpack.c.l.b16 %v213
        %v271 = vunpack.c.h.b16 %v213
        %v272 = vpack.c.b16 %v264, %v256
        %v273 = vpack.c.b16 %v265, %v257
        %v274 = vpack.c.b16 %v266, %v258
        %v275 = vpack.c.b16 %v267, %v259
        %v276 = vpack.c.b16 %v268, %v260
        %v277 = vpack.c.b16 %v269, %v261
        %v278 = vpack.c.b16 %v270, %v262
        %v279 = vpack.c.b16 %v271, %v263
        %vm280 = vcmask 72704
        %v282 = vsel %vm280, %v246, 0
        %v285 = vsel %vm280, %v247, 0
        %vm287 = vcmask 1043456
        %vm288 = vcmask 1044480
        %v289 = vsel %vm287, 4294967295, 65535
        %v290 = vsel %vm288, %v289, 0
        %v292 = vand.u32 %v272, %v290
        %v295 = vand.u32 %v273, %v290
        %v298 = vand.u32 %v274, %v290
        %v301 = vand.u32 %v275, %v290
        %v304 = vand.u32 %v276, %v290
        %v307 = vand.u32 %v277, %v290
        %v310 = vand.u32 %v278, %v290
        %v313 = vand.u32 %v279, %v290
        %315 = vmatprep.subr.bf16.mxu0 0
        %316 = vmatpush1.bf16.msra.mxu0 0
        %317 = vmatprep.subr.bf16.mxu0 0
        %318 = vmatpush1.bf16.msra.mxu0 0
        %319 = vmatprep.subr.bf16.mxu0 0
        %320 = vmatpush1.bf16.msra.mxu0 0
        %321 = vmatprep.subr.bf16.mxu0 0
        %322 = vmatpush1.bf16.msra.mxu0 0
        %323 = vmatprep.subr.bf16.mxu0 0
        %324 = vmatpush1.bf16.msra.mxu0 0
        %325 = vmatprep.subr.bf16.mxu0 0
        %326 = vmatpush1.bf16.msra.mxu0 0
        %327 = vmatprep.subr.bf16.mxu0 0
        %328 = vmatpush1.bf16.msra.mxu0 0
        %329 = vmatprep.subr.bf16.mxu0 %v295
        %330 = vmatpush1.bf16.msra.mxu0 %v292
        %331 = vmatprep.subr.bf16.mxu0 0
        %332 = vmatpush2.bf16.msra.mxu0 0
        %333 = vmatprep.subr.bf16.mxu0 0
        %334 = vmatpush2.bf16.msra.mxu0 0
        %335 = vmatprep.subr.bf16.mxu0 0
        %336 = vmatpush2.bf16.msra.mxu0 0
        %337 = vmatprep.subr.bf16.mxu0 0
        %338 = vmatpush2.bf16.msra.mxu0 0
        %339 = vmatprep.subr.bf16.mxu0 0
        %340 = vmatpush2.bf16.msra.mxu0 0
        %341 = vmatprep.subr.bf16.mxu0 0
        %342 = vmatpush2.bf16.msra.mxu0 0
        %343 = vmatprep.subr.bf16.mxu0 0
        %344 = vmatpush2.bf16.msra.mxu0 0
        %345 = vmatprep.subr.bf16.mxu0 0
        %346 = vmatpush2.bf16.msra.mxu0 0
        %347 = vmatprep.mubr.bf16.mxu0 0
        %348 = vmatmul.mubr.bf16.gmra.mxu0 %v282
        %v349 = vpop.f32.mrf.mxu0
        %v350 = vadd.f32 %v221, %v349
        %v351 = vpop.f32.mrf.mxu0
        %v352 = vadd.f32 %v221, %v351
        %v353 = vpop.f32.mrf.mxu0
        %v354 = vadd.f32 %v226, %v353
        %v355 = vpop.f32.mrf.mxu0
        %v356 = vadd.f32 %v226, %v355
        %357 = vmatprep.mubr.bf16.mxu0 0
        %358 = vmatmul.mubr.bf16.gmra.mxu0 %v285
        %v359 = vpop.f32.mrf.mxu0
        %v360 = vadd.f32 %v231, %v359
        %v361 = vpop.f32.mrf.mxu0
        %v362 = vadd.f32 %v231, %v361
        %v363 = vpop.f32.mrf.mxu0
        %v364 = vadd.f32 %v236, %v363
        %v365 = vpop.f32.mrf.mxu0
        %v366 = vadd.f32 %v236, %v365
        %367 = vdwg.mxu0
        %368 = vmatprep.subr.bf16.mxu0 0
        %369 = vmatpush1.bf16.msra.mxu0 0
        %370 = vmatprep.subr.bf16.mxu0 0
        %371 = vmatpush1.bf16.msra.mxu0 0
        %372 = vmatprep.subr.bf16.mxu0 0
        %373 = vmatpush1.bf16.msra.mxu0 0
        %374 = vmatprep.subr.bf16.mxu0 0
        %375 = vmatpush1.bf16.msra.mxu0 0
        %376 = vmatprep.subr.bf16.mxu0 0
        %377 = vmatpush1.bf16.msra.mxu0 0
        %378 = vmatprep.subr.bf16.mxu0 0
        %379 = vmatpush1.bf16.msra.mxu0 0
        %380 = vmatprep.subr.bf16.mxu0 0
        %381 = vmatpush1.bf16.msra.mxu0 0
        %382 = vmatprep.subr.bf16.mxu0 %v301
        %383 = vmatpush1.bf16.msra.mxu0 %v298
        %384 = vmatprep.subr.bf16.mxu0 0
        %385 = vmatpush2.bf16.msra.mxu0 0
        %386 = vmatprep.subr.bf16.mxu0 0
        %387 = vmatpush2.bf16.msra.mxu0 0
        %388 = vmatprep.subr.bf16.mxu0 0
        %389 = vmatpush2.bf16.msra.mxu0 0
        %390 = vmatprep.subr.bf16.mxu0 0
        %391 = vmatpush2.bf16.msra.mxu0 0
        %392 = vmatprep.subr.bf16.mxu0 0
        %393 = vmatpush2.bf16.msra.mxu0 0
        %394 = vmatprep.subr.bf16.mxu0 0
        %395 = vmatpush2.bf16.msra.mxu0 0
        %396 = vmatprep.subr.bf16.mxu0 0
        %397 = vmatpush2.bf16.msra.mxu0 0
        %398 = vmatprep.subr.bf16.mxu0 0
        %399 = vmatpush2.bf16.msra.mxu0 0
        %400 = vmatprep.mubr.bf16.mxu0 0
        %401 = vmatmul.mubr.bf16.gmra.mxu0 %v282
        %v402 = vpop.f32.mrf.mxu0
        %v403 = vadd.f32 %v221, %v402
        %v404 = vpop.f32.mrf.mxu0
        %v405 = vadd.f32 %v221, %v404
        %v406 = vpop.f32.mrf.mxu0
        %v407 = vadd.f32 %v226, %v406
        %v408 = vpop.f32.mrf.mxu0
        %v409 = vadd.f32 %v226, %v408
        %410 = vmatprep.mubr.bf16.mxu0 0
        %411 = vmatmul.mubr.bf16.gmra.mxu0 %v285
        %v412 = vpop.f32.mrf.mxu0
        %v413 = vadd.f32 %v231, %v412
        %v414 = vpop.f32.mrf.mxu0
        %v415 = vadd.f32 %v231, %v414
        %v416 = vpop.f32.mrf.mxu0
        %v417 = vadd.f32 %v236, %v416
        %v418 = vpop.f32.mrf.mxu0
        %v419 = vadd.f32 %v236, %v418
        %420 = vdwg.mxu0
        %421 = vmatprep.subr.bf16.mxu0 0
        %422 = vmatpush1.bf16.msra.mxu0 0
        %423 = vmatprep.subr.bf16.mxu0 0
        %424 = vmatpush1.bf16.msra.mxu0 0
        %425 = vmatprep.subr.bf16.mxu0 0
        %426 = vmatpush1.bf16.msra.mxu0 0
        %427 = vmatprep.subr.bf16.mxu0 0
        %428 = vmatpush1.bf16.msra.mxu0 0
        %429 = vmatprep.subr.bf16.mxu0 0
        %430 = vmatpush1.bf16.msra.mxu0 0
        %431 = vmatprep.subr.bf16.mxu0 0
        %432 = vmatpush1.bf16.msra.mxu0 0
        %433 = vmatprep.subr.bf16.mxu0 0
        %434 = vmatpush1.bf16.msra.mxu0 0
        %435 = vmatprep.subr.bf16.mxu0 %v307
        %436 = vmatpush1.bf16.msra.mxu0 %v304
        %437 = vmatprep.subr.bf16.mxu0 0
        %438 = vmatpush2.bf16.msra.mxu0 0
        %439 = vmatprep.subr.bf16.mxu0 0
        %440 = vmatpush2.bf16.msra.mxu0 0
        %441 = vmatprep.subr.bf16.mxu0 0
        %442 = vmatpush2.bf16.msra.mxu0 0
        %443 = vmatprep.subr.bf16.mxu0 0
        %444 = vmatpush2.bf16.msra.mxu0 0
        %445 = vmatprep.subr.bf16.mxu0 0
        %446 = vmatpush2.bf16.msra.mxu0 0
        %447 = vmatprep.subr.bf16.mxu0 0
        %448 = vmatpush2.bf16.msra.mxu0 0
        %449 = vmatprep.subr.bf16.mxu0 0
        %450 = vmatpush2.bf16.msra.mxu0 0
        %451 = vmatprep.subr.bf16.mxu0 0
        %452 = vmatpush2.bf16.msra.mxu0 0
        %453 = vmatprep.mubr.bf16.mxu0 0
        %454 = vmatmul.mubr.bf16.gmra.mxu0 %v282
        %v455 = vpop.f32.mrf.mxu0
        %v456 = vadd.f32 %v221, %v455
        %v457 = vpop.f32.mrf.mxu0
        %v458 = vadd.f32 %v221, %v457
        %v459 = vpop.f32.mrf.mxu0
        %v460 = vadd.f32 %v226, %v459
        %v461 = vpop.f32.mrf.mxu0
        %v462 = vadd.f32 %v226, %v461
        %463 = vmatprep.mubr.bf16.mxu0 0
        %464 = vmatmul.mubr.bf16.gmra.mxu0 %v285
        %v465 = vpop.f32.mrf.mxu0
        %v466 = vadd.f32 %v231, %v465
        %v467 = vpop.f32.mrf.mxu0
        %v468 = vadd.f32 %v231, %v467
        %v469 = vpop.f32.mrf.mxu0
        %v470 = vadd.f32 %v236, %v469
        %v471 = vpop.f32.mrf.mxu0
        %v472 = vadd.f32 %v236, %v471
        %473 = vdwg.mxu0
        %474 = vmatprep.subr.bf16.mxu0 0
        %475 = vmatpush1.bf16.msra.mxu0 0
        %476 = vmatprep.subr.bf16.mxu0 0
        %477 = vmatpush1.bf16.msra.mxu0 0
        %478 = vmatprep.subr.bf16.mxu0 0
        %479 = vmatpush1.bf16.msra.mxu0 0
        %480 = vmatprep.subr.bf16.mxu0 0
        %481 = vmatpush1.bf16.msra.mxu0 0
        %482 = vmatprep.subr.bf16.mxu0 0
        %483 = vmatpush1.bf16.msra.mxu0 0
        %484 = vmatprep.subr.bf16.mxu0 0
        %485 = vmatpush1.bf16.msra.mxu0 0
        %486 = vmatprep.subr.bf16.mxu0 0
        %487 = vmatpush1.bf16.msra.mxu0 0
        %488 = vmatprep.subr.bf16.mxu0 %v313
        %489 = vmatpush1.bf16.msra.mxu0 %v310
        %490 = vmatprep.subr.bf16.mxu0 0
        %491 = vmatpush2.bf16.msra.mxu0 0
        %492 = vmatprep.subr.bf16.mxu0 0
        %493 = vmatpush2.bf16.msra.mxu0 0
        %494 = vmatprep.subr.bf16.mxu0 0
        %495 = vmatpush2.bf16.msra.mxu0 0
        %496 = vmatprep.subr.bf16.mxu0 0
        %497 = vmatpush2.bf16.msra.mxu0 0
        %498 = vmatprep.subr.bf16.mxu0 0
        %499 = vmatpush2.bf16.msra.mxu0 0
        %500 = vmatprep.subr.bf16.mxu0 0
        %501 = vmatpush2.bf16.msra.mxu0 0
        %502 = vmatprep.subr.bf16.mxu0 0
        %503 = vmatpush2.bf16.msra.mxu0 0
        %504 = vmatprep.subr.bf16.mxu0 0
        %505 = vmatpush2.bf16.msra.mxu0 0
        %506 = vmatprep.mubr.bf16.mxu0 0
        %507 = vmatmul.mubr.bf16.gmra.mxu0 %v282
        %v508 = vpop.f32.mrf.mxu0
        %v509 = vadd.f32 %v221, %v508
        %v510 = vpop.f32.mrf.mxu0
        %v511 = vadd.f32 %v221, %v510
        %v512 = vpop.f32.mrf.mxu0
        %v513 = vadd.f32 %v226, %v512
        %v514 = vpop.f32.mrf.mxu0
        %v515 = vadd.f32 %v226, %v514
        %516 = vmatprep.mubr.bf16.mxu0 0
        %517 = vmatmul.mubr.bf16.gmra.mxu0 %v285
        %v518 = vpop.f32.mrf.mxu0
        %v519 = vadd.f32 %v231, %v518
        %v520 = vpop.f32.mrf.mxu0
        %v521 = vadd.f32 %v231, %v520
        %v522 = vpop.f32.mrf.mxu0
        %v523 = vadd.f32 %v236, %v522
        %v524 = vpop.f32.mrf.mxu0
        %v525 = vadd.f32 %v236, %v524
        %526 = vdwg.mxu0
        %vm527 = vcmp.gt.f32.partialorder %v350, 0.0
        %vm528 = vcmp.gt.f32.partialorder %v352, 0.0
        %vm529 = vcmp.gt.f32.partialorder %v403, 0.0
        %vm530 = vcmp.gt.f32.partialorder %v405, 0.0
        %vm531 = vcmp.gt.f32.partialorder %v456, 0.0
        %vm532 = vcmp.gt.f32.partialorder %v458, 0.0
        %vm533 = vcmp.gt.f32.partialorder %v509, 0.0
        %vm534 = vcmp.gt.f32.partialorder %v511, 0.0
        %vm535 = vcmp.gt.f32.partialorder %v354, 0.0
        %vm536 = vcmp.gt.f32.partialorder %v356, 0.0
        %vm537 = vcmp.gt.f32.partialorder %v407, 0.0
        %vm538 = vcmp.gt.f32.partialorder %v409, 0.0
        %vm539 = vcmp.gt.f32.partialorder %v460, 0.0
        %vm540 = vcmp.gt.f32.partialorder %v462, 0.0
        %vm541 = vcmp.gt.f32.partialorder %v513, 0.0
        %vm542 = vcmp.gt.f32.partialorder %v515, 0.0
        %vm543 = vcmp.gt.f32.partialorder %v360, 0.0
        %vm544 = vcmp.gt.f32.partialorder %v362, 0.0
        %vm545 = vcmp.gt.f32.partialorder %v413, 0.0
        %vm546 = vcmp.gt.f32.partialorder %v415, 0.0
        %vm547 = vcmp.gt.f32.partialorder %v466, 0.0
        %vm548 = vcmp.gt.f32.partialorder %v468, 0.0
        %vm549 = vcmp.gt.f32.partialorder %v519, 0.0
        %vm550 = vcmp.gt.f32.partialorder %v521, 0.0
        %vm551 = vcmp.gt.f32.partialorder %v364, 0.0
        %vm552 = vcmp.gt.f32.partialorder %v366, 0.0
        %vm553 = vcmp.gt.f32.partialorder %v417, 0.0
        %vm554 = vcmp.gt.f32.partialorder %v419, 0.0
        %vm555 = vcmp.gt.f32.partialorder %v470, 0.0
        %vm556 = vcmp.gt.f32.partialorder %v472, 0.0
        %vm557 = vcmp.gt.f32.partialorder %v523, 0.0
        %vm558 = vcmp.gt.f32.partialorder %v525, 0.0
        %v559 = vmin.f32 %v350, 0.0
        %v560 = vmin.f32 %v352, 0.0
        %v561 = vmin.f32 %v403, 0.0
        %v562 = vmin.f32 %v405, 0.0
        %v563 = vmin.f32 %v456, 0.0
        %v564 = vmin.f32 %v458, 0.0
        %v565 = vmin.f32 %v509, 0.0
        %v566 = vmin.f32 %v511, 0.0
        %v567 = vmin.f32 %v354, 0.0
        %v568 = vmin.f32 %v356, 0.0
        %v569 = vmin.f32 %v407, 0.0
        %v570 = vmin.f32 %v409, 0.0
        %v571 = vmin.f32 %v460, 0.0
        %v572 = vmin.f32 %v462, 0.0
        %v573 = vmin.f32 %v513, 0.0
        %v574 = vmin.f32 %v515, 0.0
        %v575 = vmin.f32 %v360, 0.0
        %v576 = vmin.f32 %v362, 0.0
        %v577 = vmin.f32 %v413, 0.0
        %v578 = vmin.f32 %v415, 0.0
        %v579 = vmin.f32 %v466, 0.0
        %v580 = vmin.f32 %v468, 0.0
        %v581 = vmin.f32 %v519, 0.0
        %v582 = vmin.f32 %v521, 0.0
        %v583 = vmin.f32 %v364, 0.0
        %v584 = vmin.f32 %v366, 0.0
        %v585 = vmin.f32 %v417, 0.0
        %v586 = vmin.f32 %v419, 0.0
        %v587 = vmin.f32 %v470, 0.0
        %v588 = vmin.f32 %v472, 0.0
        %v589 = vmin.f32 %v523, 0.0
        %v590 = vmin.f32 %v525, 0.0
        %v591 = vmul.f32 %v559, 1.442695
        %v592 = vpow.pop %v591
        %v593 = vmul.f32 %v560, 1.442695
        %v594 = vpow.pop %v593
        %v595 = vmul.f32 %v561, 1.442695
        %v596 = vpow.pop %v595
        %v597 = vmul.f32 %v562, 1.442695
        %v598 = vpow.pop %v597
        %v599 = vmul.f32 %v563, 1.442695
        %v600 = vpow.pop %v599
        %v601 = vmul.f32 %v564, 1.442695
        %v602 = vpow.pop %v601
        %v603 = vmul.f32 %v565, 1.442695
        %v604 = vpow.pop %v603
        %v605 = vmul.f32 %v566, 1.442695
        %v606 = vpow.pop %v605
        %v607 = vmul.f32 %v567, 1.442695
        %v608 = vpow.pop %v607
        %v609 = vmul.f32 %v568, 1.442695
        %v610 = vpow.pop %v609
        %v611 = vmul.f32 %v569, 1.442695
        %v612 = vpow.pop %v611
        %v613 = vmul.f32 %v570, 1.442695
        %v614 = vpow.pop %v613
        %v615 = vmul.f32 %v571, 1.442695
        %v616 = vpow.pop %v615
        %v617 = vmul.f32 %v572, 1.442695
        %v618 = vpow.pop %v617
        %v619 = vmul.f32 %v573, 1.442695
        %v620 = vpow.pop %v619
        %v621 = vmul.f32 %v574, 1.442695
        %v622 = vpow.pop %v621
        %v623 = vmul.f32 %v575, 1.442695
        %v624 = vpow.pop %v623
        %v625 = vmul.f32 %v576, 1.442695
        %v626 = vpow.pop %v625
        %v627 = vmul.f32 %v577, 1.442695
        %v628 = vpow.pop %v627
        %v629 = vmul.f32 %v578, 1.442695
        %v630 = vpow.pop %v629
        %v631 = vmul.f32 %v579, 1.442695
        %v632 = vpow.pop %v631
        %v633 = vmul.f32 %v580, 1.442695
        %v634 = vpow.pop %v633
        %v635 = vmul.f32 %v581, 1.442695
        %v636 = vpow.pop %v635
        %v637 = vmul.f32 %v582, 1.442695
        %v638 = vpow.pop %v637
        %v639 = vmul.f32 %v583, 1.442695
        %v640 = vpow.pop %v639
        %v641 = vmul.f32 %v584, 1.442695
        %v642 = vpow.pop %v641
        %v643 = vmul.f32 %v585, 1.442695
        %v644 = vpow.pop %v643
        %v645 = vmul.f32 %v586, 1.442695
        %v646 = vpow.pop %v645
        %v647 = vmul.f32 %v587, 1.442695
        %v648 = vpow.pop %v647
        %v649 = vmul.f32 %v588, 1.442695
        %v650 = vpow.pop %v649
        %v651 = vmul.f32 %v589, 1.442695
        %v652 = vpow.pop %v651
        %v653 = vmul.f32 %v590, 1.442695
        %v654 = vpow.pop %v653
        %v655 = vsub.f32 %v592, 1.0
        %v656 = vsub.f32 %v594, 1.0
        %v657 = vsub.f32 %v596, 1.0
        %v658 = vsub.f32 %v598, 1.0
        %v659 = vsub.f32 %v600, 1.0
        %v660 = vsub.f32 %v602, 1.0
        %v661 = vsub.f32 %v604, 1.0
        %v662 = vsub.f32 %v606, 1.0
        %v663 = vsub.f32 %v608, 1.0
        %v664 = vsub.f32 %v610, 1.0
        %v665 = vsub.f32 %v612, 1.0
        %v666 = vsub.f32 %v614, 1.0
        %v667 = vsub.f32 %v616, 1.0
        %v668 = vsub.f32 %v618, 1.0
        %v669 = vsub.f32 %v620, 1.0
        %v670 = vsub.f32 %v622, 1.0
        %v671 = vsub.f32 %v624, 1.0
        %v672 = vsub.f32 %v626, 1.0
        %v673 = vsub.f32 %v628, 1.0
        %v674 = vsub.f32 %v630, 1.0
        %v675 = vsub.f32 %v632, 1.0
        %v676 = vsub.f32 %v634, 1.0
        %v677 = vsub.f32 %v636, 1.0
        %v678 = vsub.f32 %v638, 1.0
        %v679 = vsub.f32 %v640, 1.0
        %v680 = vsub.f32 %v642, 1.0
        %v681 = vsub.f32 %v644, 1.0
        %v682 = vsub.f32 %v646, 1.0
        %v683 = vsub.f32 %v648, 1.0
        %v684 = vsub.f32 %v650, 1.0
        %v685 = vsub.f32 %v652, 1.0
        %v686 = vsub.f32 %v654, 1.0
        %v687 = vsel %vm527, %v350, %v655
        %v688 = vsel %vm528, %v352, %v656
        %v689 = vsel %vm529, %v403, %v657
        %v690 = vsel %vm530, %v405, %v658
        %v691 = vsel %vm531, %v456, %v659
        %v692 = vsel %vm532, %v458, %v660
        %v693 = vsel %vm533, %v509, %v661
        %v694 = vsel %vm534, %v511, %v662
        %v695 = vsel %vm535, %v354, %v663
        %v696 = vsel %vm536, %v356, %v664
        %v697 = vsel %vm537, %v407, %v665
        %v698 = vsel %vm538, %v409, %v666
        %v699 = vsel %vm539, %v460, %v667
        %v700 = vsel %vm540, %v462, %v668
        %v701 = vsel %vm541, %v513, %v669
        %v702 = vsel %vm542, %v515, %v670
        %v703 = vsel %vm543, %v360, %v671
        %v704 = vsel %vm544, %v362, %v672
        %v705 = vsel %vm545, %v413, %v673
        %v706 = vsel %vm546, %v415, %v674
        %v707 = vsel %vm547, %v466, %v675
        %v708 = vsel %vm548, %v468, %v676
        %v709 = vsel %vm549, %v519, %v677
        %v710 = vsel %vm550, %v521, %v678
        %v711 = vsel %vm551, %v364, %v679
        %v712 = vsel %vm552, %v366, %v680
        %v713 = vsel %vm553, %v417, %v681
        %v714 = vsel %vm554, %v419, %v682
        %v715 = vsel %vm555, %v470, %v683
        %v716 = vsel %vm556, %v472, %v684
        %v717 = vsel %vm557, %v523, %v685
        %v718 = vsel %vm558, %v525, %v686
        %719 = vst [vmem:[%s198] sm:$0xff] %v687
        %720 = vst [vmem:[%s198 + $0x8] sm:$0xff] %v688
        %721 = vst [vmem:[%s198 + $0x10] sm:$0xff] %v689
        %722 = vst [vmem:[%s198 + $0x18] sm:$0xff] %v690
        %723 = vst [vmem:[%s198 + $0x20] sm:$0xff] %v691
        %724 = vst [vmem:[%s198 + $0x28] sm:$0xff] %v692
        %725 = vst [vmem:[%s198 + $0x30] sm:$0xff] %v693
        %726 = vst [vmem:[%s198 + $0x38] sm:$0xff] %v694
        %727 = vst [vmem:[%s198 + $0x40] sm:$0xff] %v695
        %728 = vst [vmem:[%s198 + $0x48] sm:$0xff] %v696
        %729 = vst [vmem:[%s198 + $0x50] sm:$0xff] %v697
        %730 = vst [vmem:[%s198 + $0x58] sm:$0xff] %v698
        %731 = vst [vmem:[%s198 + $0x60] sm:$0xff] %v699
        %732 = vst [vmem:[%s198 + $0x68] sm:$0xff] %v700
        %733 = vst [vmem:[%s198 + $0x70] sm:$0xff] %v701
        %734 = vst [vmem:[%s198 + $0x78] sm:$0xff] %v702
        %735 = vst [vmem:[%s198 + $0x80] sm:$0xff] %v703
        %736 = vst [vmem:[%s198 + $0x88] sm:$0xff] %v704
        %737 = vst [vmem:[%s198 + $0x90] sm:$0xff] %v705
        %738 = vst [vmem:[%s198 + $0x98] sm:$0xff] %v706
        %739 = vst [vmem:[%s198 + $0xa0] sm:$0xff] %v707
        %740 = vst [vmem:[%s198 + $0xa8] sm:$0xff] %v708
        %741 = vst [vmem:[%s198 + $0xb0] sm:$0xff] %v709
        %742 = vst [vmem:[%s198 + $0xb8] sm:$0xff] %v710
        %743 = vst [vmem:[%s198 + $0xc0] sm:$0xff] %v711
        %744 = vst [vmem:[%s198 + $0xc8] sm:$0xff] %v712
        %745 = vst [vmem:[%s198 + $0xd0] sm:$0xff] %v713
        %746 = vst [vmem:[%s198 + $0xd8] sm:$0xff] %v714
        %747 = vst [vmem:[%s198 + $0xe0] sm:$0xff] %v715
        %748 = vst [vmem:[%s198 + $0xe8] sm:$0xff] %v716
        %749 = vst [vmem:[%s198 + $0xf0] sm:$0xff] %v717
        %750 = vst [vmem:[%s198 + $0xf8] sm:$0xff] %v718
        %s751 = sand.u32 %s90, 1
        %s752 = sand.u32 %s90, 1
        %s753 = smul.addr %s752, 256
        %s754 = scalar_lea.vmem [#allocation3], %s753
        // Predicated region
        $region56: #{_forward_core.6} parent=50 // pred_check
          %p755 = pneg %p100
        $region57: #{_forward_core.6} parent=50 // pred_check_branch
          %757 = sbr.rel (%p755) target = $region59
        $region58: #{_forward_core.6} parent=50 // pred_region
          %s758 = smul.u32 8, %s14
          %s759 = smul.addr %s758, 8
          %s760 = scalar_lea.vmem %s3, %s759
          // Predicated region
          $region60: #{_forward_core.6} parent=58 // pred_check
            _
          $region61: #{_forward_core.6} parent=58 // pred_check_branch
            %762 = sbr.rel (0) target = $region63
          $region62: #{_forward_core.6} parent=58 // pred_region
            // Predicated region
            $region64: #{_forward_core.6} parent=62 // pred_check
              _
            $region65: #{_forward_core.6} parent=62 // pred_check_branch
              %764 = sbr.rel (0) target = $region67
            $region66: #{_forward_core.6} parent=62 // pred_region
              loop: start=0, step=1, limit=1
              $region68: #{_forward_core.6} parent=66 // loop_pre_header
                _
              $region69: #{_forward_core.6} parent=66 // loop_header
                %s766 = sphi 0, %s770
                %p767 = scmp.ge.s32.totalorder %s766, 1
                %s771 = sphi %s754, %s754
                %s772 = sphi %s760, %s760
              $region70: #{_forward_core.6} parent=66 // loop_header_branch
                %769 = sbr.rel (%p767) target = $region74
              $region71: #{_forward_core.6} parent=66 // loop_body
                %v773 = vld [vmem:[%s771] sm:$0xff]
                %774 = vst [vmem:[%s772] sm:$0xff] %v773
                %v775 = vld [vmem:[%s771 + $0x8] sm:$0xff]
                %776 = vst [vmem:[%s772 + $0x8] sm:$0xff] %v775
                %v777 = vld [vmem:[%s771 + $0x10] sm:$0xff]
                %778 = vst [vmem:[%s772 + $0x10] sm:$0xff] %v777
                %v779 = vld [vmem:[%s771 + $0x18] sm:$0xff]
                %780 = vst [vmem:[%s772 + $0x18] sm:$0xff] %v779
                %v781 = vld [vmem:[%s771 + $0x20] sm:$0xff]
                %782 = vst [vmem:[%s772 + $0x20] sm:$0xff] %v781
                %v783 = vld [vmem:[%s771 + $0x28] sm:$0xff]
                %784 = vst [vmem:[%s772 + $0x28] sm:$0xff] %v783
                %v785 = vld [vmem:[%s771 + $0x30] sm:$0xff]
                %786 = vst [vmem:[%s772 + $0x30] sm:$0xff] %v785
                %v787 = vld [vmem:[%s771 + $0x38] sm:$0xff]
                %788 = vst [vmem:[%s772 + $0x38] sm:$0xff] %v787
                %v789 = vld [vmem:[%s771 + $0x40] sm:$0xff]
                %790 = vst [vmem:[%s772 + $0xc0] sm:$0xff] %v789
                %v791 = vld [vmem:[%s771 + $0x48] sm:$0xff]
                %792 = vst [vmem:[%s772 + $0xc8] sm:$0xff] %v791
                %v793 = vld [vmem:[%s771 + $0x50] sm:$0xff]
                %794 = vst [vmem:[%s772 + $0xd0] sm:$0xff] %v793
                %v795 = vld [vmem:[%s771 + $0x58] sm:$0xff]
                %796 = vst [vmem:[%s772 + $0xd8] sm:$0xff] %v795
                %v797 = vld [vmem:[%s771 + $0x60] sm:$0xff]
                %798 = vst [vmem:[%s772 + $0xe0] sm:$0xff] %v797
                %v799 = vld [vmem:[%s771 + $0x68] sm:$0xff]
                %800 = vst [vmem:[%s772 + $0xe8] sm:$0xff] %v799
                %v801 = vld [vmem:[%s771 + $0x70] sm:$0xff]
                %802 = vst [vmem:[%s772 + $0xf0] sm:$0xff] %v801
                %v803 = vld [vmem:[%s771 + $0x78] sm:$0xff]
                %804 = vst [vmem:[%s772 + $0xf8] sm:$0xff] %v803
                %v805 = vld [vmem:[%s771 + $0x80] sm:$0xff]
                %806 = vst [vmem:[%s772 + $0x180] sm:$0xff] %v805
                %v807 = vld [vmem:[%s771 + $0x88] sm:$0xff]
                %808 = vst [vmem:[%s772 + $0x188] sm:$0xff] %v807
                %v809 = vld [vmem:[%s771 + $0x90] sm:$0xff]
                %810 = vst [vmem:[%s772 + $0x190] sm:$0xff] %v809
                %v811 = vld [vmem:[%s771 + $0x98] sm:$0xff]
                %812 = vst [vmem:[%s772 + $0x198] sm:$0xff] %v811
                %v813 = vld [vmem:[%s771 + $0xa0] sm:$0xff]
                %814 = vst [vmem:[%s772 + $0x1a0] sm:$0xff] %v813
                %v815 = vld [vmem:[%s771 + $0xa8] sm:$0xff]
                %816 = vst [vmem:[%s772 + $0x1a8] sm:$0xff] %v815
                %v817 = vld [vmem:[%s771 + $0xb0] sm:$0xff]
                %818 = vst [vmem:[%s772 + $0x1b0] sm:$0xff] %v817
                %v819 = vld [vmem:[%s771 + $0xb8] sm:$0xff]
                %820 = vst [vmem:[%s772 + $0x1b8] sm:$0xff] %v819
                %v821 = vld [vmem:[%s771 + $0xc0] sm:$0xff]
                %822 = vst [vmem:[%s772 + $0x240] sm:$0xff] %v821
                %v823 = vld [vmem:[%s771 + $0xc8] sm:$0xff]
                %824 = vst [vmem:[%s772 + $0x248] sm:$0xff] %v823
                %v825 = vld [vmem:[%s771 + $0xd0] sm:$0xff]
                %826 = vst [vmem:[%s772 + $0x250] sm:$0xff] %v825
                %v827 = vld [vmem:[%s771 + $0xd8] sm:$0xff]
                %828 = vst [vmem:[%s772 + $0x258] sm:$0xff] %v827
                %v829 = vld [vmem:[%s771 + $0xe0] sm:$0xff]
                %830 = vst [vmem:[%s772 + $0x260] sm:$0xff] %v829
                %v831 = vld [vmem:[%s771 + $0xe8] sm:$0xff]
                %832 = vst [vmem:[%s772 + $0x268] sm:$0xff] %v831
                %v833 = vld [vmem:[%s771 + $0xf0] sm:$0xff]
                %834 = vst [vmem:[%s772 + $0x270] sm:$0xff] %v833
                %v835 = vld [vmem:[%s771 + $0xf8] sm:$0xff]
                %836 = vst [vmem:[%s772 + $0x278] sm:$0xff] %v835
              $region72: #{_forward_core.6} parent=66 // loop_footer
                %s770 = sadd.s32 1, %s766
              $region73: #{_forward_core.6} parent=66 // loop_footer_branch
                %765 = sbr.rel target = $region69
              $region74: #{_forward_core.6} parent=66 // loop_exit
                _
            $region67: #{_forward_core.6} parent=62 // pred_fallthru
              _
            // Predicated region
            $region75: #{_forward_core.6} parent=62 // pred_check
              _
            $region76: #{_forward_core.6} parent=62 // pred_check_branch
              %838 = sbr.rel target = $region78
            $region77: #{_forward_core.6} parent=62 // pred_region
              _
            $region78: #{_forward_core.6} parent=62 // pred_fallthru
              _
          $region63: #{_forward_core.6} parent=58 // pred_fallthru
            _
          %839 = vnop
        $region59: #{_forward_core.6} parent=50 // pred_fallthru
          _
      $region51: #{_forward_core.6} parent=5 // pred_fallthru
        _
      %p840 = scmp.le.s32.totalorder 2, %s9
      // Predicated region
      $region79: #{_forward_core.6} parent=5 // pred_check
        %p841 = pneg %p840
      $region80: #{_forward_core.6} parent=5 // pred_check_branch
        %843 = sbr.rel (%p841) target = $region82
      $region81: #{_forward_core.6} parent=5 // pred_region
        %s844 = ssub.s32 %s9, 2
        // Predicated region
        $region83: #{_forward_core.6} parent=81 // pred_check
          %p845 = pneg %p106
        $region84: #{_forward_core.6} parent=81 // pred_check_branch
          %847 = sbr.rel (%p845) target = $region86
        $region85: #{_forward_core.6} parent=81 // pred_region
          %s848 = sand.u32 %s91, 1
          %s849 = sand.u32 %s91, 1
          %s850 = smul.addr %s849, 256
          %s851 = scalar_lea.vmem [#allocation3], %s850
        $region86: #{_forward_core.6} parent=81 // pred_fallthru
          _
      $region82: #{_forward_core.6} parent=5 // pred_fallthru
        _
    $region6: #{_forward_core.6} parent=1 // loop_footer
      %s13 = sadd.s32 1, %s9
    $region7: #{_forward_core.6} parent=1 // loop_footer_branch
      %8 = sbr.rel target = $region3
    $region8: #{_forward_core.6} parent=1 // loop_exit
      _

// kernel: _forward_core.7
$region0: #{_forward_core.7}
  #allocation0 [shape = 'u32[]', space=smem, size = 0x4, offset = 0x4, fixed_abs, tag = 'smem constant byte address 0x4 - core index']
  #allocation1 [shape = 'u32[144,128]{1,0:T(1,128)}', space=vmem, size = 0x12000, scoped, tag = 'internal scratch']
  %s0 = inlined_call_operand.vmem [shape: bf16[32,320], index: 0, kind: input, shape index: {}]
  %s1 = inlined_call_operand.vmem [shape: bf16[320,896], index: 1, kind: input, shape index: {}]
  %s2 = inlined_call_operand.vmem [shape: f32[32,1], index: 2, kind: input, shape index: {}]
  %s3 = inlined_call_operand.vmem [shape: f32[32,896], index: 3, kind: output, shape index: {}]
  %s4 = sld [smem:[#allocation0]]
  $region22: #{_forward_core.7} parent=0
    _
  %s6 = ssub.s32 1, %s4
  %s7 = scalar_select 0, %s6, %s4
  // Predicated region
  $region2: #{_forward_core.7} parent=0 // pred_check
    _
  $region3: #{_forward_core.7} parent=0 // pred_check_branch
    %9 = sbr.rel (0) target = $region5
  $region4: #{_forward_core.7} parent=0 // pred_region
    _
  $region5: #{_forward_core.7} parent=0 // pred_fallthru
    _
  // Predicated region
  $region6: #{_forward_core.7} parent=0 // pred_check
    _
  $region7: #{_forward_core.7} parent=0 // pred_check_branch
    %11 = sbr.rel (0) target = $region9
  $region8: #{_forward_core.7} parent=0 // pred_region
    _
  $region9: #{_forward_core.7} parent=0 // pred_fallthru
    _
  // Predicated region
  $region10: #{_forward_core.7} parent=0 // pred_check
    _
  $region11: #{_forward_core.7} parent=0 // pred_check_branch
    %13 = sbr.rel (0) target = $region13
  $region12: #{_forward_core.7} parent=0 // pred_region
    _
  $region13: #{_forward_core.7} parent=0 // pred_fallthru
    _
  %v15 = vld [vmem:[%s0] sm:$0xff]
  %v16 = vld [vmem:[%s0 + $0x8] sm:$0xf]
  %v17 = vld [vmem:[%s0 + $0xc] sm:$0xff]
  %v18 = vld [vmem:[%s0 + $0x14] sm:$0xf]
  %v19 = vld [vmem:[%s0 + $0x18] sm:$0xff]
  %v20 = vld [vmem:[%s0 + $0x20] sm:$0xf]
  %v21 = vld [vmem:[%s0 + $0x24] sm:$0xff]
  %v22 = vld [vmem:[%s0 + $0x2c] sm:$0xf]
  %v23 = vld [vmem:[%s1] sm:$0xff]
  %v24 = vld [vmem:[%s1 + $0x8] sm:$0xff]
  %v25 = vld [vmem:[%s1 + $0x10] sm:$0xff]
  %v26 = vld [vmem:[%s1 + $0x18] sm:$0xf]
  %v27 = vld [vmem:[%s1 + $0x1c] sm:$0xff]
  %v28 = vld [vmem:[%s1 + $0x24] sm:$0xff]
  %v29 = vld [vmem:[%s1 + $0x2c] sm:$0xff]
  %v30 = vld [vmem:[%s1 + $0x34] sm:$0xf]
  %v31 = vld [vmem:[%s1 + $0x38] sm:$0xff]
  %v32 = vld [vmem:[%s1 + $0x40] sm:$0xff]
  %v33 = vld [vmem:[%s1 + $0x48] sm:$0xff]
  %v34 = vld [vmem:[%s1 + $0x50] sm:$0xf]
  %v35 = vld [vmem:[%s1 + $0x54] sm:$0xff]
  %v36 = vld [vmem:[%s1 + $0x5c] sm:$0xff]
  %v37 = vld [vmem:[%s1 + $0x64] sm:$0xff]
  %v38 = vld [vmem:[%s1 + $0x6c] sm:$0xf]
  %v39 = vld [vmem:[%s1 + $0x70] sm:$0xff]
  %v40 = vld [vmem:[%s1 + $0x78] sm:$0xff]
  %v41 = vld [vmem:[%s1 + $0x80] sm:$0xff]
  %v42 = vld [vmem:[%s1 + $0x88] sm:$0xf]
  %v43 = vld [vmem:[%s1 + $0x8c] sm:$0xff]
  %v44 = vld [vmem:[%s1 + $0x94] sm:$0xff]
  %v45 = vld [vmem:[%s1 + $0x9c] sm:$0xff]
  %v46 = vld [vmem:[%s1 + $0xa4] sm:$0xf]
  %v47 = vld [vmem:[%s1 + $0xa8] sm:$0xff]
  %v48 = vld [vmem:[%s1 + $0xb0] sm:$0xff]
  %v49 = vld [vmem:[%s1 + $0xb8] sm:$0xff]
  %v50 = vld [vmem:[%s1 + $0xc0] sm:$0xf]
  %v51 = vld [vmem:[%s1 + $0xc4] sm:$0xff]
  %v52 = vld [vmem:[%s1 + $0xcc] sm:$0xff]
  %v53 = vld [vmem:[%s1 + $0xd4] sm:$0xff]
  %v54 = vld [vmem:[%s1 + $0xdc] sm:$0xf]
  %v55 = vld [vmem:[%s1 + $0xe0] sm:$0xff]
  %v56 = vld [vmem:[%s1 + $0xe8] sm:$0xff]
  %v57 = vld [vmem:[%s1 + $0xf0] sm:$0xff]
  %v58 = vld [vmem:[%s1 + $0xf8] sm:$0xf]
  %v59 = vld [vmem:[%s1 + $0xfc] sm:$0xff]
  %v60 = vld [vmem:[%s1 + $0x104] sm:$0xff]
  %v61 = vld [vmem:[%s1 + $0x10c] sm:$0xff]
  %v62 = vld [vmem:[%s1 + $0x114] sm:$0xf]
  %v63 = vld [vmem:[%s1 + $0x118] sm:$0xff]
  %v64 = vld [vmem:[%s1 + $0x120] sm:$0xff]
  %v65 = vld [vmem:[%s1 + $0x128] sm:$0xff]
  %v66 = vld [vmem:[%s1 + $0x130] sm:$0xf]
  %v67 = vld [vmem:[%s1 + $0x134] sm:$0xff]
  %v68 = vld [vmem:[%s1 + $0x13c] sm:$0xff]
  %v69 = vld [vmem:[%s1 + $0x144] sm:$0xff]
  %v70 = vld [vmem:[%s1 + $0x14c] sm:$0xf]
  %v71 = vld [vmem:[%s1 + $0x150] sm:$0xff]
  %v72 = vld [vmem:[%s1 + $0x158] sm:$0xff]
  %v73 = vld [vmem:[%s1 + $0x160] sm:$0xff]
  %v74 = vld [vmem:[%s1 + $0x168] sm:$0xf]
  %v75 = vld [vmem:[%s1 + $0x16c] sm:$0xff]
  %v76 = vld [vmem:[%s1 + $0x174] sm:$0xff]
  %v77 = vld [vmem:[%s1 + $0x17c] sm:$0xff]
  %v78 = vld [vmem:[%s1 + $0x184] sm:$0xf]
  %v79 = vld [vmem:[%s1 + $0x188] sm:$0xff]
  %v80 = vld [vmem:[%s1 + $0x190] sm:$0xff]
  %v81 = vld [vmem:[%s1 + $0x198] sm:$0xff]
  %v82 = vld [vmem:[%s1 + $0x1a0] sm:$0xf]
  %v83 = vld [vmem:[%s1 + $0x1a4] sm:$0xff]
  %v84 = vld [vmem:[%s1 + $0x1ac] sm:$0xff]
  %v85 = vld [vmem:[%s1 + $0x1b4] sm:$0xff]
  %v86 = vld [vmem:[%s1 + $0x1bc] sm:$0xf]
  %v87 = vld [vmem:[%s1 + $0x1c0] sm:$0xff]
  %v88 = vld [vmem:[%s1 + $0x1c8] sm:$0xff]
  %v89 = vld [vmem:[%s1 + $0x1d0] sm:$0xff]
  %v90 = vld [vmem:[%s1 + $0x1d8] sm:$0xf]
  %v91 = vld [vmem:[%s1 + $0x1dc] sm:$0xff]
  %v92 = vld [vmem:[%s1 + $0x1e4] sm:$0xff]
  %v93 = vld [vmem:[%s1 + $0x1ec] sm:$0xff]
  %v94 = vld [vmem:[%s1 + $0x1f4] sm:$0xf]
  %v95 = vld [vmem:[%s1 + $0x1f8] sm:$0xff]
  %v96 = vld [vmem:[%s1 + $0x200] sm:$0xff]
  %v97 = vld [vmem:[%s1 + $0x208] sm:$0xff]
  %v98 = vld [vmem:[%s1 + $0x210] sm:$0xf]
  %v99 = vld [vmem:[%s1 + $0x214] sm:$0xff]
  %v100 = vld [vmem:[%s1 + $0x21c] sm:$0xff]
  %v101 = vld [vmem:[%s1 + $0x224] sm:$0xff]
  %v102 = vld [vmem:[%s1 + $0x22c] sm:$0xf]
  %v103 = vld [vmem:[%s1 + $0x230] sm:$0xff]
  %v104 = vld [vmem:[%s1 + $0x238] sm:$0xff]
  %v105 = vld [vmem:[%s1 + $0x240] sm:$0xff]
  %v106 = vld [vmem:[%s1 + $0x248] sm:$0xf]
  %v107 = vld [vmem:[%s1 + $0x24c] sm:$0xff]
  %v108 = vld [vmem:[%s1 + $0x254] sm:$0xff]
  %v109 = vld [vmem:[%s1 + $0x25c] sm:$0xff]
  %v110 = vld [vmem:[%s1 + $0x264] sm:$0xf]
  %v111 = vld [vmem:[%s1 + $0x268] sm:$0xff]
  %v112 = vld [vmem:[%s1 + $0x270] sm:$0xff]
  %v113 = vld [vmem:[%s1 + $0x278] sm:$0xff]
  %v114 = vld [vmem:[%s1 + $0x280] sm:$0xf]
  %v115 = vld [vmem:[%s1 + $0x284] sm:$0xff]
  %v116 = vld [vmem:[%s1 + $0x28c] sm:$0xff]
  %v117 = vld [vmem:[%s1 + $0x294] sm:$0xff]
  %v118 = vld [vmem:[%s1 + $0x29c] sm:$0xf]
  %v119 = vld [vmem:[%s1 + $0x2a0] sm:$0xff]
  %v120 = vld [vmem:[%s1 + $0x2a8] sm:$0xff]
  %v121 = vld [vmem:[%s1 + $0x2b0] sm:$0xff]
  %v122 = vld [vmem:[%s1 + $0x2b8] sm:$0xf]
  %v123 = vld [vmem:[%s1 + $0x2bc] sm:$0xff]
  %v124 = vld [vmem:[%s1 + $0x2c4] sm:$0xff]
  %v125 = vld [vmem:[%s1 + $0x2cc] sm:$0xff]
  %v126 = vld [vmem:[%s1 + $0x2d4] sm:$0xf]
  %v127 = vld [vmem:[%s1 + $0x2d8] sm:$0xff]
  %v128 = vld [vmem:[%s1 + $0x2e0] sm:$0xff]
  %v129 = vld [vmem:[%s1 + $0x2e8] sm:$0xff]
  %v130 = vld [vmem:[%s1 + $0x2f0] sm:$0xf]
  %v131 = vld [vmem:[%s1 + $0x2f4] sm:$0xff]
  %v132 = vld [vmem:[%s1 + $0x2fc] sm:$0xff]
  %v133 = vld [vmem:[%s1 + $0x304] sm:$0xff]
  %v134 = vld [vmem:[%s1 + $0x30c] sm:$0xf]
  %v135 = vld [vmem:[%s1 + $0x310] sm:$0xff]
  %v136 = vld [vmem:[%s1 + $0x318] sm:$0xff]
  %v137 = vld [vmem:[%s1 + $0x320] sm:$0xff]
  %v138 = vld [vmem:[%s1 + $0x328] sm:$0xf]
  %v139 = vld [vmem:[%s1 + $0x32c] sm:$0xff]
  %v140 = vld [vmem:[%s1 + $0x334] sm:$0xff]
  %v141 = vld [vmem:[%s1 + $0x33c] sm:$0xff]
  %v142 = vld [vmem:[%s1 + $0x344] sm:$0xf]
  %v143 = vld [vmem:[%s1 + $0x348] sm:$0xff]
  %v144 = vld [vmem:[%s1 + $0x350] sm:$0xff]
  %v145 = vld [vmem:[%s1 + $0x358] sm:$0xff]
  %v146 = vld [vmem:[%s1 + $0x360] sm:$0xf]
  %v147 = vld [vmem:[%s1 + $0x364] sm:$0xff]
  %v148 = vld [vmem:[%s1 + $0x36c] sm:$0xff]
  %v149 = vld [vmem:[%s1 + $0x374] sm:$0xff]
  %v150 = vld [vmem:[%s1 + $0x37c] sm:$0xf]
  %v151 = vld [vmem:[%s1 + $0x380] sm:$0xff]
  %v152 = vld [vmem:[%s1 + $0x388] sm:$0xff]
  %v153 = vld [vmem:[%s1 + $0x390] sm:$0xff]
  %v154 = vld [vmem:[%s1 + $0x398] sm:$0xf]
  %v155 = vld [vmem:[%s1 + $0x39c] sm:$0xff]
  %v156 = vld [vmem:[%s1 + $0x3a4] sm:$0xff]
  %v157 = vld [vmem:[%s1 + $0x3ac] sm:$0xff]
  %v158 = vld [vmem:[%s1 + $0x3b4] sm:$0xf]
  %v159 = vld [vmem:[%s1 + $0x3b8] sm:$0xff]
  %v160 = vld [vmem:[%s1 + $0x3c0] sm:$0xff]
  %v161 = vld [vmem:[%s1 + $0x3c8] sm:$0xff]
  %v162 = vld [vmem:[%s1 + $0x3d0] sm:$0xf]
  %v163 = vld [vmem:[%s1 + $0x3d4] sm:$0xff]
  %v164 = vld [vmem:[%s1 + $0x3dc] sm:$0xff]
  %v165 = vld [vmem:[%s1 + $0x3e4] sm:$0xff]
  %v166 = vld [vmem:[%s1 + $0x3ec] sm:$0xf]
  %v167 = vld [vmem:[%s1 + $0x3f0] sm:$0xff]
  %v168 = vld [vmem:[%s1 + $0x3f8] sm:$0xff]
  %v169 = vld [vmem:[%s1 + $0x400] sm:$0xff]
  %v170 = vld [vmem:[%s1 + $0x408] sm:$0xf]
  %v171 = vld [vmem:[%s1 + $0x40c] sm:$0xff]
  %v172 = vld [vmem:[%s1 + $0x414] sm:$0xff]
  %v173 = vld [vmem:[%s1 + $0x41c] sm:$0xff]
  %v174 = vld [vmem:[%s1 + $0x424] sm:$0xf]
  %v175 = vld [vmem:[%s1 + $0x428] sm:$0xff]
  %v176 = vld [vmem:[%s1 + $0x430] sm:$0xff]
  %v177 = vld [vmem:[%s1 + $0x438] sm:$0xff]
  %v178 = vld [vmem:[%s1 + $0x440] sm:$0xf]
  %v179 = vld [vmem:[%s1 + $0x444] sm:$0xff]
  %v180 = vld [vmem:[%s1 + $0x44c] sm:$0xff]
  %v181 = vld [vmem:[%s1 + $0x454] sm:$0xff]
  %v182 = vld [vmem:[%s1 + $0x45c] sm:$0xf]
  %v183 = vld [vmem:[%s2] sm:$0xff]
  %v184 = vld [vmem:[%s2 + $0x8] sm:$0xff]
  %v185 = vld [vmem:[%s2 + $0x10] sm:$0xff]
  %v186 = vld [vmem:[%s2 + $0x18] sm:$0xff]
  %188 = vset.pattern.permute.xlu0 0
  %189 = vperm.xlu0 %188, %v183
  %v190 = vpop.permute.xlu0 %189
  %193 = vset.pattern.permute.xlu0 0
  %194 = vperm.xlu0 %193, %v184
  %v195 = vpop.permute.xlu0 %194
  %198 = vset.pattern.permute.xlu0 0
  %199 = vperm.xlu0 %198, %v185
  %v200 = vpop.permute.xlu0 %199
  %203 = vset.pattern.permute.xlu0 0
  %204 = vperm.xlu0 %203, %v186
  %v205 = vpop.permute.xlu0 %204
  %v215 = vunpack.c.l.b16 %v15
  %v216 = vunpack.c.h.b16 %v15
  %v217 = vunpack.c.l.b16 %v16
  %v218 = vunpack.c.l.b16 %v17
  %v219 = vunpack.c.h.b16 %v17
  %v220 = vunpack.c.l.b16 %v18
  %v221 = vunpack.c.l.b16 %v19
  %v222 = vunpack.c.h.b16 %v19
  %v223 = vunpack.c.l.b16 %v20
  %v224 = vunpack.c.l.b16 %v21
  %v225 = vunpack.c.h.b16 %v21
  %v226 = vunpack.c.l.b16 %v22
  %v227 = vpack.c.b16 %v218, %v215
  %v228 = vpack.c.b16 %v219, %v216
  %v229 = vpack.c.b16 %v220, %v217
  %v230 = vpack.c.b16 %v224, %v221
  %v231 = vpack.c.b16 %v225, %v222
  %v232 = vpack.c.b16 %v226, %v223
  %v397 = vunpack.c.l.b16 %v23
  %v398 = vunpack.c.h.b16 %v23
  %v399 = vunpack.c.l.b16 %v24
  %v400 = vunpack.c.h.b16 %v24
  %v401 = vunpack.c.l.b16 %v25
  %v402 = vunpack.c.h.b16 %v25
  %v403 = vunpack.c.l.b16 %v26
  %v404 = vunpack.c.l.b16 %v27
  %v405 = vunpack.c.h.b16 %v27
  %v406 = vunpack.c.l.b16 %v28
  %v407 = vunpack.c.h.b16 %v28
  %v408 = vunpack.c.l.b16 %v29
  %v409 = vunpack.c.h.b16 %v29
  %v410 = vunpack.c.l.b16 %v30
  %v411 = vunpack.c.l.b16 %v31
  %v412 = vunpack.c.h.b16 %v31
  %v413 = vunpack.c.l.b16 %v32
  %v414 = vunpack.c.h.b16 %v32
  %v415 = vunpack.c.l.b16 %v33
  %v416 = vunpack.c.h.b16 %v33
  %v417 = vunpack.c.l.b16 %v34
  %v418 = vunpack.c.l.b16 %v35
  %v419 = vunpack.c.h.b16 %v35
  %v420 = vunpack.c.l.b16 %v36
  %v421 = vunpack.c.h.b16 %v36
  %v422 = vunpack.c.l.b16 %v37
  %v423 = vunpack.c.h.b16 %v37
  %v424 = vunpack.c.l.b16 %v38
  %v425 = vunpack.c.l.b16 %v39
  %v426 = vunpack.c.h.b16 %v39
  %v427 = vunpack.c.l.b16 %v40
  %v428 = vunpack.c.h.b16 %v40
  %v429 = vunpack.c.l.b16 %v41
  %v430 = vunpack.c.h.b16 %v41
  %v431 = vunpack.c.l.b16 %v42
  %v432 = vunpack.c.l.b16 %v43
  %v433 = vunpack.c.h.b16 %v43
  %v434 = vunpack.c.l.b16 %v44
  %v435 = vunpack.c.h.b16 %v44
  %v436 = vunpack.c.l.b16 %v45
  %v437 = vunpack.c.h.b16 %v45
  %v438 = vunpack.c.l.b16 %v46
  %v439 = vunpack.c.l.b16 %v47
  %v440 = vunpack.c.h.b16 %v47
  %v441 = vunpack.c.l.b16 %v48
  %v442 = vunpack.c.h.b16 %v48
  %v443 = vunpack.c.l.b16 %v49
  %v444 = vunpack.c.h.b16 %v49
  %v445 = vunpack.c.l.b16 %v50
  %v446 = vunpack.c.l.b16 %v51
  %v447 = vunpack.c.h.b16 %v51
  %v448 = vunpack.c.l.b16 %v52
  %v449 = vunpack.c.h.b16 %v52
  %v450 = vunpack.c.l.b16 %v53
  %v451 = vunpack.c.h.b16 %v53
  %v452 = vunpack.c.l.b16 %v54
  %v453 = vunpack.c.l.b16 %v55
  %v454 = vunpack.c.h.b16 %v55
  %v455 = vunpack.c.l.b16 %v56
  %v456 = vunpack.c.h.b16 %v56
  %v457 = vunpack.c.l.b16 %v57
  %v458 = vunpack.c.h.b16 %v57
  %v459 = vunpack.c.l.b16 %v58
  %v460 = vunpack.c.l.b16 %v59
  %v461 = vunpack.c.h.b16 %v59
  %v462 = vunpack.c.l.b16 %v60
  %v463 = vunpack.c.h.b16 %v60
  %v464 = vunpack.c.l.b16 %v61
  %v465 = vunpack.c.h.b16 %v61
  %v466 = vunpack.c.l.b16 %v62
  %v467 = vunpack.c.l.b16 %v63
  %v468 = vunpack.c.h.b16 %v63
  %v469 = vunpack.c.l.b16 %v64
  %v470 = vunpack.c.h.b16 %v64
  %v471 = vunpack.c.l.b16 %v65
  %v472 = vunpack.c.h.b16 %v65
  %v473 = vunpack.c.l.b16 %v66
  %v474 = vunpack.c.l.b16 %v67
  %v475 = vunpack.c.h.b16 %v67
  %v476 = vunpack.c.l.b16 %v68
  %v477 = vunpack.c.h.b16 %v68
  %v478 = vunpack.c.l.b16 %v69
  %v479 = vunpack.c.h.b16 %v69
  %v480 = vunpack.c.l.b16 %v70
  %v481 = vunpack.c.l.b16 %v71
  %v482 = vunpack.c.h.b16 %v71
  %v483 = vunpack.c.l.b16 %v72
  %v484 = vunpack.c.h.b16 %v72
  %v485 = vunpack.c.l.b16 %v73
  %v486 = vunpack.c.h.b16 %v73
  %v487 = vunpack.c.l.b16 %v74
  %v488 = vunpack.c.l.b16 %v75
  %v489 = vunpack.c.h.b16 %v75
  %v490 = vunpack.c.l.b16 %v76
  %v491 = vunpack.c.h.b16 %v76
  %v492 = vunpack.c.l.b16 %v77
  %v493 = vunpack.c.h.b16 %v77
  %v494 = vunpack.c.l.b16 %v78
  %v495 = vunpack.c.l.b16 %v79
  %v496 = vunpack.c.h.b16 %v79
  %v497 = vunpack.c.l.b16 %v80
  %v498 = vunpack.c.h.b16 %v80
  %v499 = vunpack.c.l.b16 %v81
  %v500 = vunpack.c.h.b16 %v81
  %v501 = vunpack.c.l.b16 %v82
  %v502 = vunpack.c.l.b16 %v83
  %v503 = vunpack.c.h.b16 %v83
  %v504 = vunpack.c.l.b16 %v84
  %v505 = vunpack.c.h.b16 %v84
  %v506 = vunpack.c.l.b16 %v85
  %v507 = vunpack.c.h.b16 %v85
  %v508 = vunpack.c.l.b16 %v86
  %v509 = vunpack.c.l.b16 %v87
  %v510 = vunpack.c.h.b16 %v87
  %v511 = vunpack.c.l.b16 %v88
  %v512 = vunpack.c.h.b16 %v88
  %v513 = vunpack.c.l.b16 %v89
  %v514 = vunpack.c.h.b16 %v89
  %v515 = vunpack.c.l.b16 %v90
  %v516 = vunpack.c.l.b16 %v91
  %v517 = vunpack.c.h.b16 %v91
  %v518 = vunpack.c.l.b16 %v92
  %v519 = vunpack.c.h.b16 %v92
  %v520 = vunpack.c.l.b16 %v93
  %v521 = vunpack.c.h.b16 %v93
  %v522 = vunpack.c.l.b16 %v94
  %v523 = vunpack.c.l.b16 %v95
  %v524 = vunpack.c.h.b16 %v95
  %v525 = vunpack.c.l.b16 %v96
  %v526 = vunpack.c.h.b16 %v96
  %v527 = vunpack.c.l.b16 %v97
  %v528 = vunpack.c.h.b16 %v97
  %v529 = vunpack.c.l.b16 %v98
  %v530 = vunpack.c.l.b16 %v99
  %v531 = vunpack.c.h.b16 %v99
  %v532 = vunpack.c.l.b16 %v100
  %v533 = vunpack.c.h.b16 %v100
  %v534 = vunpack.c.l.b16 %v101
  %v535 = vunpack.c.h.b16 %v101
  %v536 = vunpack.c.l.b16 %v102
  %v537 = vunpack.c.l.b16 %v103
  %v538 = vunpack.c.h.b16 %v103
  %v539 = vunpack.c.l.b16 %v104
  %v540 = vunpack.c.h.b16 %v104
  %v541 = vunpack.c.l.b16 %v105
  %v542 = vunpack.c.h.b16 %v105
  %v543 = vunpack.c.l.b16 %v106
  %v544 = vunpack.c.l.b16 %v107
  %v545 = vunpack.c.h.b16 %v107
  %v546 = vunpack.c.l.b16 %v108
  %v547 = vunpack.c.h.b16 %v108
  %v548 = vunpack.c.l.b16 %v109
  %v549 = vunpack.c.h.b16 %v109
  %v550 = vunpack.c.l.b16 %v110
  %v551 = vunpack.c.l.b16 %v111
  %v552 = vunpack.c.h.b16 %v111
  %v553 = vunpack.c.l.b16 %v112
  %v554 = vunpack.c.h.b16 %v112
  %v555 = vunpack.c.l.b16 %v113
  %v556 = vunpack.c.h.b16 %v113
  %v557 = vunpack.c.l.b16 %v114
  %v558 = vunpack.c.l.b16 %v115
  %v559 = vunpack.c.h.b16 %v115
  %v560 = vunpack.c.l.b16 %v116
  %v561 = vunpack.c.h.b16 %v116
  %v562 = vunpack.c.l.b16 %v117
  %v563 = vunpack.c.h.b16 %v117
  %v564 = vunpack.c.l.b16 %v118
  %v565 = vunpack.c.l.b16 %v119
  %v566 = vunpack.c.h.b16 %v119
  %v567 = vunpack.c.l.b16 %v120
  %v568 = vunpack.c.h.b16 %v120
  %v569 = vunpack.c.l.b16 %v121
  %v570 = vunpack.c.h.b16 %v121
  %v571 = vunpack.c.l.b16 %v122
  %v572 = vunpack.c.l.b16 %v123
  %v573 = vunpack.c.h.b16 %v123
  %v574 = vunpack.c.l.b16 %v124
  %v575 = vunpack.c.h.b16 %v124
  %v576 = vunpack.c.l.b16 %v125
  %v577 = vunpack.c.h.b16 %v125
  %v578 = vunpack.c.l.b16 %v126
  %v579 = vunpack.c.l.b16 %v127
  %v580 = vunpack.c.h.b16 %v127
  %v581 = vunpack.c.l.b16 %v128
  %v582 = vunpack.c.h.b16 %v128
  %v583 = vunpack.c.l.b16 %v129
  %v584 = vunpack.c.h.b16 %v129
  %v585 = vunpack.c.l.b16 %v130
  %v586 = vunpack.c.l.b16 %v131
  %v587 = vunpack.c.h.b16 %v131
  %v588 = vunpack.c.l.b16 %v132
  %v589 = vunpack.c.h.b16 %v132
  %v590 = vunpack.c.l.b16 %v133
  %v591 = vunpack.c.h.b16 %v133
  %v592 = vunpack.c.l.b16 %v134
  %v593 = vunpack.c.l.b16 %v135
  %v594 = vunpack.c.h.b16 %v135
  %v595 = vunpack.c.l.b16 %v136
  %v596 = vunpack.c.h.b16 %v136
  %v597 = vunpack.c.l.b16 %v137
  %v598 = vunpack.c.h.b16 %v137
  %v599 = vunpack.c.l.b16 %v138
  %v600 = vunpack.c.l.b16 %v139
  %v601 = vunpack.c.h.b16 %v139
  %v602 = vunpack.c.l.b16 %v140
  %v603 = vunpack.c.h.b16 %v140
  %v604 = vunpack.c.l.b16 %v141
  %v605 = vunpack.c.h.b16 %v141
  %v606 = vunpack.c.l.b16 %v142
  %v607 = vunpack.c.l.b16 %v143
  %v608 = vunpack.c.h.b16 %v143
  %v609 = vunpack.c.l.b16 %v144
  %v610 = vunpack.c.h.b16 %v144
  %v611 = vunpack.c.l.b16 %v145
  %v612 = vunpack.c.h.b16 %v145
  %v613 = vunpack.c.l.b16 %v146
  %v614 = vunpack.c.l.b16 %v147
  %v615 = vunpack.c.h.b16 %v147
  %v616 = vunpack.c.l.b16 %v148
  %v617 = vunpack.c.h.b16 %v148
  %v618 = vunpack.c.l.b16 %v149
  %v619 = vunpack.c.h.b16 %v149
  %v620 = vunpack.c.l.b16 %v150
  %v621 = vunpack.c.l.b16 %v151
  %v622 = vunpack.c.h.b16 %v151
  %v623 = vunpack.c.l.b16 %v152
  %v624 = vunpack.c.h.b16 %v152
  %v625 = vunpack.c.l.b16 %v153
  %v626 = vunpack.c.h.b16 %v153
  %v627 = vunpack.c.l.b16 %v154
  %v628 = vunpack.c.l.b16 %v155
  %v629 = vunpack.c.h.b16 %v155
  %v630 = vunpack.c.l.b16 %v156
  %v631 = vunpack.c.h.b16 %v156
  %v632 = vunpack.c.l.b16 %v157
  %v633 = vunpack.c.h.b16 %v157
  %v634 = vunpack.c.l.b16 %v158
  %v635 = vunpack.c.l.b16 %v159
  %v636 = vunpack.c.h.b16 %v159
  %v637 = vunpack.c.l.b16 %v160
  %v638 = vunpack.c.h.b16 %v160
  %v639 = vunpack.c.l.b16 %v161
  %v640 = vunpack.c.h.b16 %v161
  %v641 = vunpack.c.l.b16 %v162
  %v642 = vunpack.c.l.b16 %v163
  %v643 = vunpack.c.h.b16 %v163
  %v644 = vunpack.c.l.b16 %v164
  %v645 = vunpack.c.h.b16 %v164
  %v646 = vunpack.c.l.b16 %v165
  %v647 = vunpack.c.h.b16 %v165
  %v648 = vunpack.c.l.b16 %v166
  %v649 = vunpack.c.l.b16 %v167
  %v650 = vunpack.c.h.b16 %v167
  %v651 = vunpack.c.l.b16 %v168
  %v652 = vunpack.c.h.b16 %v168
  %v653 = vunpack.c.l.b16 %v169
  %v654 = vunpack.c.h.b16 %v169
  %v655 = vunpack.c.l.b16 %v170
  %v656 = vunpack.c.l.b16 %v171
  %v657 = vunpack.c.h.b16 %v171
  %v658 = vunpack.c.l.b16 %v172
  %v659 = vunpack.c.h.b16 %v172
  %v660 = vunpack.c.l.b16 %v173
  %v661 = vunpack.c.h.b16 %v173
  %v662 = vunpack.c.l.b16 %v174
  %v663 = vunpack.c.l.b16 %v175
  %v664 = vunpack.c.h.b16 %v175
  %v665 = vunpack.c.l.b16 %v176
  %v666 = vunpack.c.h.b16 %v176
  %v667 = vunpack.c.l.b16 %v177
  %v668 = vunpack.c.h.b16 %v177
  %v669 = vunpack.c.l.b16 %v178
  %v670 = vunpack.c.l.b16 %v179
  %v671 = vunpack.c.h.b16 %v179
  %v672 = vunpack.c.l.b16 %v180
  %v673 = vunpack.c.h.b16 %v180
  %v674 = vunpack.c.l.b16 %v181
  %v675 = vunpack.c.h.b16 %v181
  %v676 = vunpack.c.l.b16 %v182
  %v677 = vpack.c.b16 %v404, %v397
  %v678 = vpack.c.b16 %v405, %v398
  %v679 = vpack.c.b16 %v406, %v399
  %v680 = vpack.c.b16 %v407, %v400
  %v681 = vpack.c.b16 %v408, %v401
  %v682 = vpack.c.b16 %v409, %v402
  %v683 = vpack.c.b16 %v410, %v403
  %v684 = vpack.c.b16 %v418, %v411
  %v685 = vpack.c.b16 %v419, %v412
  %v686 = vpack.c.b16 %v420, %v413
  %v687 = vpack.c.b16 %v421, %v414
  %v688 = vpack.c.b16 %v422, %v415
  %v689 = vpack.c.b16 %v423, %v416
  %v690 = vpack.c.b16 %v424, %v417
  %v691 = vpack.c.b16 %v432, %v425
  %v692 = vpack.c.b16 %v433, %v426
  %v693 = vpack.c.b16 %v434, %v427
  %v694 = vpack.c.b16 %v435, %v428
  %v695 = vpack.c.b16 %v436, %v429
  %v696 = vpack.c.b16 %v437, %v430
  %v697 = vpack.c.b16 %v438, %v431
  %v698 = vpack.c.b16 %v446, %v439
  %v699 = vpack.c.b16 %v447, %v440
  %v700 = vpack.c.b16 %v448, %v441
  %v701 = vpack.c.b16 %v449, %v442
  %v702 = vpack.c.b16 %v450, %v443
  %v703 = vpack.c.b16 %v451, %v444
  %v704 = vpack.c.b16 %v452, %v445
  %v705 = vpack.c.b16 %v460, %v453
  %v706 = vpack.c.b16 %v461, %v454
  %v707 = vpack.c.b16 %v462, %v455
  %v708 = vpack.c.b16 %v463, %v456
  %v709 = vpack.c.b16 %v464, %v457
  %v710 = vpack.c.b16 %v465, %v458
  %v711 = vpack.c.b16 %v466, %v459
  %v712 = vpack.c.b16 %v474, %v467
  %v713 = vpack.c.b16 %v475, %v468
  %v714 = vpack.c.b16 %v476, %v469
  %v715 = vpack.c.b16 %v477, %v470
  %v716 = vpack.c.b16 %v478, %v471
  %v717 = vpack.c.b16 %v479, %v472
  %v718 = vpack.c.b16 %v480, %v473
  %v719 = vpack.c.b16 %v488, %v481
  %v720 = vpack.c.b16 %v489, %v482
  %v721 = vpack.c.b16 %v490, %v483
  %v722 = vpack.c.b16 %v491, %v484
  %v723 = vpack.c.b16 %v492, %v485
  %v724 = vpack.c.b16 %v493, %v486
  %v725 = vpack.c.b16 %v494, %v487
  %v726 = vpack.c.b16 %v502, %v495
  %v727 = vpack.c.b16 %v503, %v496
  %v728 = vpack.c.b16 %v504, %v497
  %v729 = vpack.c.b16 %v505, %v498
  %v730 = vpack.c.b16 %v506, %v499
  %v731 = vpack.c.b16 %v507, %v500
  %v732 = vpack.c.b16 %v508, %v501
  %v733 = vpack.c.b16 %v516, %v509
  %v734 = vpack.c.b16 %v517, %v510
  %v735 = vpack.c.b16 %v518, %v511
  %v736 = vpack.c.b16 %v519, %v512
  %v737 = vpack.c.b16 %v520, %v513
  %v738 = vpack.c.b16 %v521, %v514
  %v739 = vpack.c.b16 %v522, %v515
  %v740 = vpack.c.b16 %v530, %v523
  %v741 = vpack.c.b16 %v531, %v524
  %v742 = vpack.c.b16 %v532, %v525
  %v743 = vpack.c.b16 %v533, %v526
  %v744 = vpack.c.b16 %v534, %v527
  %v745 = vpack.c.b16 %v535, %v528
  %v746 = vpack.c.b16 %v536, %v529
  %v747 = vpack.c.b16 %v544, %v537
  %v748 = vpack.c.b16 %v545, %v538
  %v749 = vpack.c.b16 %v546, %v539
  %v750 = vpack.c.b16 %v547, %v540
  %v751 = vpack.c.b16 %v548, %v541
  %v752 = vpack.c.b16 %v549, %v542
  %v753 = vpack.c.b16 %v550, %v543
  %v754 = vpack.c.b16 %v558, %v551
  %v755 = vpack.c.b16 %v559, %v552
  %v756 = vpack.c.b16 %v560, %v553
  %v757 = vpack.c.b16 %v561, %v554
  %v758 = vpack.c.b16 %v562, %v555
  %v759 = vpack.c.b16 %v563, %v556
  %v760 = vpack.c.b16 %v564, %v557
  %v761 = vpack.c.b16 %v572, %v565
  %v762 = vpack.c.b16 %v573, %v566
  %v763 = vpack.c.b16 %v574, %v567
  %v764 = vpack.c.b16 %v575, %v568
  %v765 = vpack.c.b16 %v576, %v569
  %v766 = vpack.c.b16 %v577, %v570
  %v767 = vpack.c.b16 %v578, %v571
  %v768 = vpack.c.b16 %v586, %v579
  %v769 = vpack.c.b16 %v587, %v580
  %v770 = vpack.c.b16 %v588, %v581
  %v771 = vpack.c.b16 %v589, %v582
  %v772 = vpack.c.b16 %v590, %v583
  %v773 = vpack.c.b16 %v591, %v584
  %v774 = vpack.c.b16 %v592, %v585
  %v775 = vpack.c.b16 %v600, %v593
  %v776 = vpack.c.b16 %v601, %v594
  %v777 = vpack.c.b16 %v602, %v595
  %v778 = vpack.c.b16 %v603, %v596
  %v779 = vpack.c.b16 %v604, %v597
  %v780 = vpack.c.b16 %v605, %v598
  %v781 = vpack.c.b16 %v606, %v599
  %v782 = vpack.c.b16 %v614, %v607
  %v783 = vpack.c.b16 %v615, %v608
  %v784 = vpack.c.b16 %v616, %v609
  %v785 = vpack.c.b16 %v617, %v610
  %v786 = vpack.c.b16 %v618, %v611
  %v787 = vpack.c.b16 %v619, %v612
  %v788 = vpack.c.b16 %v620, %v613
  %v789 = vpack.c.b16 %v628, %v621
  %v790 = vpack.c.b16 %v629, %v622
  %v791 = vpack.c.b16 %v630, %v623
  %v792 = vpack.c.b16 %v631, %v624
  %v793 = vpack.c.b16 %v632, %v625
  %v794 = vpack.c.b16 %v633, %v626
  %v795 = vpack.c.b16 %v634, %v627
  %v796 = vpack.c.b16 %v642, %v635
  %v797 = vpack.c.b16 %v643, %v636
  %v798 = vpack.c.b16 %v644, %v637
  %v799 = vpack.c.b16 %v645, %v638
  %v800 = vpack.c.b16 %v646, %v639
  %v801 = vpack.c.b16 %v647, %v640
  %v802 = vpack.c.b16 %v648, %v641
  %v803 = vpack.c.b16 %v656, %v649
  %v804 = vpack.c.b16 %v657, %v650
  %v805 = vpack.c.b16 %v658, %v651
  %v806 = vpack.c.b16 %v659, %v652
  %v807 = vpack.c.b16 %v660, %v653
  %v808 = vpack.c.b16 %v661, %v654
  %v809 = vpack.c.b16 %v662, %v655
  %v810 = vpack.c.b16 %v670, %v663
  %v811 = vpack.c.b16 %v671, %v664
  %v812 = vpack.c.b16 %v672, %v665
  %v813 = vpack.c.b16 %v673, %v666
  %v814 = vpack.c.b16 %v674, %v667
  %v815 = vpack.c.b16 %v675, %v668
  %v816 = vpack.c.b16 %v676, %v669
  %vm957 = vcmask 523264
  %v959 = vsel %vm957, %v229, 0
  %v962 = vsel %vm957, %v232, 0
  %964 = vmatprep.subr.bf16.mxu0 %v727
  %965 = vmatpush1.bf16.msra.mxu0 %v726
  %966 = vmatprep.subr.bf16.mxu0 %v720
  %967 = vmatpush1.bf16.msra.mxu0 %v719
  %968 = vmatprep.subr.bf16.mxu0 %v713
  %969 = vmatpush1.bf16.msra.mxu0 %v712
  %970 = vmatprep.subr.bf16.mxu0 %v706
  %971 = vmatpush1.bf16.msra.mxu0 %v705
  %972 = vmatprep.subr.bf16.mxu0 %v699
  %973 = vmatpush1.bf16.msra.mxu0 %v698
  %974 = vmatprep.subr.bf16.mxu0 %v692
  %975 = vmatpush1.bf16.msra.mxu0 %v691
  %976 = vmatprep.subr.bf16.mxu0 %v685
  %977 = vmatpush1.bf16.msra.mxu0 %v684
  %978 = vmatprep.subr.bf16.mxu0 %v678
  %979 = vmatpush1.bf16.msra.mxu0 %v677
  %980 = vmatprep.subr.bf16.mxu0 %v783
  %981 = vmatpush2.bf16.msra.mxu0 %v782
  %982 = vmatprep.subr.bf16.mxu0 %v776
  %983 = vmatpush2.bf16.msra.mxu0 %v775
  %984 = vmatprep.subr.bf16.mxu0 %v769
  %985 = vmatpush2.bf16.msra.mxu0 %v768
  %986 = vmatprep.subr.bf16.mxu0 %v762
  %987 = vmatpush2.bf16.msra.mxu0 %v761
  %988 = vmatprep.subr.bf16.mxu0 %v755
  %989 = vmatpush2.bf16.msra.mxu0 %v754
  %990 = vmatprep.subr.bf16.mxu0 %v748
  %991 = vmatpush2.bf16.msra.mxu0 %v747
  %992 = vmatprep.subr.bf16.mxu0 %v741
  %993 = vmatpush2.bf16.msra.mxu0 %v740
  %994 = vmatprep.subr.bf16.mxu0 %v734
  %995 = vmatpush2.bf16.msra.mxu0 %v733
  %996 = vmatprep.mubr.bf16.mxu0 %v228
  %997 = vmatmul.mubr.bf16.gmra.mxu0 %v227
  %v998 = vpop.f32.mrf.mxu0
  %v999 = vadd.f32 %v190, %v998
  %v1000 = vpop.f32.mrf.mxu0
  %v1001 = vadd.f32 %v190, %v1000
  %v1002 = vpop.f32.mrf.mxu0
  %v1003 = vadd.f32 %v195, %v1002
  %v1004 = vpop.f32.mrf.mxu0
  %v1005 = vadd.f32 %v195, %v1004
  %1006 = vmatprep.mubr.bf16.mxu0 %v231
  %1007 = vmatmul.mubr.bf16.gmra.mxu0 %v230
  %v1008 = vpop.f32.mrf.mxu0
  %v1009 = vadd.f32 %v200, %v1008
  %v1010 = vpop.f32.mrf.mxu0
  %v1011 = vadd.f32 %v200, %v1010
  %v1012 = vpop.f32.mrf.mxu0
  %v1013 = vadd.f32 %v205, %v1012
  %v1014 = vpop.f32.mrf.mxu0
  %v1015 = vadd.f32 %v205, %v1014
  %1016 = vdwg.mxu0
  %1017 = vmatprep.subr.bf16.mxu0 0
  %1018 = vmatpush1.bf16.msra.mxu0 0
  %1019 = vmatprep.subr.bf16.mxu0 0
  %1020 = vmatpush1.bf16.msra.mxu0 0
  %1021 = vmatprep.subr.bf16.mxu0 0
  %1022 = vmatpush1.bf16.msra.mxu0 0
  %1023 = vmatprep.subr.bf16.mxu0 0
  %1024 = vmatpush1.bf16.msra.mxu0 0
  %1025 = vmatprep.subr.bf16.mxu0 %v811
  %1026 = vmatpush1.bf16.msra.mxu0 %v810
  %1027 = vmatprep.subr.bf16.mxu0 %v804
  %1028 = vmatpush1.bf16.msra.mxu0 %v803
  %1029 = vmatprep.subr.bf16.mxu0 %v797
  %1030 = vmatpush1.bf16.msra.mxu0 %v796
  %1031 = vmatprep.subr.bf16.mxu0 %v790
  %1032 = vmatpush1.bf16.msra.mxu0 %v789
  %1033 = vmatprep.subr.bf16.mxu0 0
  %1034 = vmatpush2.bf16.msra.mxu0 0
  %1035 = vmatprep.subr.bf16.mxu0 0
  %1036 = vmatpush2.bf16.msra.mxu0 0
  %1037 = vmatprep.subr.bf16.mxu0 0
  %1038 = vmatpush2.bf16.msra.mxu0 0
  %1039 = vmatprep.subr.bf16.mxu0 0
  %1040 = vmatpush2.bf16.msra.mxu0 0
  %1041 = vmatprep.subr.bf16.mxu0 0
  %1042 = vmatpush2.bf16.msra.mxu0 0
  %1043 = vmatprep.subr.bf16.mxu0 0
  %1044 = vmatpush2.bf16.msra.mxu0 0
  %1045 = vmatprep.subr.bf16.mxu0 0
  %1046 = vmatpush2.bf16.msra.mxu0 0
  %1047 = vmatprep.subr.bf16.mxu0 0
  %1048 = vmatpush2.bf16.msra.mxu0 0
  %1049 = vmatprep.mubr.bf16.mxu0 0
  %1050 = vmatmul.mubr.bf16.gmra.mxu0 %v959
  %v1051 = vpop.f32.mrf.mxu0
  %v1052 = vadd.f32 %v999, %v1051
  %v1053 = vpop.f32.mrf.mxu0
  %v1054 = vadd.f32 %v1001, %v1053
  %v1055 = vpop.f32.mrf.mxu0
  %v1056 = vadd.f32 %v1003, %v1055
  %v1057 = vpop.f32.mrf.mxu0
  %v1058 = vadd.f32 %v1005, %v1057
  %1059 = vmatprep.mubr.bf16.mxu0 0
  %1060 = vmatmul.mubr.bf16.gmra.mxu0 %v962
  %v1061 = vpop.f32.mrf.mxu0
  %v1062 = vadd.f32 %v1009, %v1061
  %v1063 = vpop.f32.mrf.mxu0
  %v1064 = vadd.f32 %v1011, %v1063
  %v1065 = vpop.f32.mrf.mxu0
  %v1066 = vadd.f32 %v1013, %v1065
  %v1067 = vpop.f32.mrf.mxu0
  %v1068 = vadd.f32 %v1015, %v1067
  %1069 = vdwg.mxu0
  %1070 = vmatprep.subr.bf16.mxu0 %v729
  %1071 = vmatpush1.bf16.msra.mxu0 %v728
  %1072 = vmatprep.subr.bf16.mxu0 %v722
  %1073 = vmatpush1.bf16.msra.mxu0 %v721
  %1074 = vmatprep.subr.bf16.mxu0 %v715
  %1075 = vmatpush1.bf16.msra.mxu0 %v714
  %1076 = vmatprep.subr.bf16.mxu0 %v708
  %1077 = vmatpush1.bf16.msra.mxu0 %v707
  %1078 = vmatprep.subr.bf16.mxu0 %v701
  %1079 = vmatpush1.bf16.msra.mxu0 %v700
  %1080 = vmatprep.subr.bf16.mxu0 %v694
  %1081 = vmatpush1.bf16.msra.mxu0 %v693
  %1082 = vmatprep.subr.bf16.mxu0 %v687
  %1083 = vmatpush1.bf16.msra.mxu0 %v686
  %1084 = vmatprep.subr.bf16.mxu0 %v680
  %1085 = vmatpush1.bf16.msra.mxu0 %v679
  %1086 = vmatprep.subr.bf16.mxu0 %v785
  %1087 = vmatpush2.bf16.msra.mxu0 %v784
  %1088 = vmatprep.subr.bf16.mxu0 %v778
  %1089 = vmatpush2.bf16.msra.mxu0 %v777
  %1090 = vmatprep.subr.bf16.mxu0 %v771
  %1091 = vmatpush2.bf16.msra.mxu0 %v770
  %1092 = vmatprep.subr.bf16.mxu0 %v764
  %1093 = vmatpush2.bf16.msra.mxu0 %v763
  %1094 = vmatprep.subr.bf16.mxu0 %v757
  %1095 = vmatpush2.bf16.msra.mxu0 %v756
  %1096 = vmatprep.subr.bf16.mxu0 %v750
  %1097 = vmatpush2.bf16.msra.mxu0 %v749
  %1098 = vmatprep.subr.bf16.mxu0 %v743
  %1099 = vmatpush2.bf16.msra.mxu0 %v742
  %1100 = vmatprep.subr.bf16.mxu0 %v736
  %1101 = vmatpush2.bf16.msra.mxu0 %v735
  %1102 = vmatprep.mubr.bf16.mxu0 %v228
  %1103 = vmatmul.mubr.bf16.gmra.mxu0 %v227
  %v1104 = vpop.f32.mrf.mxu0
  %v1105 = vadd.f32 %v190, %v1104
  %v1106 = vpop.f32.mrf.mxu0
  %v1107 = vadd.f32 %v190, %v1106
  %v1108 = vpop.f32.mrf.mxu0
  %v1109 = vadd.f32 %v195, %v1108
  %v1110 = vpop.f32.mrf.mxu0
  %v1111 = vadd.f32 %v195, %v1110
  %1112 = vmatprep.mubr.bf16.mxu0 %v231
  %1113 = vmatmul.mubr.bf16.gmra.mxu0 %v230
  %v1114 = vpop.f32.mrf.mxu0
  %v1115 = vadd.f32 %v200, %v1114
  %v1116 = vpop.f32.mrf.mxu0
  %v1117 = vadd.f32 %v200, %v1116
  %v1118 = vpop.f32.mrf.mxu0
  %v1119 = vadd.f32 %v205, %v1118
  %v1120 = vpop.f32.mrf.mxu0
  %v1121 = vadd.f32 %v205, %v1120
  %1122 = vdwg.mxu0
  %1123 = vmatprep.subr.bf16.mxu0 0
  %1124 = vmatpush1.bf16.msra.mxu0 0
  %1125 = vmatprep.subr.bf16.mxu0 0
  %1126 = vmatpush1.bf16.msra.mxu0 0
  %1127 = vmatprep.subr.bf16.mxu0 0
  %1128 = vmatpush1.bf16.msra.mxu0 0
  %1129 = vmatprep.subr.bf16.mxu0 0
  %1130 = vmatpush1.bf16.msra.mxu0 0
  %1131 = vmatprep.subr.bf16.mxu0 %v813
  %1132 = vmatpush1.bf16.msra.mxu0 %v812
  %1133 = vmatprep.subr.bf16.mxu0 %v806
  %1134 = vmatpush1.bf16.msra.mxu0 %v805
  %1135 = vmatprep.subr.bf16.mxu0 %v799
  %1136 = vmatpush1.bf16.msra.mxu0 %v798
  %1137 = vmatprep.subr.bf16.mxu0 %v792
  %1138 = vmatpush1.bf16.msra.mxu0 %v791
  %1139 = vmatprep.subr.bf16.mxu0 0
  %1140 = vmatpush2.bf16.msra.mxu0 0
  %1141 = vmatprep.subr.bf16.mxu0 0
  %1142 = vmatpush2.bf16.msra.mxu0 0
  %1143 = vmatprep.subr.bf16.mxu0 0
  %1144 = vmatpush2.bf16.msra.mxu0 0
  %1145 = vmatprep.subr.bf16.mxu0 0
  %1146 = vmatpush2.bf16.msra.mxu0 0
  %1147 = vmatprep.subr.bf16.mxu0 0
  %1148 = vmatpush2.bf16.msra.mxu0 0
  %1149 = vmatprep.subr.bf16.mxu0 0
  %1150 = vmatpush2.bf16.msra.mxu0 0
  %1151 = vmatprep.subr.bf16.mxu0 0
  %1152 = vmatpush2.bf16.msra.mxu0 0
  %1153 = vmatprep.subr.bf16.mxu0 0
  %1154 = vmatpush2.bf16.msra.mxu0 0
  %1155 = vmatprep.mubr.bf16.mxu0 0
  %1156 = vmatmul.mubr.bf16.gmra.mxu0 %v959
  %v1157 = vpop.f32.mrf.mxu0
  %v1158 = vadd.f32 %v1105, %v1157
  %v1159 = vpop.f32.mrf.mxu0
  %v1160 = vadd.f32 %v1107, %v1159
  %v1161 = vpop.f32.mrf.mxu0
  %v1162 = vadd.f32 %v1109, %v1161
  %v1163 = vpop.f32.mrf.mxu0
  %v1164 = vadd.f32 %v1111, %v1163
  %1165 = vmatprep.mubr.bf16.mxu0 0
  %1166 = vmatmul.mubr.bf16.gmra.mxu0 %v962
  %v1167 = vpop.f32.mrf.mxu0
  %v1168 = vadd.f32 %v1115, %v1167
  %v1169 = vpop.f32.mrf.mxu0
  %v1170 = vadd.f32 %v1117, %v1169
  %v1171 = vpop.f32.mrf.mxu0
  %v1172 = vadd.f32 %v1119, %v1171
  %v1173 = vpop.f32.mrf.mxu0
  %v1174 = vadd.f32 %v1121, %v1173
  %1175 = vdwg.mxu0
  %1176 = vmatprep.subr.bf16.mxu0 %v731
  %1177 = vmatpush1.bf16.msra.mxu0 %v730
  %1178 = vmatprep.subr.bf16.mxu0 %v724
  %1179 = vmatpush1.bf16.msra.mxu0 %v723
  %1180 = vmatprep.subr.bf16.mxu0 %v717
  %1181 = vmatpush1.bf16.msra.mxu0 %v716
  %1182 = vmatprep.subr.bf16.mxu0 %v710
  %1183 = vmatpush1.bf16.msra.mxu0 %v709
  %1184 = vmatprep.subr.bf16.mxu0 %v703
  %1185 = vmatpush1.bf16.msra.mxu0 %v702
  %1186 = vmatprep.subr.bf16.mxu0 %v696
  %1187 = vmatpush1.bf16.msra.mxu0 %v695
  %1188 = vmatprep.subr.bf16.mxu0 %v689
  %1189 = vmatpush1.bf16.msra.mxu0 %v688
  %1190 = vmatprep.subr.bf16.mxu0 %v682
  %1191 = vmatpush1.bf16.msra.mxu0 %v681
  %1192 = vmatprep.subr.bf16.mxu0 %v787
  %1193 = vmatpush2.bf16.msra.mxu0 %v786
  %1194 = vmatprep.subr.bf16.mxu0 %v780
  %1195 = vmatpush2.bf16.msra.mxu0 %v779
  %1196 = vmatprep.subr.bf16.mxu0 %v773
  %1197 = vmatpush2.bf16.msra.mxu0 %v772
  %1198 = vmatprep.subr.bf16.mxu0 %v766
  %1199 = vmatpush2.bf16.msra.mxu0 %v765
  %1200 = vmatprep.subr.bf16.mxu0 %v759
  %1201 = vmatpush2.bf16.msra.mxu0 %v758
  %1202 = vmatprep.subr.bf16.mxu0 %v752
  %1203 = vmatpush2.bf16.msra.mxu0 %v751
  %1204 = vmatprep.subr.bf16.mxu0 %v745
  %1205 = vmatpush2.bf16.msra.mxu0 %v744
  %1206 = vmatprep.subr.bf16.mxu0 %v738
  %1207 = vmatpush2.bf16.msra.mxu0 %v737
  %1208 = vmatprep.mubr.bf16.mxu0 %v228
  %1209 = vmatmul.mubr.bf16.gmra.mxu0 %v227
  %v1210 = vpop.f32.mrf.mxu0
  %v1211 = vadd.f32 %v190, %v1210
  %v1212 = vpop.f32.mrf.mxu0
  %v1213 = vadd.f32 %v190, %v1212
  %v1214 = vpop.f32.mrf.mxu0
  %v1215 = vadd.f32 %v195, %v1214
  %v1216 = vpop.f32.mrf.mxu0
  %v1217 = vadd.f32 %v195, %v1216
  %1218 = vmatprep.mubr.bf16.mxu0 %v231
  %1219 = vmatmul.mubr.bf16.gmra.mxu0 %v230
  %v1220 = vpop.f32.mrf.mxu0
  %v1221 = vadd.f32 %v200, %v1220
  %v1222 = vpop.f32.mrf.mxu0
  %v1223 = vadd.f32 %v200, %v1222
  %v1224 = vpop.f32.mrf.mxu0
  %v1225 = vadd.f32 %v205, %v1224
  %v1226 = vpop.f32.mrf.mxu0
  %v1227 = vadd.f32 %v205, %v1226
  %1228 = vdwg.mxu0
  %1229 = vmatprep.subr.bf16.mxu0 0
  %1230 = vmatpush1.bf16.msra.mxu0 0
  %1231 = vmatprep.subr.bf16.mxu0 0
  %1232 = vmatpush1.bf16.msra.mxu0 0
  %1233 = vmatprep.subr.bf16.mxu0 0
  %1234 = vmatpush1.bf16.msra.mxu0 0
  %1235 = vmatprep.subr.bf16.mxu0 0
  %1236 = vmatpush1.bf16.msra.mxu0 0
  %1237 = vmatprep.subr.bf16.mxu0 %v815
  %1238 = vmatpush1.bf16.msra.mxu0 %v814
  %1239 = vmatprep.subr.bf16.mxu0 %v808
  %1240 = vmatpush1.bf16.msra.mxu0 %v807
  %1241 = vmatprep.subr.bf16.mxu0 %v801
  %1242 = vmatpush1.bf16.msra.mxu0 %v800
  %1243 = vmatprep.subr.bf16.mxu0 %v794
  %1244 = vmatpush1.bf16.msra.mxu0 %v793
  %1245 = vmatprep.subr.bf16.mxu0 0
  %1246 = vmatpush2.bf16.msra.mxu0 0
  %1247 = vmatprep.subr.bf16.mxu0 0
  %1248 = vmatpush2.bf16.msra.mxu0 0
  %1249 = vmatprep.subr.bf16.mxu0 0
  %1250 = vmatpush2.bf16.msra.mxu0 0
  %1251 = vmatprep.subr.bf16.mxu0 0
  %1252 = vmatpush2.bf16.msra.mxu0 0
  %1253 = vmatprep.subr.bf16.mxu0 0
  %1254 = vmatpush2.bf16.msra.mxu0 0
  %1255 = vmatprep.subr.bf16.mxu0 0
  %1256 = vmatpush2.bf16.msra.mxu0 0
  %1257 = vmatprep.subr.bf16.mxu0 0
  %1258 = vmatpush2.bf16.msra.mxu0 0
  %1259 = vmatprep.subr.bf16.mxu0 0
  %1260 = vmatpush2.bf16.msra.mxu0 0
  %1261 = vmatprep.mubr.bf16.mxu0 0
  %1262 = vmatmul.mubr.bf16.gmra.mxu0 %v959
  %v1263 = vpop.f32.mrf.mxu0
  %v1264 = vadd.f32 %v1211, %v1263
  %v1265 = vpop.f32.mrf.mxu0
  %v1266 = vadd.f32 %v1213, %v1265
  %v1267 = vpop.f32.mrf.mxu0
  %v1268 = vadd.f32 %v1215, %v1267
  %v1269 = vpop.f32.mrf.mxu0
  %v1270 = vadd.f32 %v1217, %v1269
  %1271 = vmatprep.mubr.bf16.mxu0 0
  %1272 = vmatmul.mubr.bf16.gmra.mxu0 %v962
  %v1273 = vpop.f32.mrf.mxu0
  %v1274 = vadd.f32 %v1221, %v1273
  %v1275 = vpop.f32.mrf.mxu0
  %v1276 = vadd.f32 %v1223, %v1275
  %v1277 = vpop.f32.mrf.mxu0
  %v1278 = vadd.f32 %v1225, %v1277
  %v1279 = vpop.f32.mrf.mxu0
  %v1280 = vadd.f32 %v1227, %v1279
  %1281 = vdwg.mxu0
  %1282 = vmatprep.subr.bf16.mxu0 0
  %1283 = vmatpush1.bf16.msra.mxu0 %v732
  %1284 = vmatprep.subr.bf16.mxu0 0
  %1285 = vmatpush1.bf16.msra.mxu0 %v725
  %1286 = vmatprep.subr.bf16.mxu0 0
  %1287 = vmatpush1.bf16.msra.mxu0 %v718
  %1288 = vmatprep.subr.bf16.mxu0 0
  %1289 = vmatpush1.bf16.msra.mxu0 %v711
  %1290 = vmatprep.subr.bf16.mxu0 0
  %1291 = vmatpush1.bf16.msra.mxu0 %v704
  %1292 = vmatprep.subr.bf16.mxu0 0
  %1293 = vmatpush1.bf16.msra.mxu0 %v697
  %1294 = vmatprep.subr.bf16.mxu0 0
  %1295 = vmatpush1.bf16.msra.mxu0 %v690
  %1296 = vmatprep.subr.bf16.mxu0 0
  %1297 = vmatpush1.bf16.msra.mxu0 %v683
  %1298 = vmatprep.subr.bf16.mxu0 0
  %1299 = vmatpush2.bf16.msra.mxu0 %v788
  %1300 = vmatprep.subr.bf16.mxu0 0
  %1301 = vmatpush2.bf16.msra.mxu0 %v781
  %1302 = vmatprep.subr.bf16.mxu0 0
  %1303 = vmatpush2.bf16.msra.mxu0 %v774
  %1304 = vmatprep.subr.bf16.mxu0 0
  %1305 = vmatpush2.bf16.msra.mxu0 %v767
  %1306 = vmatprep.subr.bf16.mxu0 0
  %1307 = vmatpush2.bf16.msra.mxu0 %v760
  %1308 = vmatprep.subr.bf16.mxu0 0
  %1309 = vmatpush2.bf16.msra.mxu0 %v753
  %1310 = vmatprep.subr.bf16.mxu0 0
  %1311 = vmatpush2.bf16.msra.mxu0 %v746
  %1312 = vmatprep.subr.bf16.mxu0 0
  %1313 = vmatpush2.bf16.msra.mxu0 %v739
  %1314 = vmatprep.mubr.bf16.mxu0 %v228
  %1315 = vmatmul.mubr.bf16.gmra.mxu0 %v227
  %v1316 = vpop.f32.mrf.mxu0
  %v1317 = vadd.f32 %v190, %v1316
  %v1318 = vpop.f32.mrf.mxu0
  %v1319 = vpop.f32.mrf.mxu0
  %v1320 = vadd.f32 %v195, %v1319
  %v1321 = vpop.f32.mrf.mxu0
  %1322 = vmatprep.mubr.bf16.mxu0 %v231
  %1323 = vmatmul.mubr.bf16.gmra.mxu0 %v230
  %v1324 = vpop.f32.mrf.mxu0
  %v1325 = vadd.f32 %v200, %v1324
  %v1326 = vpop.f32.mrf.mxu0
  %v1327 = vpop.f32.mrf.mxu0
  %v1328 = vadd.f32 %v205, %v1327
  %v1329 = vpop.f32.mrf.mxu0
  %1330 = vdwg.mxu0
  %1331 = vmatprep.subr.bf16.mxu0 0
  %1332 = vmatpush1.bf16.msra.mxu0 0
  %1333 = vmatprep.subr.bf16.mxu0 0
  %1334 = vmatpush1.bf16.msra.mxu0 0
  %1335 = vmatprep.subr.bf16.mxu0 0
  %1336 = vmatpush1.bf16.msra.mxu0 0
  %1337 = vmatprep.subr.bf16.mxu0 0
  %1338 = vmatpush1.bf16.msra.mxu0 0
  %1339 = vmatprep.subr.bf16.mxu0 0
  %1340 = vmatpush1.bf16.msra.mxu0 %v816
  %1341 = vmatprep.subr.bf16.mxu0 0
  %1342 = vmatpush1.bf16.msra.mxu0 %v809
  %1343 = vmatprep.subr.bf16.mxu0 0
  %1344 = vmatpush1.bf16.msra.mxu0 %v802
  %1345 = vmatprep.subr.bf16.mxu0 0
  %1346 = vmatpush1.bf16.msra.mxu0 %v795
  %1347 = vmatprep.subr.bf16.mxu0 0
  %1348 = vmatpush2.bf16.msra.mxu0 0
  %1349 = vmatprep.subr.bf16.mxu0 0
  %1350 = vmatpush2.bf16.msra.mxu0 0
  %1351 = vmatprep.subr.bf16.mxu0 0
  %1352 = vmatpush2.bf16.msra.mxu0 0
  %1353 = vmatprep.subr.bf16.mxu0 0
  %1354 = vmatpush2.bf16.msra.mxu0 0
  %1355 = vmatprep.subr.bf16.mxu0 0
  %1356 = vmatpush2.bf16.msra.mxu0 0
  %1357 = vmatprep.subr.bf16.mxu0 0
  %1358 = vmatpush2.bf16.msra.mxu0 0
  %1359 = vmatprep.subr.bf16.mxu0 0
  %1360 = vmatpush2.bf16.msra.mxu0 0
  %1361 = vmatprep.subr.bf16.mxu0 0
  %1362 = vmatpush2.bf16.msra.mxu0 0
  %1363 = vmatprep.mubr.bf16.mxu0 0
  %1364 = vmatmul.mubr.bf16.gmra.mxu0 %v959
  %v1365 = vpop.f32.mrf.mxu0
  %v1366 = vadd.f32 %v1317, %v1365
  %v1367 = vpop.f32.mrf.mxu0
  %v1368 = vpop.f32.mrf.mxu0
  %v1369 = vadd.f32 %v1320, %v1368
  %v1370 = vpop.f32.mrf.mxu0
  %1371 = vmatprep.mubr.bf16.mxu0 0
  %1372 = vmatmul.mubr.bf16.gmra.mxu0 %v962
  %v1373 = vpop.f32.mrf.mxu0
  %v1374 = vadd.f32 %v1325, %v1373
  %v1375 = vpop.f32.mrf.mxu0
  %v1376 = vpop.f32.mrf.mxu0
  %v1377 = vadd.f32 %v1328, %v1376
  %v1378 = vpop.f32.mrf.mxu0
  %1379 = vdwg.mxu0
  %vm1380 = vcmp.gt.f32.partialorder %v1052, 0.0
  %vm1381 = vcmp.gt.f32.partialorder %v1054, 0.0
  %vm1382 = vcmp.gt.f32.partialorder %v1158, 0.0
  %vm1383 = vcmp.gt.f32.partialorder %v1160, 0.0
  %vm1384 = vcmp.gt.f32.partialorder %v1264, 0.0
  %vm1385 = vcmp.gt.f32.partialorder %v1266, 0.0
  %vm1386 = vcmp.gt.f32.partialorder %v1366, 0.0
  %vm1387 = vcmp.gt.f32.partialorder %v1056, 0.0
  %vm1388 = vcmp.gt.f32.partialorder %v1058, 0.0
  %vm1389 = vcmp.gt.f32.partialorder %v1162, 0.0
  %vm1390 = vcmp.gt.f32.partialorder %v1164, 0.0
  %vm1391 = vcmp.gt.f32.partialorder %v1268, 0.0
  %vm1392 = vcmp.gt.f32.partialorder %v1270, 0.0
  %vm1393 = vcmp.gt.f32.partialorder %v1369, 0.0
  %vm1394 = vcmp.gt.f32.partialorder %v1062, 0.0
  %vm1395 = vcmp.gt.f32.partialorder %v1064, 0.0
  %vm1396 = vcmp.gt.f32.partialorder %v1168, 0.0
  %vm1397 = vcmp.gt.f32.partialorder %v1170, 0.0
  %vm1398 = vcmp.gt.f32.partialorder %v1274, 0.0
  %vm1399 = vcmp.gt.f32.partialorder %v1276, 0.0
  %vm1400 = vcmp.gt.f32.partialorder %v1374, 0.0
  %vm1401 = vcmp.gt.f32.partialorder %v1066, 0.0
  %vm1402 = vcmp.gt.f32.partialorder %v1068, 0.0
  %vm1403 = vcmp.gt.f32.partialorder %v1172, 0.0
  %vm1404 = vcmp.gt.f32.partialorder %v1174, 0.0
  %vm1405 = vcmp.gt.f32.partialorder %v1278, 0.0
  %vm1406 = vcmp.gt.f32.partialorder %v1280, 0.0
  %vm1407 = vcmp.gt.f32.partialorder %v1377, 0.0
  %v1408 = vmin.f32 %v1052, 0.0
  %v1409 = vmin.f32 %v1054, 0.0
  %v1410 = vmin.f32 %v1158, 0.0
  %v1411 = vmin.f32 %v1160, 0.0
  %v1412 = vmin.f32 %v1264, 0.0
  %v1413 = vmin.f32 %v1266, 0.0
  %v1414 = vmin.f32 %v1366, 0.0
  %v1415 = vmin.f32 %v1056, 0.0
  %v1416 = vmin.f32 %v1058, 0.0
  %v1417 = vmin.f32 %v1162, 0.0
  %v1418 = vmin.f32 %v1164, 0.0
  %v1419 = vmin.f32 %v1268, 0.0
  %v1420 = vmin.f32 %v1270, 0.0
  %v1421 = vmin.f32 %v1369, 0.0
  %v1422 = vmin.f32 %v1062, 0.0
  %v1423 = vmin.f32 %v1064, 0.0
  %v1424 = vmin.f32 %v1168, 0.0
  %v1425 = vmin.f32 %v1170, 0.0
  %v1426 = vmin.f32 %v1274, 0.0
  %v1427 = vmin.f32 %v1276, 0.0
  %v1428 = vmin.f32 %v1374, 0.0
  %v1429 = vmin.f32 %v1066, 0.0
  %v1430 = vmin.f32 %v1068, 0.0
  %v1431 = vmin.f32 %v1172, 0.0
  %v1432 = vmin.f32 %v1174, 0.0
  %v1433 = vmin.f32 %v1278, 0.0
  %v1434 = vmin.f32 %v1280, 0.0
  %v1435 = vmin.f32 %v1377, 0.0
  %v1436 = vmul.f32 %v1408, 1.442695
  %v1437 = vpow.pop %v1436
  %v1438 = vmul.f32 %v1409, 1.442695
  %v1439 = vpow.pop %v1438
  %v1440 = vmul.f32 %v1410, 1.442695
  %v1441 = vpow.pop %v1440
  %v1442 = vmul.f32 %v1411, 1.442695
  %v1443 = vpow.pop %v1442
  %v1444 = vmul.f32 %v1412, 1.442695
  %v1445 = vpow.pop %v1444
  %v1446 = vmul.f32 %v1413, 1.442695
  %v1447 = vpow.pop %v1446
  %v1448 = vmul.f32 %v1414, 1.442695
  %v1449 = vpow.pop %v1448
  %v1450 = vmul.f32 %v1415, 1.442695
  %v1451 = vpow.pop %v1450
  %v1452 = vmul.f32 %v1416, 1.442695
  %v1453 = vpow.pop %v1452
  %v1454 = vmul.f32 %v1417, 1.442695
  %v1455 = vpow.pop %v1454
  %v1456 = vmul.f32 %v1418, 1.442695
  %v1457 = vpow.pop %v1456
  %v1458 = vmul.f32 %v1419, 1.442695
  %v1459 = vpow.pop %v1458
  %v1460 = vmul.f32 %v1420, 1.442695
  %v1461 = vpow.pop %v1460
  %v1462 = vmul.f32 %v1421, 1.442695
  %v1463 = vpow.pop %v1462
  %v1464 = vmul.f32 %v1422, 1.442695
  %v1465 = vpow.pop %v1464
  %v1466 = vmul.f32 %v1423, 1.442695
  %v1467 = vpow.pop %v1466
  %v1468 = vmul.f32 %v1424, 1.442695
  %v1469 = vpow.pop %v1468
  %v1470 = vmul.f32 %v1425, 1.442695
  %v1471 = vpow.pop %v1470
  %v1472 = vmul.f32 %v1426, 1.442695
  %v1473 = vpow.pop %v1472
  %v1474 = vmul.f32 %v1427, 1.442695
  %v1475 = vpow.pop %v1474
  %v1476 = vmul.f32 %v1428, 1.442695
  %v1477 = vpow.pop %v1476
  %v1478 = vmul.f32 %v1429, 1.442695
  %v1479 = vpow.pop %v1478
  %v1480 = vmul.f32 %v1430, 1.442695
  %v1481 = vpow.pop %v1480
  %v1482 = vmul.f32 %v1431, 1.442695
  %v1483 = vpow.pop %v1482
  %v1484 = vmul.f32 %v1432, 1.442695
  %v1485 = vpow.pop %v1484
  %v1486 = vmul.f32 %v1433, 1.442695
  %v1487 = vpow.pop %v1486
  %v1488 = vmul.f32 %v1434, 1.442695
  %v1489 = vpow.pop %v1488
  %v1490 = vmul.f32 %v1435, 1.442695
  %v1491 = vpow.pop %v1490
  %v1492 = vsub.f32 %v1437, 1.0
  %v1493 = vsub.f32 %v1439, 1.0
  %v1494 = vsub.f32 %v1441, 1.0
  %v1495 = vsub.f32 %v1443, 1.0
  %v1496 = vsub.f32 %v1445, 1.0
  %v1497 = vsub.f32 %v1447, 1.0
  %v1498 = vsub.f32 %v1449, 1.0
  %v1499 = vsub.f32 %v1451, 1.0
  %v1500 = vsub.f32 %v1453, 1.0
  %v1501 = vsub.f32 %v1455, 1.0
  %v1502 = vsub.f32 %v1457, 1.0
  %v1503 = vsub.f32 %v1459, 1.0
  %v1504 = vsub.f32 %v1461, 1.0
  %v1505 = vsub.f32 %v1463, 1.0
  %v1506 = vsub.f32 %v1465, 1.0
  %v1507 = vsub.f32 %v1467, 1.0
  %v1508 = vsub.f32 %v1469, 1.0
  %v1509 = vsub.f32 %v1471, 1.0
  %v1510 = vsub.f32 %v1473, 1.0
  %v1511 = vsub.f32 %v1475, 1.0
  %v1512 = vsub.f32 %v1477, 1.0
  %v1513 = vsub.f32 %v1479, 1.0
  %v1514 = vsub.f32 %v1481, 1.0
  %v1515 = vsub.f32 %v1483, 1.0
  %v1516 = vsub.f32 %v1485, 1.0
  %v1517 = vsub.f32 %v1487, 1.0
  %v1518 = vsub.f32 %v1489, 1.0
  %v1519 = vsub.f32 %v1491, 1.0
  %v1520 = vsel %vm1380, %v1052, %v1492
  %v1521 = vsel %vm1381, %v1054, %v1493
  %v1522 = vsel %vm1382, %v1158, %v1494
  %v1523 = vsel %vm1383, %v1160, %v1495
  %v1524 = vsel %vm1384, %v1264, %v1496
  %v1525 = vsel %vm1385, %v1266, %v1497
  %v1526 = vsel %vm1386, %v1366, %v1498
  %v1527 = vsel %vm1387, %v1056, %v1499
  %v1528 = vsel %vm1388, %v1058, %v1500
  %v1529 = vsel %vm1389, %v1162, %v1501
  %v1530 = vsel %vm1390, %v1164, %v1502
  %v1531 = vsel %vm1391, %v1268, %v1503
  %v1532 = vsel %vm1392, %v1270, %v1504
  %v1533 = vsel %vm1393, %v1369, %v1505
  %v1534 = vsel %vm1394, %v1062, %v1506
  %v1535 = vsel %vm1395, %v1064, %v1507
  %v1536 = vsel %vm1396, %v1168, %v1508
  %v1537 = vsel %vm1397, %v1170, %v1509
  %v1538 = vsel %vm1398, %v1274, %v1510
  %v1539 = vsel %vm1399, %v1276, %v1511
  %v1540 = vsel %vm1400, %v1374, %v1512
  %v1541 = vsel %vm1401, %v1066, %v1513
  %v1542 = vsel %vm1402, %v1068, %v1514
  %v1543 = vsel %vm1403, %v1172, %v1515
  %v1544 = vsel %vm1404, %v1174, %v1516
  %v1545 = vsel %vm1405, %v1278, %v1517
  %v1546 = vsel %vm1406, %v1280, %v1518
  %v1547 = vsel %vm1407, %v1377, %v1519
  %1548 = vst [vmem:[%s3] sm:$0xff] %v1520
  %1549 = vst [vmem:[%s3 + $0x8] sm:$0xff] %v1521
  %1550 = vst [vmem:[%s3 + $0x10] sm:$0xff] %v1522
  %1551 = vst [vmem:[%s3 + $0x18] sm:$0xff] %v1523
  %1552 = vst [vmem:[%s3 + $0x20] sm:$0xff] %v1524
  %1553 = vst [vmem:[%s3 + $0x28] sm:$0xff] %v1525
  %1554 = vst [vmem:[%s3 + $0x30] sm:$0xff] %v1526
  %1555 = vst [vmem:[%s3 + $0x38] sm:$0xff] %v1527
  %1556 = vst [vmem:[%s3 + $0x40] sm:$0xff] %v1528
  %1557 = vst [vmem:[%s3 + $0x48] sm:$0xff] %v1529
  %1558 = vst [vmem:[%s3 + $0x50] sm:$0xff] %v1530
  %1559 = vst [vmem:[%s3 + $0x58] sm:$0xff] %v1531
  %1560 = vst [vmem:[%s3 + $0x60] sm:$0xff] %v1532
  %1561 = vst [vmem:[%s3 + $0x68] sm:$0xff] %v1533
  %1562 = vst [vmem:[%s3 + $0x70] sm:$0xff] %v1534
  %1563 = vst [vmem:[%s3 + $0x78] sm:$0xff] %v1535
  %1564 = vst [vmem:[%s3 + $0x80] sm:$0xff] %v1536
  %1565 = vst [vmem:[%s3 + $0x88] sm:$0xff] %v1537
  %1566 = vst [vmem:[%s3 + $0x90] sm:$0xff] %v1538
  %1567 = vst [vmem:[%s3 + $0x98] sm:$0xff] %v1539
  %1568 = vst [vmem:[%s3 + $0xa0] sm:$0xff] %v1540
  %1569 = vst [vmem:[%s3 + $0xa8] sm:$0xff] %v1541
  %1570 = vst [vmem:[%s3 + $0xb0] sm:$0xff] %v1542
  %1571 = vst [vmem:[%s3 + $0xb8] sm:$0xff] %v1543
  %1572 = vst [vmem:[%s3 + $0xc0] sm:$0xff] %v1544
  %1573 = vst [vmem:[%s3 + $0xc8] sm:$0xff] %v1545
  %1574 = vst [vmem:[%s3 + $0xd0] sm:$0xff] %v1546
  %1575 = vst [vmem:[%s3 + $0xd8] sm:$0xff] %v1547
  // Predicated region
  $region14: #{_forward_core.7} parent=0 // pred_check
    _
  $region15: #{_forward_core.7} parent=0 // pred_check_branch
    %1577 = sbr.rel (0) target = $region17
  $region16: #{_forward_core.7} parent=0 // pred_region
    _
  $region17: #{_forward_core.7} parent=0 // pred_fallthru
    _
  // Predicated region
  $region18: #{_forward_core.7} parent=0 // pred_check
    _
  $region19: #{_forward_core.7} parent=0 // pred_check_branch
    %1579 = sbr.rel (0) target = $region21
  $region20: #{_forward_core.7} parent=0 // pred_region
    _
  $region21: #{_forward_core.7} parent=0 // pred_fallthru
    _

// kernel: _forward_core.8
$region0: #{_forward_core.8}
  #allocation0 [shape = 'u32[]', space=smem, size = 0x4, offset = 0x4, fixed_abs, tag = 'smem constant byte address 0x4 - core index']
  #allocation1 [shape = 'u32[144,128]{1,0:T(1,128)}', space=vmem, size = 0x12000, scoped, tag = 'internal scratch']
  %s0 = inlined_call_operand.vmem [shape: bf16[32,288], index: 0, kind: input, shape index: {}]
  %s1 = inlined_call_operand.vmem [shape: bf16[288,128], index: 1, kind: input, shape index: {}]
  %s2 = inlined_call_operand.vmem [shape: f32[32,1], index: 2, kind: input, shape index: {}]
  %s3 = inlined_call_operand.vmem [shape: f32[32,128], index: 3, kind: output, shape index: {}]
  %s4 = sld [smem:[#allocation0]]
  $region22: #{_forward_core.8} parent=0
    _
  %s6 = ssub.s32 1, %s4
  %s7 = scalar_select 0, %s6, %s4
  // Predicated region
  $region2: #{_forward_core.8} parent=0 // pred_check
    _
  $region3: #{_forward_core.8} parent=0 // pred_check_branch
    %9 = sbr.rel (0) target = $region5
  $region4: #{_forward_core.8} parent=0 // pred_region
    _
  $region5: #{_forward_core.8} parent=0 // pred_fallthru
    _
  // Predicated region
  $region6: #{_forward_core.8} parent=0 // pred_check
    _
  $region7: #{_forward_core.8} parent=0 // pred_check_branch
    %11 = sbr.rel (0) target = $region9
  $region8: #{_forward_core.8} parent=0 // pred_region
    _
  $region9: #{_forward_core.8} parent=0 // pred_fallthru
    _
  // Predicated region
  $region10: #{_forward_core.8} parent=0 // pred_check
    _
  $region11: #{_forward_core.8} parent=0 // pred_check_branch
    %13 = sbr.rel (0) target = $region13
  $region12: #{_forward_core.8} parent=0 // pred_region
    _
  $region13: #{_forward_core.8} parent=0 // pred_fallthru
    _
  %v15 = vld [vmem:[%s0] sm:$0xff]
  %v16 = vld [vmem:[%s0 + $0x8] sm:$0xf]
  %v17 = vld [vmem:[%s0 + $0xc] sm:$0xff]
  %v18 = vld [vmem:[%s0 + $0x14] sm:$0xf]
  %v19 = vld [vmem:[%s0 + $0x18] sm:$0xff]
  %v20 = vld [vmem:[%s0 + $0x20] sm:$0xf]
  %v21 = vld [vmem:[%s0 + $0x24] sm:$0xff]
  %v22 = vld [vmem:[%s0 + $0x2c] sm:$0xf]
  %v23 = vld [vmem:[%s1] sm:$0xf]
  %v24 = vld [vmem:[%s1 + $0x4] sm:$0xf]
  %v25 = vld [vmem:[%s1 + $0x8] sm:$0xf]
  %v26 = vld [vmem:[%s1 + $0xc] sm:$0xf]
  %v27 = vld [vmem:[%s1 + $0x10] sm:$0xf]
  %v28 = vld [vmem:[%s1 + $0x14] sm:$0xf]
  %v29 = vld [vmem:[%s1 + $0x18] sm:$0xf]
  %v30 = vld [vmem:[%s1 + $0x1c] sm:$0xf]
  %v31 = vld [vmem:[%s1 + $0x20] sm:$0xf]
  %v32 = vld [vmem:[%s1 + $0x24] sm:$0xf]
  %v33 = vld [vmem:[%s1 + $0x28] sm:$0xf]
  %v34 = vld [vmem:[%s1 + $0x2c] sm:$0xf]
  %v35 = vld [vmem:[%s1 + $0x30] sm:$0xf]
  %v36 = vld [vmem:[%s1 + $0x34] sm:$0xf]
  %v37 = vld [vmem:[%s1 + $0x38] sm:$0xf]
  %v38 = vld [vmem:[%s1 + $0x3c] sm:$0xf]
  %v39 = vld [vmem:[%s1 + $0x40] sm:$0xf]
  %v40 = vld [vmem:[%s1 + $0x44] sm:$0xf]
  %v41 = vld [vmem:[%s1 + $0x48] sm:$0xf]
  %v42 = vld [vmem:[%s1 + $0x4c] sm:$0xf]
  %v43 = vld [vmem:[%s1 + $0x50] sm:$0xf]
  %v44 = vld [vmem:[%s1 + $0x54] sm:$0xf]
  %v45 = vld [vmem:[%s1 + $0x58] sm:$0xf]
  %v46 = vld [vmem:[%s1 + $0x5c] sm:$0xf]
  %v47 = vld [vmem:[%s1 + $0x60] sm:$0xf]
  %v48 = vld [vmem:[%s1 + $0x64] sm:$0xf]
  %v49 = vld [vmem:[%s1 + $0x68] sm:$0xf]
  %v50 = vld [vmem:[%s1 + $0x6c] sm:$0xf]
  %v51 = vld [vmem:[%s1 + $0x70] sm:$0xf]
  %v52 = vld [vmem:[%s1 + $0x74] sm:$0xf]
  %v53 = vld [vmem:[%s1 + $0x78] sm:$0xf]
  %v54 = vld [vmem:[%s1 + $0x7c] sm:$0xf]
  %v55 = vld [vmem:[%s1 + $0x80] sm:$0xf]
  %v56 = vld [vmem:[%s1 + $0x84] sm:$0xf]
  %v57 = vld [vmem:[%s1 + $0x88] sm:$0xf]
  %v58 = vld [vmem:[%s1 + $0x8c] sm:$0xf]
  %v59 = vld [vmem:[%s2] sm:$0xff]
  %v60 = vld [vmem:[%s2 + $0x8] sm:$0xff]
  %v61 = vld [vmem:[%s2 + $0x10] sm:$0xff]
  %v62 = vld [vmem:[%s2 + $0x18] sm:$0xff]
  %64 = vset.pattern.permute.xlu0 0
  %65 = vperm.xlu0 %64, %v59
  %v66 = vpop.permute.xlu0 %65
  %69 = vset.pattern.permute.xlu0 0
  %70 = vperm.xlu0 %69, %v60
  %v71 = vpop.permute.xlu0 %70
  %74 = vset.pattern.permute.xlu0 0
  %75 = vperm.xlu0 %74, %v61
  %v76 = vpop.permute.xlu0 %75
  %79 = vset.pattern.permute.xlu0 0
  %80 = vperm.xlu0 %79, %v62
  %v81 = vpop.permute.xlu0 %80
  %v91 = vunpack.c.l.b16 %v15
  %v92 = vunpack.c.h.b16 %v15
  %v93 = vunpack.c.l.b16 %v16
  %v94 = vunpack.c.l.b16 %v17
  %v95 = vunpack.c.h.b16 %v17
  %v96 = vunpack.c.l.b16 %v18
  %v97 = vunpack.c.l.b16 %v19
  %v98 = vunpack.c.h.b16 %v19
  %v99 = vunpack.c.l.b16 %v20
  %v100 = vunpack.c.l.b16 %v21
  %v101 = vunpack.c.h.b16 %v21
  %v102 = vunpack.c.l.b16 %v22
  %v103 = vpack.c.b16 %v94, %v91
  %v104 = vpack.c.b16 %v95, %v92
  %v105 = vpack.c.b16 %v96, %v93
  %v106 = vpack.c.b16 %v100, %v97
  %v107 = vpack.c.b16 %v101, %v98
  %v108 = vpack.c.b16 %v102, %v99
  %v149 = vunpack.c.l.b16 %v23
  %v150 = vunpack.c.l.b16 %v24
  %v151 = vunpack.c.l.b16 %v25
  %v152 = vunpack.c.l.b16 %v26
  %v153 = vunpack.c.l.b16 %v27
  %v154 = vunpack.c.l.b16 %v28
  %v155 = vunpack.c.l.b16 %v29
  %v156 = vunpack.c.l.b16 %v30
  %v157 = vunpack.c.l.b16 %v31
  %v158 = vunpack.c.l.b16 %v32
  %v159 = vunpack.c.l.b16 %v33
  %v160 = vunpack.c.l.b16 %v34
  %v161 = vunpack.c.l.b16 %v35
  %v162 = vunpack.c.l.b16 %v36
  %v163 = vunpack.c.l.b16 %v37
  %v164 = vunpack.c.l.b16 %v38
  %v165 = vunpack.c.l.b16 %v39
  %v166 = vunpack.c.l.b16 %v40
  %v167 = vunpack.c.l.b16 %v41
  %v168 = vunpack.c.l.b16 %v42
  %v169 = vunpack.c.l.b16 %v43
  %v170 = vunpack.c.l.b16 %v44
  %v171 = vunpack.c.l.b16 %v45
  %v172 = vunpack.c.l.b16 %v46
  %v173 = vunpack.c.l.b16 %v47
  %v174 = vunpack.c.l.b16 %v48
  %v175 = vunpack.c.l.b16 %v49
  %v176 = vunpack.c.l.b16 %v50
  %v177 = vunpack.c.l.b16 %v51
  %v178 = vunpack.c.l.b16 %v52
  %v179 = vunpack.c.l.b16 %v53
  %v180 = vunpack.c.l.b16 %v54
  %v181 = vunpack.c.l.b16 %v55
  %v182 = vunpack.c.l.b16 %v56
  %v183 = vunpack.c.l.b16 %v57
  %v184 = vunpack.c.l.b16 %v58
  %v185 = vpack.c.b16 %v150, %v149
  %v186 = vpack.c.b16 %v152, %v151
  %v187 = vpack.c.b16 %v154, %v153
  %v188 = vpack.c.b16 %v156, %v155
  %v189 = vpack.c.b16 %v158, %v157
  %v190 = vpack.c.b16 %v160, %v159
  %v191 = vpack.c.b16 %v162, %v161
  %v192 = vpack.c.b16 %v164, %v163
  %v193 = vpack.c.b16 %v166, %v165
  %v194 = vpack.c.b16 %v168, %v167
  %v195 = vpack.c.b16 %v170, %v169
  %v196 = vpack.c.b16 %v172, %v171
  %v197 = vpack.c.b16 %v174, %v173
  %v198 = vpack.c.b16 %v176, %v175
  %v199 = vpack.c.b16 %v178, %v177
  %v200 = vpack.c.b16 %v180, %v179
  %v201 = vpack.c.b16 %v182, %v181
  %v202 = vpack.c.b16 %v184, %v183
  %vm221 = vcmask 261120
  %v223 = vsel %vm221, %v105, 0
  %v226 = vsel %vm221, %v108, 0
  %228 = vmatprep.subr.bf16.mxu0 0
  %229 = vmatpush1.bf16.msra.mxu0 %v192
  %230 = vmatprep.subr.bf16.mxu0 0
  %231 = vmatpush1.bf16.msra.mxu0 %v191
  %232 = vmatprep.subr.bf16.mxu0 0
  %233 = vmatpush1.bf16.msra.mxu0 %v190
  %234 = vmatprep.subr.bf16.mxu0 0
  %235 = vmatpush1.bf16.msra.mxu0 %v189
  %236 = vmatprep.subr.bf16.mxu0 0
  %237 = vmatpush1.bf16.msra.mxu0 %v188
  %238 = vmatprep.subr.bf16.mxu0 0
  %239 = vmatpush1.bf16.msra.mxu0 %v187
  %240 = vmatprep.subr.bf16.mxu0 0
  %241 = vmatpush1.bf16.msra.mxu0 %v186
  %242 = vmatprep.subr.bf16.mxu0 0
  %243 = vmatpush1.bf16.msra.mxu0 %v185
  %244 = vmatprep.subr.bf16.mxu0 0
  %245 = vmatpush2.bf16.msra.mxu0 %v200
  %246 = vmatprep.subr.bf16.mxu0 0
  %247 = vmatpush2.bf16.msra.mxu0 %v199
  %248 = vmatprep.subr.bf16.mxu0 0
  %249 = vmatpush2.bf16.msra.mxu0 %v198
  %250 = vmatprep.subr.bf16.mxu0 0
  %251 = vmatpush2.bf16.msra.mxu0 %v197
  %252 = vmatprep.subr.bf16.mxu0 0
  %253 = vmatpush2.bf16.msra.mxu0 %v196
  %254 = vmatprep.subr.bf16.mxu0 0
  %255 = vmatpush2.bf16.msra.mxu0 %v195
  %256 = vmatprep.subr.bf16.mxu0 0
  %257 = vmatpush2.bf16.msra.mxu0 %v194
  %258 = vmatprep.subr.bf16.mxu0 0
  %259 = vmatpush2.bf16.msra.mxu0 %v193
  %260 = vmatprep.mubr.bf16.mxu0 %v104
  %261 = vmatmul.mubr.bf16.gmra.mxu0 %v103
  %v262 = vpop.f32.mrf.mxu0
  %v263 = vadd.f32 %v66, %v262
  %v264 = vpop.f32.mrf.mxu0
  %v265 = vpop.f32.mrf.mxu0
  %v266 = vadd.f32 %v71, %v265
  %v267 = vpop.f32.mrf.mxu0
  %268 = vmatprep.mubr.bf16.mxu0 %v107
  %269 = vmatmul.mubr.bf16.gmra.mxu0 %v106
  %v270 = vpop.f32.mrf.mxu0
  %v271 = vadd.f32 %v76, %v270
  %v272 = vpop.f32.mrf.mxu0
  %v273 = vpop.f32.mrf.mxu0
  %v274 = vadd.f32 %v81, %v273
  %v275 = vpop.f32.mrf.mxu0
  %276 = vdwg.mxu0
  %277 = vmatprep.subr.bf16.mxu0 0
  %278 = vmatpush1.bf16.msra.mxu0 0
  %279 = vmatprep.subr.bf16.mxu0 0
  %280 = vmatpush1.bf16.msra.mxu0 0
  %281 = vmatprep.subr.bf16.mxu0 0
  %282 = vmatpush1.bf16.msra.mxu0 0
  %283 = vmatprep.subr.bf16.mxu0 0
  %284 = vmatpush1.bf16.msra.mxu0 0
  %285 = vmatprep.subr.bf16.mxu0 0
  %286 = vmatpush1.bf16.msra.mxu0 0
  %287 = vmatprep.subr.bf16.mxu0 0
  %288 = vmatpush1.bf16.msra.mxu0 0
  %289 = vmatprep.subr.bf16.mxu0 0
  %290 = vmatpush1.bf16.msra.mxu0 %v202
  %291 = vmatprep.subr.bf16.mxu0 0
  %292 = vmatpush1.bf16.msra.mxu0 %v201
  %293 = vmatprep.subr.bf16.mxu0 0
  %294 = vmatpush2.bf16.msra.mxu0 0
  %295 = vmatprep.subr.bf16.mxu0 0
  %296 = vmatpush2.bf16.msra.mxu0 0
  %297 = vmatprep.subr.bf16.mxu0 0
  %298 = vmatpush2.bf16.msra.mxu0 0
  %299 = vmatprep.subr.bf16.mxu0 0
  %300 = vmatpush2.bf16.msra.mxu0 0
  %301 = vmatprep.subr.bf16.mxu0 0
  %302 = vmatpush2.bf16.msra.mxu0 0
  %303 = vmatprep.subr.bf16.mxu0 0
  %304 = vmatpush2.bf16.msra.mxu0 0
  %305 = vmatprep.subr.bf16.mxu0 0
  %306 = vmatpush2.bf16.msra.mxu0 0
  %307 = vmatprep.subr.bf16.mxu0 0
  %308 = vmatpush2.bf16.msra.mxu0 0
  %309 = vmatprep.mubr.bf16.mxu0 0
  %310 = vmatmul.mubr.bf16.gmra.mxu0 %v223
  %v311 = vpop.f32.mrf.mxu0
  %v312 = vadd.f32 %v263, %v311
  %v313 = vpop.f32.mrf.mxu0
  %v314 = vpop.f32.mrf.mxu0
  %v315 = vadd.f32 %v266, %v314
  %v316 = vpop.f32.mrf.mxu0
  %317 = vmatprep.mubr.bf16.mxu0 0
  %318 = vmatmul.mubr.bf16.gmra.mxu0 %v226
  %v319 = vpop.f32.mrf.mxu0
  %v320 = vadd.f32 %v271, %v319
  %v321 = vpop.f32.mrf.mxu0
  %v322 = vpop.f32.mrf.mxu0
  %v323 = vadd.f32 %v274, %v322
  %v324 = vpop.f32.mrf.mxu0
  %325 = vdwg.mxu0
  %vm326 = vcmp.gt.f32.partialorder %v312, 0.0
  %vm327 = vcmp.gt.f32.partialorder %v315, 0.0
  %vm328 = vcmp.gt.f32.partialorder %v320, 0.0
  %vm329 = vcmp.gt.f32.partialorder %v323, 0.0
  %v330 = vmin.f32 %v312, 0.0
  %v331 = vmin.f32 %v315, 0.0
  %v332 = vmin.f32 %v320, 0.0
  %v333 = vmin.f32 %v323, 0.0
  %v334 = vmul.f32 %v330, 1.442695
  %v335 = vpow.pop %v334
  %v336 = vmul.f32 %v331, 1.442695
  %v337 = vpow.pop %v336
  %v338 = vmul.f32 %v332, 1.442695
  %v339 = vpow.pop %v338
  %v340 = vmul.f32 %v333, 1.442695
  %v341 = vpow.pop %v340
  %v342 = vsub.f32 %v335, 1.0
  %v343 = vsub.f32 %v337, 1.0
  %v344 = vsub.f32 %v339, 1.0
  %v345 = vsub.f32 %v341, 1.0
  %v346 = vsel %vm326, %v312, %v342
  %v347 = vsel %vm327, %v315, %v343
  %v348 = vsel %vm328, %v320, %v344
  %v349 = vsel %vm329, %v323, %v345
  %350 = vst [vmem:[%s3] sm:$0xff] %v346
  %351 = vst [vmem:[%s3 + $0x8] sm:$0xff] %v347
  %352 = vst [vmem:[%s3 + $0x10] sm:$0xff] %v348
  %353 = vst [vmem:[%s3 + $0x18] sm:$0xff] %v349
  // Predicated region
  $region14: #{_forward_core.8} parent=0 // pred_check
    _
  $region15: #{_forward_core.8} parent=0 // pred_check_branch
    %355 = sbr.rel (0) target = $region17
  $region16: #{_forward_core.8} parent=0 // pred_region
    _
  $region17: #{_forward_core.8} parent=0 // pred_fallthru
    _
  // Predicated region
  $region18: #{_forward_core.8} parent=0 // pred_check
    _
  $region19: #{_forward_core.8} parent=0 // pred_check_branch
    %357 = sbr.rel (0) target = $region21
  $region20: #{_forward_core.8} parent=0 // pred_region
    _
  $region21: #{_forward_core.8} parent=0 // pred_fallthru
    _

// kernel: _forward_core.10
$region0: #{_forward_core.10}
  #allocation0 [shape = 'u32[]', space=smem, size = 0x4, offset = 0x4, fixed_abs, tag = 'smem constant byte address 0x4 - core index']
  #allocation1 [shape = 'u32[144,128]{1,0:T(1,128)}', space=vmem, size = 0x12000, scoped, tag = 'internal scratch']
  %s0 = inlined_call_operand.vmem [shape: bf16[64,32], index: 0, kind: input, shape index: {}]
  %s1 = inlined_call_operand.vmem [shape: bf16[32,128], index: 1, kind: input, shape index: {}]
  %s2 = inlined_call_operand.vmem [shape: f32[64,1], index: 2, kind: input, shape index: {}]
  %s3 = inlined_call_operand.vmem [shape: f32[64,128], index: 3, kind: output, shape index: {}]
  %s4 = sld [smem:[#allocation0]]
  $region22: #{_forward_core.10} parent=0
    _
  %s6 = ssub.s32 1, %s4
  %s7 = scalar_select 0, %s6, %s4
  // Predicated region
  $region2: #{_forward_core.10} parent=0 // pred_check
    _
  $region3: #{_forward_core.10} parent=0 // pred_check_branch
    %9 = sbr.rel (0) target = $region5
  $region4: #{_forward_core.10} parent=0 // pred_region
    _
  $region5: #{_forward_core.10} parent=0 // pred_fallthru
    _
  // Predicated region
  $region6: #{_forward_core.10} parent=0 // pred_check
    _
  $region7: #{_forward_core.10} parent=0 // pred_check_branch
    %11 = sbr.rel (0) target = $region9
  $region8: #{_forward_core.10} parent=0 // pred_region
    _
  $region9: #{_forward_core.10} parent=0 // pred_fallthru
    _
  // Predicated region
  $region10: #{_forward_core.10} parent=0 // pred_check
    _
  $region11: #{_forward_core.10} parent=0 // pred_check_branch
    %13 = sbr.rel (0) target = $region13
  $region12: #{_forward_core.10} parent=0 // pred_region
    _
  $region13: #{_forward_core.10} parent=0 // pred_fallthru
    _
  %v15 = vld [vmem:[%s0] sm:$0xf]
  %v16 = vld [vmem:[%s0 + $0x4] sm:$0xf]
  %v17 = vld [vmem:[%s0 + $0x8] sm:$0xf]
  %v18 = vld [vmem:[%s0 + $0xc] sm:$0xf]
  %v19 = vld [vmem:[%s0 + $0x10] sm:$0xf]
  %v20 = vld [vmem:[%s0 + $0x14] sm:$0xf]
  %v21 = vld [vmem:[%s0 + $0x18] sm:$0xf]
  %v22 = vld [vmem:[%s0 + $0x1c] sm:$0xf]
  %v23 = vld [vmem:[%s1] sm:$0xf]
  %v24 = vld [vmem:[%s1 + $0x4] sm:$0xf]
  %v25 = vld [vmem:[%s1 + $0x8] sm:$0xf]
  %v26 = vld [vmem:[%s1 + $0xc] sm:$0xf]
  %v27 = vld [vmem:[%s2] sm:$0xff]
  %v28 = vld [vmem:[%s2 + $0x8] sm:$0xff]
  %v29 = vld [vmem:[%s2 + $0x10] sm:$0xff]
  %v30 = vld [vmem:[%s2 + $0x18] sm:$0xff]
  %v31 = vld [vmem:[%s2 + $0x20] sm:$0xff]
  %v32 = vld [vmem:[%s2 + $0x28] sm:$0xff]
  %v33 = vld [vmem:[%s2 + $0x30] sm:$0xff]
  %v34 = vld [vmem:[%s2 + $0x38] sm:$0xff]
  %36 = vset.pattern.permute.xlu0 0
  %37 = vperm.xlu0 %36, %v27
  %v38 = vpop.permute.xlu0 %37
  %41 = vset.pattern.permute.xlu0 0
  %42 = vperm.xlu0 %41, %v28
  %v43 = vpop.permute.xlu0 %42
  %46 = vset.pattern.permute.xlu0 0
  %47 = vperm.xlu0 %46, %v29
  %v48 = vpop.permute.xlu0 %47
  %51 = vset.pattern.permute.xlu0 0
  %52 = vperm.xlu0 %51, %v30
  %v53 = vpop.permute.xlu0 %52
  %56 = vset.pattern.permute.xlu0 0
  %57 = vperm.xlu0 %56, %v31
  %v58 = vpop.permute.xlu0 %57
  %61 = vset.pattern.permute.xlu0 0
  %62 = vperm.xlu0 %61, %v32
  %v63 = vpop.permute.xlu0 %62
  %66 = vset.pattern.permute.xlu0 0
  %67 = vperm.xlu0 %66, %v33
  %v68 = vpop.permute.xlu0 %67
  %71 = vset.pattern.permute.xlu0 0
  %72 = vperm.xlu0 %71, %v34
  %v73 = vpop.permute.xlu0 %72
  %v83 = vunpack.c.l.b16 %v15
  %v84 = vunpack.c.l.b16 %v16
  %v85 = vunpack.c.l.b16 %v17
  %v86 = vunpack.c.l.b16 %v18
  %v87 = vunpack.c.l.b16 %v19
  %v88 = vunpack.c.l.b16 %v20
  %v89 = vunpack.c.l.b16 %v21
  %v90 = vunpack.c.l.b16 %v22
  %v91 = vpack.c.b16 %v84, %v83
  %v92 = vpack.c.b16 %v86, %v85
  %v93 = vpack.c.b16 %v88, %v87
  %v94 = vpack.c.b16 %v90, %v89
  %v99 = vunpack.c.l.b16 %v23
  %v100 = vunpack.c.l.b16 %v24
  %v101 = vunpack.c.l.b16 %v25
  %v102 = vunpack.c.l.b16 %v26
  %v103 = vpack.c.b16 %v100, %v99
  %v104 = vpack.c.b16 %v102, %v101
  %vm107 = vcmask 261120
  %v109 = vsel %vm107, %v91, 0
  %v112 = vsel %vm107, %v92, 0
  %v115 = vsel %vm107, %v93, 0
  %v118 = vsel %vm107, %v94, 0
  %120 = vmatprep.subr.bf16.mxu0 0
  %121 = vmatpush1.bf16.msra.mxu0 0
  %122 = vmatprep.subr.bf16.mxu0 0
  %123 = vmatpush1.bf16.msra.mxu0 0
  %124 = vmatprep.subr.bf16.mxu0 0
  %125 = vmatpush1.bf16.msra.mxu0 0
  %126 = vmatprep.subr.bf16.mxu0 0
  %127 = vmatpush1.bf16.msra.mxu0 0
  %128 = vmatprep.subr.bf16.mxu0 0
  %129 = vmatpush1.bf16.msra.mxu0 0
  %130 = vmatprep.subr.bf16.mxu0 0
  %131 = vmatpush1.bf16.msra.mxu0 0
  %132 = vmatprep.subr.bf16.mxu0 0
  %133 = vmatpush1.bf16.msra.mxu0 %v104
  %134 = vmatprep.subr.bf16.mxu0 0
  %135 = vmatpush1.bf16.msra.mxu0 %v103
  %136 = vmatprep.subr.bf16.mxu0 0
  %137 = vmatpush2.bf16.msra.mxu0 0
  %138 = vmatprep.subr.bf16.mxu0 0
  %139 = vmatpush2.bf16.msra.mxu0 0
  %140 = vmatprep.subr.bf16.mxu0 0
  %141 = vmatpush2.bf16.msra.mxu0 0
  %142 = vmatprep.subr.bf16.mxu0 0
  %143 = vmatpush2.bf16.msra.mxu0 0
  %144 = vmatprep.subr.bf16.mxu0 0
  %145 = vmatpush2.bf16.msra.mxu0 0
  %146 = vmatprep.subr.bf16.mxu0 0
  %147 = vmatpush2.bf16.msra.mxu0 0
  %148 = vmatprep.subr.bf16.mxu0 0
  %149 = vmatpush2.bf16.msra.mxu0 0
  %150 = vmatprep.subr.bf16.mxu0 0
  %151 = vmatpush2.bf16.msra.mxu0 0
  %152 = vmatprep.mubr.bf16.mxu0 0
  %153 = vmatmul.mubr.bf16.gmra.mxu0 %v109
  %v154 = vpop.f32.mrf.mxu0
  %v155 = vadd.f32 %v38, %v154
  %v156 = vpop.f32.mrf.mxu0
  %v157 = vpop.f32.mrf.mxu0
  %v158 = vadd.f32 %v43, %v157
  %v159 = vpop.f32.mrf.mxu0
  %160 = vmatprep.mubr.bf16.mxu0 0
  %161 = vmatmul.mubr.bf16.gmra.mxu0 %v112
  %v162 = vpop.f32.mrf.mxu0
  %v163 = vadd.f32 %v48, %v162
  %v164 = vpop.f32.mrf.mxu0
  %v165 = vpop.f32.mrf.mxu0
  %v166 = vadd.f32 %v53, %v165
  %v167 = vpop.f32.mrf.mxu0
  %168 = vmatprep.mubr.bf16.mxu0 0
  %169 = vmatmul.mubr.bf16.gmra.mxu0 %v115
  %v170 = vpop.f32.mrf.mxu0
  %v171 = vadd.f32 %v58, %v170
  %v172 = vpop.f32.mrf.mxu0
  %v173 = vpop.f32.mrf.mxu0
  %v174 = vadd.f32 %v63, %v173
  %v175 = vpop.f32.mrf.mxu0
  %176 = vmatprep.mubr.bf16.mxu0 0
  %177 = vmatmul.mubr.bf16.gmra.mxu0 %v118
  %v178 = vpop.f32.mrf.mxu0
  %v179 = vadd.f32 %v68, %v178
  %v180 = vpop.f32.mrf.mxu0
  %v181 = vpop.f32.mrf.mxu0
  %v182 = vadd.f32 %v73, %v181
  %v183 = vpop.f32.mrf.mxu0
  %184 = vdwg.mxu0
  %185 = vst [vmem:[%s3] sm:$0xff] %v155
  %186 = vst [vmem:[%s3 + $0x8] sm:$0xff] %v158
  %187 = vst [vmem:[%s3 + $0x10] sm:$0xff] %v163
  %188 = vst [vmem:[%s3 + $0x18] sm:$0xff] %v166
  %189 = vst [vmem:[%s3 + $0x20] sm:$0xff] %v171
  %190 = vst [vmem:[%s3 + $0x28] sm:$0xff] %v174
  %191 = vst [vmem:[%s3 + $0x30] sm:$0xff] %v179
  %192 = vst [vmem:[%s3 + $0x38] sm:$0xff] %v182
  // Predicated region
  $region14: #{_forward_core.10} parent=0 // pred_check
    _
  $region15: #{_forward_core.10} parent=0 // pred_check_branch
    %194 = sbr.rel (0) target = $region17
  $region16: #{_forward_core.10} parent=0 // pred_region
    _
  $region17: #{_forward_core.10} parent=0 // pred_fallthru
    _
  // Predicated region
  $region18: #{_forward_core.10} parent=0 // pred_check
    _
  $region19: #{_forward_core.10} parent=0 // pred_check_branch
    %196 = sbr.rel (0) target = $region21
  $region20: #{_forward_core.10} parent=0 // pred_region
    _
  $region21: #{_forward_core.10} parent=0 // pred_fallthru
    _

// kernel: _forward_core.11
$region0: #{_forward_core.11}
  #allocation0 [shape = 'u32[]', space=smem, size = 0x4, offset = 0x4, fixed_abs, tag = 'smem constant byte address 0x4 - core index']
  #allocation1 [shape = 'u32[144,128]{1,0:T(1,128)}', space=vmem, size = 0x12000, scoped, tag = 'internal scratch']
  %s0 = inlined_call_operand.vmem [shape: f32[8,64], index: 0, kind: input, shape index: {}]
  %s1 = inlined_call_operand.vmem [shape: s32[8,1], index: 1, kind: input, shape index: {}]
  %s2 = inlined_call_operand.vmem [shape: s32[8,1], index: 2, kind: output, shape index: {0}]
  %s3 = inlined_call_operand.vmem [shape: f32[8,1], index: 3, kind: output, shape index: {1}]
  %s4 = inlined_call_operand.hbm [shape: f32[1,1], index: 4, kind: output, shape index: {2}]
  %5 = xla_tuple %s2, %s3, %s4
  %s6 = sld [smem:[#allocation0]]
  $region34: #{_forward_core.11} parent=0
    _
  %s8 = ssub.s32 1, %s6
  %s9 = scalar_select 0, %s8, %s6
  $region1: #{_forward_core.11} parent=0
    #allocation2 [shape = 'u8[512]{0}', space=vmem, size = 0x400, scoped, tag = 'output window, operand 2, single buffered']
    #allocation3 [shape = 's32[1]{0}', space=sflag, size = 0x4, scoped, tag = 'scoped memory for _forward_core.11']
    %10 = vsyncpa [#allocation3], 0
    // Predicated region
    $region2: #{_forward_core.11} parent=1 // pred_check
      _
    $region3: #{_forward_core.11} parent=1 // pred_check_branch
      %12 = sbr.rel (0) target = $region5
    $region4: #{_forward_core.11} parent=1 // pred_region
      _
    $region5: #{_forward_core.11} parent=1 // pred_fallthru
      _
    // Predicated region
    $region6: #{_forward_core.11} parent=1 // pred_check
      _
    $region7: #{_forward_core.11} parent=1 // pred_check_branch
      %14 = sbr.rel (0) target = $region9
    $region8: #{_forward_core.11} parent=1 // pred_region
      _
    $region9: #{_forward_core.11} parent=1 // pred_fallthru
      _
    %v15 = vld [vmem:[%s0] sm:$0xff]
    %v16 = vld [vmem:[%s1] sm:$0xff]
    %v17 = vlaneseq
    %v18 = vand.u32 %v17, 127
    %vm19 = vcmask 523264
    %v20 = vsel %vm19, %v15, -inf
    %21 = vmax.xlane.f32.xlu0 %v20
    %v22 = vpop.xlane.xlu0 %21
    %vm23 = vcmp.eq.f32.partialorder %v15, %v22
    %v24 = vsel %vm23, %v18, 64
    %v25 = vsel %vm19, %v24, 2147483647
    %v26 = vand.u32 %v25, 65535
    %v27 = vshra.s32 %v25, 16
    %v28 = vcvt.s32.f32 %v26
    %v29 = vcvt.s32.f32 %v27
    %30 = vmin.xlane.f32.xlu0 %v29
    %v31 = vpop.xlane.xlu0 %30
    %vm32 = vcmp.eq.f32.partialorder %v29, %v31
    %v33 = vsel %vm32, %v28, inf
    %34 = vmin.xlane.f32.xlu0 %v33
    %v35 = vpop.xlane.xlu0 %34
    %v36 = vcvt.f32.s32 %v35
    %v37 = vcvt.f32.s32 %v31
    %v38 = vshll.u32 %v37, 16
    %v39 = vadd.s32 %v38, %v36
    %vm40 = vcmask 7168
    %41 = vst.msk [vmem:[%s2] sm:$0xff] %vm40, %v39
    %v42 = vsub.f32 %v15, %v22
    %v43 = vmul.f32 %v42, 1.442695
    %v44 = vpow.pop %v43
    %v45 = vsel %vm19, %v44, 0.0
    %46 = vadd.xlane.f32.xlu0 %v45
    %v47 = vpop.xlane.xlu0 %46
    %v48 = vrcp.pop %v47
    %v49 = vmul.f32 %v44, %v48
    %50 = vset.pattern.permute.xlu0 0
    %51 = vperm.xlu0 %50, %v16
    %v52 = vpop.permute.xlu0 %51
    %vm53 = vcmp.eq.s32.totalorder %v18, %v52
    %v54 = vsel %vm53, 1, 0
    %v55 = vcvt.s32.f32 %v54
    %v56 = vmul.f32 %v49, %v55
    %v57 = vsel %vm19, %v56, 0.0
    %58 = vadd.xlane.f32.xlu0 %v57
    %v59 = vpop.xlane.xlu0 %58
    %60 = vst.msk [vmem:[%s3] sm:$0xff] %vm40, %v59
    %v61 = vlog2.pop %v47
    %v62 = vmul.f32 %v61, 0.6931472
    %v63 = vsub.f32 %v42, %v62
    %v64 = vmul.f32 %v63, %v55
    %v65 = vsel %vm19, %v64, 0.0
    %66 = vadd.xlane.f32.xlu0 %v65
    %v67 = vpop.xlane.xlu0 %66
    %v68 = vsub.f32 0.0, %v67
    %s69 = smul.u32 0, 8
    %v70 = vlaneseq
    %v71 = vshrl.u32 %v70, 7
    %v72 = vstv %s69
    %v73 = vadd.s32 %v72, %v71
    %vm74 = vcmp.lt.s32.totalorder %v73, 8
    %v75 = vsel %vm74, %v68, 0.0
    %v76 = vrot.slane %v75, 4
    %v77 = vadd.f32 %v75, %v76
    %v78 = vrot.slane %v77, 2
    %v79 = vadd.f32 %v77, %v78
    %v80 = vrot.slane %v79, 1
    %v81 = vadd.f32 %v79, %v80
    %vm82 = vcmask 0
    %83 = vst.msk [vmem:[#allocation2] sm:$0x1] %vm82, %v81
    // Predicated region
    $region10: #{_forward_core.11} parent=1 // pred_check
      _
    $region11: #{_forward_core.11} parent=1 // pred_check_branch
      %85 = sbr.rel (0) target = $region13
    $region12: #{_forward_core.11} parent=1 // pred_region
      _
    $region13: #{_forward_core.11} parent=1 // pred_fallthru
      _
    // Predicated region
    $region14: #{_forward_core.11} parent=1 // pred_check
      _
    $region15: #{_forward_core.11} parent=1 // pred_check_branch
      %87 = sbr.rel (0) target = $region17
    $region16: #{_forward_core.11} parent=1 // pred_region
      _
    $region17: #{_forward_core.11} parent=1 // pred_fallthru
      _
    // Predicated region
    $region18: #{_forward_core.11} parent=1 // pred_check
      _
    $region19: #{_forward_core.11} parent=1 // pred_check_branch
      %89 = sbr.rel (0) target = $region21
    $region20: #{_forward_core.11} parent=1 // pred_region
      %s91 = ssub.s32 16, 16
      %92 = vsyncadd [#allocation3], %s91
      %s94 = sshll.u32 [#allocation2], 4
      %s95 = int_to_ptr.vmem [resolvable:$true] %s94
      %97 = dma.vmem_to_hbm [thread:$0]  %s95, 16, %s4, [#allocation3]
    $region21: #{_forward_core.11} parent=1 // pred_fallthru
      _
    // Predicated region
    $region22: #{_forward_core.11} parent=1 // pred_check
      _
    $region23: #{_forward_core.11} parent=1 // pred_check_branch
      %99 = sbr.rel (0) target = $region25
    $region24: #{_forward_core.11} parent=1 // pred_region
      _
    $region25: #{_forward_core.11} parent=1 // pred_fallthru
      _
    // Predicated region
    $region26: #{_forward_core.11} parent=1 // pred_check
      _
    $region27: #{_forward_core.11} parent=1 // pred_check_branch
      %101 = sbr.rel (0) target = $region29
    $region28: #{_forward_core.11} parent=1 // pred_region
      _
    $region29: #{_forward_core.11} parent=1 // pred_fallthru
      _
    // Predicated region
    $region30: #{_forward_core.11} parent=1 // pred_check
      _
    $region31: #{_forward_core.11} parent=1 // pred_check_branch
      %103 = sbr.rel (0) target = $region33
    $region32: #{_forward_core.11} parent=1 // pred_region
      %104 = dma.done [#allocation3], 16
    $region33: #{_forward_core.11} parent=1 // pred_fallthru
      _
    %105 = vsyncpa [#allocation3], 1

</llo_original>
